<compile_context>
chip_gen: v7x
topology: tpu7x:2x2x1
jax: 0.10.0
libtpu: 0.0.40
codegen_flags: <defaults>
</compile_context>

<pallas_src>
import functools

import jax
import jax.numpy as jnp
import numpy as np
from jax import lax
from jax.experimental import pallas as pl
from jax.experimental.pallas import tpu as pltpu


# Set to jnp.float32 for tight (1e-4) parity with the f32 reference; bfloat16
# halves activation/weight DMA bytes and uses the MXU's native operand format.
COMPUTE_DTYPE = jnp.bfloat16
BN_EPS = 1e-5


# ----------------------------------------------------------------------------
# Fused conv(3x3, pad=1) + BatchNorm + ReLU + MaxPool(2x2) kernel (one image)
# ----------------------------------------------------------------------------
def _conv_block_kernel(x_ref, w_ref, scale_ref, bias_ref, o_ref, *, hh, nl):
    # x_ref:     (2*hh+2, K)  zero-padded image rows: even rows [0..hh] then
    #                         odd rows [0..hh], each flattened over (W+2, Cin).
    # w_ref:     (K, 3*nl)    [Wk0 | Wk1 | Wk2] banded weights (one per kernel
    #                         row ky); output columns ordered (even-w | odd-w).
    # scale_ref: (1, nl)      folded BN scale, tiled over W.
    # bias_ref:  (1, nl)      folded conv-bias/BN bias, tiled over W.
    # o_ref:     (hh, nl//2)  pooled rows, lane order (w_pooled, cout).
    p = jnp.dot(x_ref[...], w_ref[...], preferred_element_type=jnp.float32)

    # Conv row 2i   uses padded rows (2i, 2i+1, 2i+2) -> (xe[i], xo[i], xe[i+1])
    # Conv row 2i+1 uses padded rows (2i+1,2i+2,2i+3) -> (xo[i], xe[i+1], xo[i+1])
    # xe rows sit at 0..hh of x_ref/p, xo rows at hh+1..2*hh+1.
    y_even = (p[0:hh, 0:nl]
              + p[hh + 1:2 * hh + 1, nl:2 * nl]
              + p[1:hh + 1, 2 * nl:3 * nl])
    y_odd = (p[hh + 1:2 * hh + 1, 0:nl]
             + p[1:hh + 1, nl:2 * nl]
             + p[hh + 2:2 * hh + 2, 2 * nl:3 * nl])

    s = scale_ref[...]
    t = bias_ref[...]
    ye = jnp.maximum(y_even * s + t, 0.0)
    yo = jnp.maximum(y_odd * s + t, 0.0)
    yh = jnp.maximum(ye, yo)                       # 2x max-pool over H (rows)
    nh = nl // 2
    # 2x max-pool over W: lanes [0:nh] are even-w outputs, [nh:] are odd-w.
    o_ref[...] = jnp.maximum(yh[:, :nh], yh[:, nh:]).astype(o_ref.dtype)


def _fused_conv_block(x_eo, w3, scale_w, bias_w, *, hh, nl, out_dtype):
    # x_eo: (N, 2*hh+2, K)  w3: (K, 3*nl)  scale/bias: (1, nl)
    N, rows, K = x_eo.shape
    nh = nl // 2
    kernel = functools.partial(_conv_block_kernel, hh=hh, nl=nl)
    return pl.pallas_call(
        kernel,
        out_shape=jax.ShapeDtypeStruct((N, hh, nh), out_dtype),
        grid=(N,),
        in_specs=[
            pl.BlockSpec((None, rows, K), lambda n: (n, 0, 0)),
            pl.BlockSpec((K, 3 * nl), lambda n: (0, 0)),   # weights resident
            pl.BlockSpec((1, nl), lambda n: (0, 0)),
            pl.BlockSpec((1, nl), lambda n: (0, 0)),
        ],
        out_specs=pl.BlockSpec((None, hh, nh), lambda n: (n, 0, 0)),
        compiler_params=pltpu.CompilerParams(
            dimension_semantics=("parallel",)),   # shard batch across TCs (v7x)
    )(x_eo, w3, scale_w, bias_w)


# ----------------------------------------------------------------------------
# Parameter preprocessing (done once, outside the hot path)
# ----------------------------------------------------------------------------
def _banded_weights(w, W, dtype):
    """Fold the 3x3 conv into 3 banded ((W+2)*Cin, W*Cout) matrices (per ky),
    output columns permuted to (even w | odd w) for lane-slice W-pooling."""
    _, _, Cin, Cout = w.shape
    K = (W + 2) * Cin
    w_in = np.arange(W + 2)[:, None, None]
    kx = np.arange(3)[None, :, None]
    w_out = np.arange(W)[None, None, :]
    sel = jnp.asarray((w_in == w_out + kx).astype(np.float32))   # (W+2, 3, W)
    perm = np.concatenate([np.arange(0, W, 2), np.arange(1, W, 2)])
    mats = []
    for ky in range(3):
        full = jnp.einsum("ikw,kco->icwo", sel, w[ky])   # (W+2, Cin, W, Cout)
        mats.append(full[:, :, perm, :].reshape(K, W * Cout))
    return jnp.concatenate(mats, axis=1).astype(dtype)   # (K, 3*W*Cout)


def prepare_layers(params_list, H, W, compute_dtype=COMPUTE_DTYPE):
    layers = []
    h, w_sp = H, W
    for li, (w, b, gamma, beta, mean, var) in enumerate(params_list):
        assert h % 2 == 0 and w_sp % 2 == 0, "spatial dims must stay even"
        Cin, Cout = int(w.shape[2]), int(w.shape[3])
        scale = gamma / jnp.sqrt(var + BN_EPS)            # fold BN into affine
        bias = (b - mean) * scale + beta
        layers.append(dict(
            H=h, W=w_sp, Cin=Cin, Cout=Cout,
            w3=_banded_weights(w, w_sp, compute_dtype),
            scale=jnp.tile(scale, w_sp).reshape(1, w_sp * Cout).astype(jnp.float32),
            bias=jnp.tile(bias, w_sp).reshape(1, w_sp * Cout).astype(jnp.float32),
            out_dtype=(jnp.float32 if li == len(params_list) - 1
                       else compute_dtype),
        ))
        h //= 2
        w_sp //= 2
    return layers


# ----------------------------------------------------------------------------
# Forward pass (glue per block: pad + even/odd row split, all metadata/tiny)
# ----------------------------------------------------------------------------
def pronet_forward(x_nchw, layers):
    N = x_nchw.shape[0]
    x = jnp.transpose(x_nchw, (0, 2, 3, 1))               # NCHW -> NHWC
    for lyr in layers:
        H, W, Cin, Cout = lyr["H"], lyr["W"], lyr["Cin"], lyr["Cout"]
        x = x.reshape(N, H, W, Cin).astype(lyr["w3"].dtype)
        xp = jnp.pad(x, ((0, 0), (1, 1), (1, 1), (0, 0)))
        xp2 = xp.reshape(N, H + 2, (W + 2) * Cin)         # rows flat over (w, c)
        x_eo = jnp.concatenate([xp2[:, 0::2, :], xp2[:, 1::2, :]], axis=1)
        x = _fused_conv_block(x_eo, lyr["w3"], lyr["scale"], lyr["bias"],
                              hh=H // 2, nl=W * Cout, out_dtype=lyr["out_dtype"])
        # x: (N, H//2, (W//2)*Cout), NHWC with (w, c) flattened on the lane axis
    hf, wf, cf = layers[-1]["H"] // 2, layers[-1]["W"] // 2, layers[-1]["Cout"]
    x = x.reshape(N, hf, wf, cf).transpose(0, 3, 1, 2)    # back to NCHW
    return x.reshape(N, -1)                               # torch x.view(N, -1)


# ----------------------------------------------------------------------------
# Deterministic parameter init (shapes per ProNet.__init__)
# ----------------------------------------------------------------------------
def init_params(key, in_channels, hid_channels, out_channels):
    chans = [(in_channels, hid_channels),
             (hid_channels, hid_channels),
             (hid_channels, hid_channels),
             (hid_channels, out_channels)]
    params = []
    for i, (cin, cout) in enumerate(chans):
        k = jax.random.fold_in(key, i)
        kw, kb, kg, kbe, km, kv = jax.random.split(k, 6)
        w = 0.1 * jax.random.normal(kw, (3, 3, cin, cout), jnp.float32)
        b = 0.1 * jax.random.normal(kb, (cout,), jnp.float32)
        gamma = 1.0 + 0.1 * jax.random.normal(kg, (cout,), jnp.float32)
        beta = 0.1 * jax.random.normal(kbe, (cout,), jnp.float32)
        mean = 0.1 * jax.random.normal(km, (cout,), jnp.float32)
        var = 1.0 + 0.5 * jax.random.uniform(kv, (cout,), jnp.float32)
        params.append((w, b, gamma, beta, mean, var))
    return params


# ----------------------------------------------------------------------------
# Pure-JAX f32 reference (for correctness check)
# ----------------------------------------------------------------------------
def reference_forward(x_nchw, params_list):
    x = jnp.transpose(x_nchw, (0, 2, 3, 1))
    for (w, b, gamma, beta, mean, var) in params_list:
        y = lax.conv_general_dilated(
            x, w, window_strides=(1, 1), padding="SAME",
            dimension_numbers=("NHWC", "HWIO", "NHWC")) + b
        y = (y - mean) / jnp.sqrt(var + BN_EPS) * gamma + beta
        y = jnp.maximum(y, 0.0)
        x = lax.reduce_window(y, -jnp.inf, lax.max,
                              (1, 2, 2, 1), (1, 2, 2, 1), "VALID")
    xo = jnp.transpose(x, (0, 3, 1, 2))
    return xo.reshape(xo.shape[0], -1)


if __name__ == "__main__":
    key = jax.random.PRNGKey(0)
    kx, kp = jax.random.split(key)

    # NCHW input, 16x16 spatial so 4 pools bring it to 1x1; 32 hidden/out chans.
    N, Cin, H, W = 2, 3, 16, 16
    hid_channels = out_channels = 32

    x = jax.random.normal(kx, (N, Cin, H, W), jnp.float32)
    params = init_params(kp, Cin, hid_channels, out_channels)
    layers = prepare_layers(params, H, W)

    fwd = jax.jit(lambda inp: pronet_forward(inp, layers))
    y = jax.block_until_ready(fwd(x))

    assert y.shape == (N, out_channels * (H // 16) * (W // 16))

    y_ref = reference_forward(x, params)
    tol = 5e-2 if COMPUTE_DTYPE == jnp.bfloat16 else 1e-4  # bf16 MXU operands
    np.testing.assert_allclose(np.asarray(y), np.asarray(y_ref),
                               rtol=tol, atol=tol)
    print("KERNEL_OK")
</pallas_src>

<mosaic_0001>
module attributes {stable_mosaic.version = 11 : i64} {
  func.func @_conv_block_kernel(%arg0: i32, %arg1: memref<1x18x54xbf16, #tpu.memory_space<vmem>>, %arg2: memref<54x1536xbf16, #tpu.memory_space<vmem>>, %arg3: memref<1x512xf32, #tpu.memory_space<vmem>>, %arg4: memref<1x512xf32, #tpu.memory_space<vmem>>, %arg5: memref<1x8x256xbf16, #tpu.memory_space<vmem>>) attributes {dimension_semantics = [#tpu.dimension_semantics<parallel>], iteration_bounds = array<i64: 2>, scalar_prefetch = 0 : i64, scratch_operands = 0 : i64, tpu.core_type = #tpu.core_type<tc>, window_params = [{transform_indices = @transform_0, window_bounds = array<i64: 1, 18, 54>}, {pipeline_mode = #tpu.pipeline_mode<synchronous>, transform_indices = @transform_1, window_bounds = array<i64: 54, 1536>}, {pipeline_mode = #tpu.pipeline_mode<synchronous>, transform_indices = @transform_2, window_bounds = array<i64: 1, 512>}, {pipeline_mode = #tpu.pipeline_mode<synchronous>, transform_indices = @transform_3, window_bounds = array<i64: 1, 512>}, {transform_indices = @transform_4, window_bounds = array<i64: 1, 8, 256>}]} {
    %c0 = arith.constant 0 : index
    %c0_0 = arith.constant 0 : index
    %c0_1 = arith.constant 0 : index
    %0 = vector.load %arg1[%c0, %c0_0, %c0_1] : memref<1x18x54xbf16, #tpu.memory_space<vmem>>, vector<1x18x54xbf16>
    %1 = vector.shape_cast %0 : vector<1x18x54xbf16> to vector<18x54xbf16>
    %c0_2 = arith.constant 0 : index
    %c0_3 = arith.constant 0 : index
    %2 = vector.load %arg2[%c0_2, %c0_3] : memref<54x1536xbf16, #tpu.memory_space<vmem>>, vector<54x1536xbf16>
    %cst = arith.constant dense<0.000000e+00> : vector<18x1536xf32>
    %3 = tpu.matmul %1, %2, %cst {dimension_numbers = #tpu.dot_dimension_numbers<[1], [0], [0], [1], [0, 0, 1, 1], [], []>} : vector<18x54xbf16>, vector<54x1536xbf16>, vector<18x1536xf32> -> vector<18x1536xf32>
    %4 = vector.extract_strided_slice %3 {offsets = [0, 0], sizes = [8, 512], strides = [1, 1]} : vector<18x1536xf32> to vector<8x512xf32>
    %5 = vector.extract_strided_slice %3 {offsets = [9, 512], sizes = [8, 512], strides = [1, 1]} : vector<18x1536xf32> to vector<8x512xf32>
    %6 = arith.addf %4, %5 : vector<8x512xf32>
    %7 = vector.extract_strided_slice %3 {offsets = [1, 1024], sizes = [8, 512], strides = [1, 1]} : vector<18x1536xf32> to vector<8x512xf32>
    %8 = arith.addf %6, %7 : vector<8x512xf32>
    %9 = vector.extract_strided_slice %3 {offsets = [9, 0], sizes = [8, 512], strides = [1, 1]} : vector<18x1536xf32> to vector<8x512xf32>
    %10 = vector.extract_strided_slice %3 {offsets = [1, 512], sizes = [8, 512], strides = [1, 1]} : vector<18x1536xf32> to vector<8x512xf32>
    %11 = arith.addf %9, %10 : vector<8x512xf32>
    %12 = vector.extract_strided_slice %3 {offsets = [10, 1024], sizes = [8, 512], strides = [1, 1]} : vector<18x1536xf32> to vector<8x512xf32>
    %13 = arith.addf %11, %12 : vector<8x512xf32>
    %c0_4 = arith.constant 0 : index
    %c0_5 = arith.constant 0 : index
    %14 = vector.load %arg3[%c0_4, %c0_5] : memref<1x512xf32, #tpu.memory_space<vmem>>, vector<1x512xf32>
    %c0_6 = arith.constant 0 : index
    %c0_7 = arith.constant 0 : index
    %15 = vector.load %arg4[%c0_6, %c0_7] : memref<1x512xf32, #tpu.memory_space<vmem>>, vector<1x512xf32>
    %16 = vector.broadcast %14 : vector<1x512xf32> to vector<8x512xf32>
    %17 = arith.mulf %8, %16 : vector<8x512xf32>
    %18 = vector.broadcast %15 : vector<1x512xf32> to vector<8x512xf32>
    %19 = arith.addf %17, %18 : vector<8x512xf32>
    %cst_8 = arith.constant 0.000000e+00 : f32
    %20 = vector.broadcast %cst_8 : f32 to vector<8x512xf32>
    %21 = arith.maximumf %19, %20 : vector<8x512xf32>
    %22 = vector.broadcast %14 : vector<1x512xf32> to vector<8x512xf32>
    %23 = arith.mulf %13, %22 : vector<8x512xf32>
    %24 = vector.broadcast %15 : vector<1x512xf32> to vector<8x512xf32>
    %25 = arith.addf %23, %24 : vector<8x512xf32>
    %cst_9 = arith.constant 0.000000e+00 : f32
    %26 = vector.broadcast %cst_9 : f32 to vector<8x512xf32>
    %27 = arith.maximumf %25, %26 : vector<8x512xf32>
    %28 = arith.maximumf %21, %27 : vector<8x512xf32>
    %29 = vector.extract_strided_slice %28 {offsets = [0, 0], sizes = [8, 256], strides = [1, 1]} : vector<8x512xf32> to vector<8x256xf32>
    %30 = vector.extract_strided_slice %28 {offsets = [0, 256], sizes = [8, 256], strides = [1, 1]} : vector<8x512xf32> to vector<8x256xf32>
    %31 = arith.maximumf %29, %30 : vector<8x256xf32>
    %32 = arith.truncf %31 : vector<8x256xf32> to vector<8x256xbf16>
    %c0_10 = arith.constant 0 : index
    %c0_11 = arith.constant 0 : index
    %c0_12 = arith.constant 0 : index
    %33 = vector.load %arg5[%c0_10, %c0_11, %c0_12] : memref<1x8x256xbf16, #tpu.memory_space<vmem>>, vector<1x8x256xbf16>
    %34 = vector.shape_cast %33 : vector<1x8x256xbf16> to vector<8x256xbf16>
    %35 = vector.shape_cast %32 : vector<8x256xbf16> to vector<1x8x256xbf16>
    tpu.vector_store %arg5[%c0_10, %c0_11, %c0_12], %35 {strides = array<i32>} : memref<1x8x256xbf16, #tpu.memory_space<vmem>>, vector<1x8x256xbf16>,
    return
  }
  func.func @transform_0(%arg0: i32) -> (i32, i32, i32) {
    %c0_i32 = arith.constant 0 : i32
    %c0_i32_0 = arith.constant 0 : i32
    %c0_i32_1 = arith.constant 0 : i32
    return %arg0, %c0_i32, %c0_i32_0 : i32, i32, i32
  }
  func.func @transform_1(%arg0: i32) -> (i32, i32) {
    %c0_i32 = arith.constant 0 : i32
    %c0_i32_0 = arith.constant 0 : i32
    %c0_i32_1 = arith.constant 0 : i32
    return %c0_i32, %c0_i32_0 : i32, i32
  }
  func.func @transform_2(%arg0: i32) -> (i32, i32) {
    %c0_i32 = arith.constant 0 : i32
    %c0_i32_0 = arith.constant 0 : i32
    %c0_i32_1 = arith.constant 0 : i32
    return %c0_i32, %c0_i32_0 : i32, i32
  }
  func.func @transform_3(%arg0: i32) -> (i32, i32) {
    %c0_i32 = arith.constant 0 : i32
    %c0_i32_0 = arith.constant 0 : i32
    %c0_i32_1 = arith.constant 0 : i32
    return %c0_i32, %c0_i32_0 : i32, i32
  }
  func.func @transform_4(%arg0: i32) -> (i32, i32, i32) {
    %c0_i32 = arith.constant 0 : i32
    %c0_i32_0 = arith.constant 0 : i32
    %c0_i32_1 = arith.constant 0 : i32
    return %arg0, %c0_i32, %c0_i32_0 : i32, i32, i32
  }
}

module attributes {stable_mosaic.version = 11 : i64} {
  func.func @_conv_block_kernel(%arg0: i32, %arg1: memref<1x10x320xbf16, #tpu.memory_space<vmem>>, %arg2: memref<320x768xbf16, #tpu.memory_space<vmem>>, %arg3: memref<1x256xf32, #tpu.memory_space<vmem>>, %arg4: memref<1x256xf32, #tpu.memory_space<vmem>>, %arg5: memref<1x4x128xbf16, #tpu.memory_space<vmem>>) attributes {dimension_semantics = [#tpu.dimension_semantics<parallel>], iteration_bounds = array<i64: 2>, scalar_prefetch = 0 : i64, scratch_operands = 0 : i64, tpu.core_type = #tpu.core_type<tc>, window_params = [{transform_indices = @transform_0, window_bounds = array<i64: 1, 10, 320>}, {pipeline_mode = #tpu.pipeline_mode<synchronous>, transform_indices = @transform_1, window_bounds = array<i64: 320, 768>}, {pipeline_mode = #tpu.pipeline_mode<synchronous>, transform_indices = @transform_2, window_bounds = array<i64: 1, 256>}, {pipeline_mode = #tpu.pipeline_mode<synchronous>, transform_indices = @transform_3, window_bounds = array<i64: 1, 256>}, {transform_indices = @transform_4, window_bounds = array<i64: 1, 4, 128>}]} {
    %c0 = arith.constant 0 : index
    %c0_0 = arith.constant 0 : index
    %c0_1 = arith.constant 0 : index
    %0 = vector.load %arg1[%c0, %c0_0, %c0_1] : memref<1x10x320xbf16, #tpu.memory_space<vmem>>, vector<1x10x320xbf16>
    %1 = vector.shape_cast %0 : vector<1x10x320xbf16> to vector<10x320xbf16>
    %c0_2 = arith.constant 0 : index
    %c0_3 = arith.constant 0 : index
    %2 = vector.load %arg2[%c0_2, %c0_3] : memref<320x768xbf16, #tpu.memory_space<vmem>>, vector<320x768xbf16>
    %cst = arith.constant dense<0.000000e+00> : vector<10x768xf32>
    %3 = tpu.matmul %1, %2, %cst {dimension_numbers = #tpu.dot_dimension_numbers<[1], [0], [0], [1], [0, 0, 1, 1], [], []>} : vector<10x320xbf16>, vector<320x768xbf16>, vector<10x768xf32> -> vector<10x768xf32>
    %4 = vector.extract_strided_slice %3 {offsets = [0, 0], sizes = [4, 256], strides = [1, 1]} : vector<10x768xf32> to vector<4x256xf32>
    %5 = vector.extract_strided_slice %3 {offsets = [5, 256], sizes = [4, 256], strides = [1, 1]} : vector<10x768xf32> to vector<4x256xf32>
    %6 = arith.addf %4, %5 : vector<4x256xf32>
    %7 = vector.extract_strided_slice %3 {offsets = [1, 512], sizes = [4, 256], strides = [1, 1]} : vector<10x768xf32> to vector<4x256xf32>
    %8 = arith.addf %6, %7 : vector<4x256xf32>
    %9 = vector.extract_strided_slice %3 {offsets = [5, 0], sizes = [4, 256], strides = [1, 1]} : vector<10x768xf32> to vector<4x256xf32>
    %10 = vector.extract_strided_slice %3 {offsets = [1, 256], sizes = [4, 256], strides = [1, 1]} : vector<10x768xf32> to vector<4x256xf32>
    %11 = arith.addf %9, %10 : vector<4x256xf32>
    %12 = vector.extract_strided_slice %3 {offsets = [6, 512], sizes = [4, 256], strides = [1, 1]} : vector<10x768xf32> to vector<4x256xf32>
    %13 = arith.addf %11, %12 : vector<4x256xf32>
    %c0_4 = arith.constant 0 : index
    %c0_5 = arith.constant 0 : index
    %14 = vector.load %arg3[%c0_4, %c0_5] : memref<1x256xf32, #tpu.memory_space<vmem>>, vector<1x256xf32>
    %c0_6 = arith.constant 0 : index
    %c0_7 = arith.constant 0 : index
    %15 = vector.load %arg4[%c0_6, %c0_7] : memref<1x256xf32, #tpu.memory_space<vmem>>, vector<1x256xf32>
    %16 = vector.broadcast %14 : vector<1x256xf32> to vector<4x256xf32>
    %17 = arith.mulf %8, %16 : vector<4x256xf32>
    %18 = vector.broadcast %15 : vector<1x256xf32> to vector<4x256xf32>
    %19 = arith.addf %17, %18 : vector<4x256xf32>
    %cst_8 = arith.constant 0.000000e+00 : f32
    %20 = vector.broadcast %cst_8 : f32 to vector<4x256xf32>
    %21 = arith.maximumf %19, %20 : vector<4x256xf32>
    %22 = vector.broadcast %14 : vector<1x256xf32> to vector<4x256xf32>
    %23 = arith.mulf %13, %22 : vector<4x256xf32>
    %24 = vector.broadcast %15 : vector<1x256xf32> to vector<4x256xf32>
    %25 = arith.addf %23, %24 : vector<4x256xf32>
    %cst_9 = arith.constant 0.000000e+00 : f32
    %26 = vector.broadcast %cst_9 : f32 to vector<4x256xf32>
    %27 = arith.maximumf %25, %26 : vector<4x256xf32>
    %28 = arith.maximumf %21, %27 : vector<4x256xf32>
    %29 = vector.extract_strided_slice %28 {offsets = [0, 0], sizes = [4, 128], strides = [1, 1]} : vector<4x256xf32> to vector<4x128xf32>
    %30 = vector.extract_strided_slice %28 {offsets = [0, 128], sizes = [4, 128], strides = [1, 1]} : vector<4x256xf32> to vector<4x128xf32>
    %31 = arith.maximumf %29, %30 : vector<4x128xf32>
    %32 = arith.truncf %31 : vector<4x128xf32> to vector<4x128xbf16>
    %c0_10 = arith.constant 0 : index
    %c0_11 = arith.constant 0 : index
    %c0_12 = arith.constant 0 : index
    %33 = vector.load %arg5[%c0_10, %c0_11, %c0_12] : memref<1x4x128xbf16, #tpu.memory_space<vmem>>, vector<1x4x128xbf16>
    %34 = vector.shape_cast %33 : vector<1x4x128xbf16> to vector<4x128xbf16>
    %35 = vector.shape_cast %32 : vector<4x128xbf16> to vector<1x4x128xbf16>
    tpu.vector_store %arg5[%c0_10, %c0_11, %c0_12], %35 {strides = array<i32>} : memref<1x4x128xbf16, #tpu.memory_space<vmem>>, vector<1x4x128xbf16>,
    return
  }
  func.func @transform_0(%arg0: i32) -> (i32, i32, i32) {
    %c0_i32 = arith.constant 0 : i32
    %c0_i32_0 = arith.constant 0 : i32
    %c0_i32_1 = arith.constant 0 : i32
    return %arg0, %c0_i32, %c0_i32_0 : i32, i32, i32
  }
  func.func @transform_1(%arg0: i32) -> (i32, i32) {
    %c0_i32 = arith.constant 0 : i32
    %c0_i32_0 = arith.constant 0 : i32
    %c0_i32_1 = arith.constant 0 : i32
    return %c0_i32, %c0_i32_0 : i32, i32
  }
  func.func @transform_2(%arg0: i32) -> (i32, i32) {
    %c0_i32 = arith.constant 0 : i32
    %c0_i32_0 = arith.constant 0 : i32
    %c0_i32_1 = arith.constant 0 : i32
    return %c0_i32, %c0_i32_0 : i32, i32
  }
  func.func @transform_3(%arg0: i32) -> (i32, i32) {
    %c0_i32 = arith.constant 0 : i32
    %c0_i32_0 = arith.constant 0 : i32
    %c0_i32_1 = arith.constant 0 : i32
    return %c0_i32, %c0_i32_0 : i32, i32
  }
  func.func @transform_4(%arg0: i32) -> (i32, i32, i32) {
    %c0_i32 = arith.constant 0 : i32
    %c0_i32_0 = arith.constant 0 : i32
    %c0_i32_1 = arith.constant 0 : i32
    return %arg0, %c0_i32, %c0_i32_0 : i32, i32, i32
  }
}

module attributes {stable_mosaic.version = 11 : i64} {
  func.func @_conv_block_kernel(%arg0: i32, %arg1: memref<1x6x192xbf16, #tpu.memory_space<vmem>>, %arg2: memref<192x384xbf16, #tpu.memory_space<vmem>>, %arg3: memref<1x128xf32, #tpu.memory_space<vmem>>, %arg4: memref<1x128xf32, #tpu.memory_space<vmem>>, %arg5: memref<1x2x64xbf16, #tpu.memory_space<vmem>>) attributes {dimension_semantics = [#tpu.dimension_semantics<parallel>], iteration_bounds = array<i64: 2>, scalar_prefetch = 0 : i64, scratch_operands = 0 : i64, tpu.core_type = #tpu.core_type<tc>, window_params = [{transform_indices = @transform_0, window_bounds = array<i64: 1, 6, 192>}, {pipeline_mode = #tpu.pipeline_mode<synchronous>, transform_indices = @transform_1, window_bounds = array<i64: 192, 384>}, {pipeline_mode = #tpu.pipeline_mode<synchronous>, transform_indices = @transform_2, window_bounds = array<i64: 1, 128>}, {pipeline_mode = #tpu.pipeline_mode<synchronous>, transform_indices = @transform_3, window_bounds = array<i64: 1, 128>}, {transform_indices = @transform_4, window_bounds = array<i64: 1, 2, 64>}]} {
    %c0 = arith.constant 0 : index
    %c0_0 = arith.constant 0 : index
    %c0_1 = arith.constant 0 : index
    %0 = vector.load %arg1[%c0, %c0_0, %c0_1] : memref<1x6x192xbf16, #tpu.memory_space<vmem>>, vector<1x6x192xbf16>
    %1 = vector.shape_cast %0 : vector<1x6x192xbf16> to vector<6x192xbf16>
    %c0_2 = arith.constant 0 : index
    %c0_3 = arith.constant 0 : index
    %2 = vector.load %arg2[%c0_2, %c0_3] : memref<192x384xbf16, #tpu.memory_space<vmem>>, vector<192x384xbf16>
    %cst = arith.constant dense<0.000000e+00> : vector<6x384xf32>
    %3 = tpu.matmul %1, %2, %cst {dimension_numbers = #tpu.dot_dimension_numbers<[1], [0], [0], [1], [0, 0, 1, 1], [], []>} : vector<6x192xbf16>, vector<192x384xbf16>, vector<6x384xf32> -> vector<6x384xf32>
    %4 = vector.extract_strided_slice %3 {offsets = [0, 0], sizes = [2, 128], strides = [1, 1]} : vector<6x384xf32> to vector<2x128xf32>
    %5 = vector.extract_strided_slice %3 {offsets = [3, 128], sizes = [2, 128], strides = [1, 1]} : vector<6x384xf32> to vector<2x128xf32>
    %6 = arith.addf %4, %5 : vector<2x128xf32>
    %7 = vector.extract_strided_slice %3 {offsets = [1, 256], sizes = [2, 128], strides = [1, 1]} : vector<6x384xf32> to vector<2x128xf32>
    %8 = arith.addf %6, %7 : vector<2x128xf32>
    %9 = vector.extract_strided_slice %3 {offsets = [3, 0], sizes = [2, 128], strides = [1, 1]} : vector<6x384xf32> to vector<2x128xf32>
    %10 = vector.extract_strided_slice %3 {offsets = [1, 128], sizes = [2, 128], strides = [1, 1]} : vector<6x384xf32> to vector<2x128xf32>
    %11 = arith.addf %9, %10 : vector<2x128xf32>
    %12 = vector.extract_strided_slice %3 {offsets = [4, 256], sizes = [2, 128], strides = [1, 1]} : vector<6x384xf32> to vector<2x128xf32>
    %13 = arith.addf %11, %12 : vector<2x128xf32>
    %c0_4 = arith.constant 0 : index
    %c0_5 = arith.constant 0 : index
    %14 = vector.load %arg3[%c0_4, %c0_5] : memref<1x128xf32, #tpu.memory_space<vmem>>, vector<1x128xf32>
    %c0_6 = arith.constant 0 : index
    %c0_7 = arith.constant 0 : index
    %15 = vector.load %arg4[%c0_6, %c0_7] : memref<1x128xf32, #tpu.memory_space<vmem>>, vector<1x128xf32>
    %16 = vector.broadcast %14 : vector<1x128xf32> to vector<2x128xf32>
    %17 = arith.mulf %8, %16 : vector<2x128xf32>
    %18 = vector.broadcast %15 : vector<1x128xf32> to vector<2x128xf32>
    %19 = arith.addf %17, %18 : vector<2x128xf32>
    %cst_8 = arith.constant 0.000000e+00 : f32
    %20 = vector.broadcast %cst_8 : f32 to vector<2x128xf32>
    %21 = arith.maximumf %19, %20 : vector<2x128xf32>
    %22 = vector.broadcast %14 : vector<1x128xf32> to vector<2x128xf32>
    %23 = arith.mulf %13, %22 : vector<2x128xf32>
    %24 = vector.broadcast %15 : vector<1x128xf32> to vector<2x128xf32>
    %25 = arith.addf %23, %24 : vector<2x128xf32>
    %cst_9 = arith.constant 0.000000e+00 : f32
    %26 = vector.broadcast %cst_9 : f32 to vector<2x128xf32>
    %27 = arith.maximumf %25, %26 : vector<2x128xf32>
    %28 = arith.maximumf %21, %27 : vector<2x128xf32>
    %29 = vector.extract_strided_slice %28 {offsets = [0, 0], sizes = [2, 64], strides = [1, 1]} : vector<2x128xf32> to vector<2x64xf32>
    %30 = vector.extract_strided_slice %28 {offsets = [0, 64], sizes = [2, 64], strides = [1, 1]} : vector<2x128xf32> to vector<2x64xf32>
    %31 = arith.maximumf %29, %30 : vector<2x64xf32>
    %32 = arith.truncf %31 : vector<2x64xf32> to vector<2x64xbf16>
    %c0_10 = arith.constant 0 : index
    %c0_11 = arith.constant 0 : index
    %c0_12 = arith.constant 0 : index
    %33 = vector.load %arg5[%c0_10, %c0_11, %c0_12] : memref<1x2x64xbf16, #tpu.memory_space<vmem>>, vector<1x2x64xbf16>
    %34 = vector.shape_cast %33 : vector<1x2x64xbf16> to vector<2x64xbf16>
    %35 = vector.shape_cast %32 : vector<2x64xbf16> to vector<1x2x64xbf16>
    tpu.vector_store %arg5[%c0_10, %c0_11, %c0_12], %35 {strides = array<i32>} : memref<1x2x64xbf16, #tpu.memory_space<vmem>>, vector<1x2x64xbf16>,
    return
  }
  func.func @transform_0(%arg0: i32) -> (i32, i32, i32) {
    %c0_i32 = arith.constant 0 : i32
    %c0_i32_0 = arith.constant 0 : i32
    %c0_i32_1 = arith.constant 0 : i32
    return %arg0, %c0_i32, %c0_i32_0 : i32, i32, i32
  }
  func.func @transform_1(%arg0: i32) -> (i32, i32) {
    %c0_i32 = arith.constant 0 : i32
    %c0_i32_0 = arith.constant 0 : i32
    %c0_i32_1 = arith.constant 0 : i32
    return %c0_i32, %c0_i32_0 : i32, i32
  }
  func.func @transform_2(%arg0: i32) -> (i32, i32) {
    %c0_i32 = arith.constant 0 : i32
    %c0_i32_0 = arith.constant 0 : i32
    %c0_i32_1 = arith.constant 0 : i32
    return %c0_i32, %c0_i32_0 : i32, i32
  }
  func.func @transform_3(%arg0: i32) -> (i32, i32) {
    %c0_i32 = arith.constant 0 : i32
    %c0_i32_0 = arith.constant 0 : i32
    %c0_i32_1 = arith.constant 0 : i32
    return %c0_i32, %c0_i32_0 : i32, i32
  }
  func.func @transform_4(%arg0: i32) -> (i32, i32, i32) {
    %c0_i32 = arith.constant 0 : i32
    %c0_i32_0 = arith.constant 0 : i32
    %c0_i32_1 = arith.constant 0 : i32
    return %arg0, %c0_i32, %c0_i32_0 : i32, i32, i32
  }
}

module attributes {stable_mosaic.version = 11 : i64} {
  func.func @_conv_block_kernel(%arg0: i32, %arg1: memref<1x4x128xbf16, #tpu.memory_space<vmem>>, %arg2: memref<128x192xbf16, #tpu.memory_space<vmem>>, %arg3: memref<1x64xf32, #tpu.memory_space<vmem>>, %arg4: memref<1x64xf32, #tpu.memory_space<vmem>>, %arg5: memref<1x1x32xf32, #tpu.memory_space<vmem>>) attributes {dimension_semantics = [#tpu.dimension_semantics<parallel>], iteration_bounds = array<i64: 2>, scalar_prefetch = 0 : i64, scratch_operands = 0 : i64, tpu.core_type = #tpu.core_type<tc>, window_params = [{transform_indices = @transform_0, window_bounds = array<i64: 1, 4, 128>}, {pipeline_mode = #tpu.pipeline_mode<synchronous>, transform_indices = @transform_1, window_bounds = array<i64: 128, 192>}, {pipeline_mode = #tpu.pipeline_mode<synchronous>, transform_indices = @transform_2, window_bounds = array<i64: 1, 64>}, {pipeline_mode = #tpu.pipeline_mode<synchronous>, transform_indices = @transform_3, window_bounds = array<i64: 1, 64>}, {transform_indices = @transform_4, window_bounds = array<i64: 1, 1, 32>}]} {
    %c0 = arith.constant 0 : index
    %c0_0 = arith.constant 0 : index
    %c0_1 = arith.constant 0 : index
    %0 = vector.load %arg1[%c0, %c0_0, %c0_1] : memref<1x4x128xbf16, #tpu.memory_space<vmem>>, vector<1x4x128xbf16>
    %1 = vector.shape_cast %0 : vector<1x4x128xbf16> to vector<4x128xbf16>
    %c0_2 = arith.constant 0 : index
    %c0_3 = arith.constant 0 : index
    %2 = vector.load %arg2[%c0_2, %c0_3] : memref<128x192xbf16, #tpu.memory_space<vmem>>, vector<128x192xbf16>
    %cst = arith.constant dense<0.000000e+00> : vector<4x192xf32>
    %3 = tpu.matmul %1, %2, %cst {dimension_numbers = #tpu.dot_dimension_numbers<[1], [0], [0], [1], [0, 0, 1, 1], [], []>} : vector<4x128xbf16>, vector<128x192xbf16>, vector<4x192xf32> -> vector<4x192xf32>
    %4 = vector.extract_strided_slice %3 {offsets = [0, 0], sizes = [1, 64], strides = [1, 1]} : vector<4x192xf32> to vector<1x64xf32>
    %5 = vector.extract_strided_slice %3 {offsets = [2, 64], sizes = [1, 64], strides = [1, 1]} : vector<4x192xf32> to vector<1x64xf32>
    %6 = arith.addf %4, %5 : vector<1x64xf32>
    %7 = vector.extract_strided_slice %3 {offsets = [1, 128], sizes = [1, 64], strides = [1, 1]} : vector<4x192xf32> to vector<1x64xf32>
    %8 = arith.addf %6, %7 : vector<1x64xf32>
    %9 = vector.extract_strided_slice %3 {offsets = [2, 0], sizes = [1, 64], strides = [1, 1]} : vector<4x192xf32> to vector<1x64xf32>
    %10 = vector.extract_strided_slice %3 {offsets = [1, 64], sizes = [1, 64], strides = [1, 1]} : vector<4x192xf32> to vector<1x64xf32>
    %11 = arith.addf %9, %10 : vector<1x64xf32>
    %12 = vector.extract_strided_slice %3 {offsets = [3, 128], sizes = [1, 64], strides = [1, 1]} : vector<4x192xf32> to vector<1x64xf32>
    %13 = arith.addf %11, %12 : vector<1x64xf32>
    %c0_4 = arith.constant 0 : index
    %c0_5 = arith.constant 0 : index
    %14 = vector.load %arg3[%c0_4, %c0_5] : memref<1x64xf32, #tpu.memory_space<vmem>>, vector<1x64xf32>
    %c0_6 = arith.constant 0 : index
    %c0_7 = arith.constant 0 : index
    %15 = vector.load %arg4[%c0_6, %c0_7] : memref<1x64xf32, #tpu.memory_space<vmem>>, vector<1x64xf32>
    %16 = arith.mulf %8, %14 : vector<1x64xf32>
    %17 = arith.addf %16, %15 : vector<1x64xf32>
    %cst_8 = arith.constant 0.000000e+00 : f32
    %18 = vector.broadcast %cst_8 : f32 to vector<1x64xf32>
    %19 = arith.maximumf %17, %18 : vector<1x64xf32>
    %20 = arith.mulf %13, %14 : vector<1x64xf32>
    %21 = arith.addf %20, %15 : vector<1x64xf32>
    %cst_9 = arith.constant 0.000000e+00 : f32
    %22 = vector.broadcast %cst_9 : f32 to vector<1x64xf32>
    %23 = arith.maximumf %21, %22 : vector<1x64xf32>
    %24 = arith.maximumf %19, %23 : vector<1x64xf32>
    %25 = vector.extract_strided_slice %24 {offsets = [0, 0], sizes = [1, 32], strides = [1, 1]} : vector<1x64xf32> to vector<1x32xf32>
    %26 = vector.extract_strided_slice %24 {offsets = [0, 32], sizes = [1, 32], strides = [1, 1]} : vector<1x64xf32> to vector<1x32xf32>
    %27 = arith.maximumf %25, %26 : vector<1x32xf32>
    %c0_10 = arith.constant 0 : index
    %c0_11 = arith.constant 0 : index
    %c0_12 = arith.constant 0 : index
    %28 = vector.load %arg5[%c0_10, %c0_11, %c0_12] : memref<1x1x32xf32, #tpu.memory_space<vmem>>, vector<1x1x32xf32>
    %29 = vector.shape_cast %28 : vector<1x1x32xf32> to vector<1x32xf32>
    %30 = vector.shape_cast %27 : vector<1x32xf32> to vector<1x1x32xf32>
    tpu.vector_store %arg5[%c0_10, %c0_11, %c0_12], %30 {strides = array<i32>} : memref<1x1x32xf32, #tpu.memory_space<vmem>>, vector<1x1x32xf32>,
    return
  }
  func.func @transform_0(%arg0: i32) -> (i32, i32, i32) {
    %c0_i32 = arith.constant 0 : i32
    %c0_i32_0 = arith.constant 0 : i32
    %c0_i32_1 = arith.constant 0 : i32
    return %arg0, %c0_i32, %c0_i32_0 : i32, i32, i32
  }
  func.func @transform_1(%arg0: i32) -> (i32, i32) {
    %c0_i32 = arith.constant 0 : i32
    %c0_i32_0 = arith.constant 0 : i32
    %c0_i32_1 = arith.constant 0 : i32
    return %c0_i32, %c0_i32_0 : i32, i32
  }
  func.func @transform_2(%arg0: i32) -> (i32, i32) {
    %c0_i32 = arith.constant 0 : i32
    %c0_i32_0 = arith.constant 0 : i32
    %c0_i32_1 = arith.constant 0 : i32
    return %c0_i32, %c0_i32_0 : i32, i32
  }
  func.func @transform_3(%arg0: i32) -> (i32, i32) {
    %c0_i32 = arith.constant 0 : i32
    %c0_i32_0 = arith.constant 0 : i32
    %c0_i32_1 = arith.constant 0 : i32
    return %c0_i32, %c0_i32_0 : i32, i32
  }
  func.func @transform_4(%arg0: i32) -> (i32, i32, i32) {
    %c0_i32 = arith.constant 0 : i32
    %c0_i32_0 = arith.constant 0 : i32
    %c0_i32_1 = arith.constant 0 : i32
    return %arg0, %c0_i32, %c0_i32_0 : i32, i32, i32
  }
}

</mosaic_0001>

<llo_original>
// kernel: _lambda_.4
$region0: #{_lambda_.4}
  #allocation0 [shape = 'u32[]', space=smem, size = 0x4, offset = 0x4, fixed_abs, tag = 'smem constant byte address 0x4 - core index']
  #allocation1 [shape = 'u32[144,128]{1,0:T(1,128)}', space=vmem, size = 0x12000, scoped, tag = 'internal scratch']
  %s0 = inlined_call_operand.vmem [shape: bf16[2,18,54], index: 0, kind: input, shape index: {}]
  %s1 = inlined_call_operand.vmem [shape: bf16[54,1536], index: 1, kind: input, shape index: {}]
  %s2 = inlined_call_operand.vmem [shape: f32[1,512], index: 2, kind: input, shape index: {}]
  %s3 = inlined_call_operand.vmem [shape: f32[1,512], index: 3, kind: input, shape index: {}]
  %s4 = inlined_call_operand.vmem [shape: bf16[2,8,256], index: 4, kind: output, shape index: {}]
  %s5 = sld [smem:[#allocation0]]
  $region49: #{_lambda_.4} parent=0
    _
  %s7 = ssub.s32 1, %s5
  %s8 = scalar_select 0, %s7, %s5
  loop: start=0, step=1, limit=4
  $region2: #{_lambda_.4} parent=0 // loop_pre_header
    _
  $region3: #{_lambda_.4} parent=0 // loop_header
    %s10 = sphi 0, %s14
    %p11 = scmp.ge.s32.totalorder %s10, 4
    %s20 = sphi 0, %s22
    %s23 = sphi 0, %s20
    %s24 = sphi 0, %s23
    %s40 = sphi 0, %s24
    %s44 = sphi 0, %s44
    %s46 = sphi 0, %s44
    %s47 = sphi 0, %s46
    %s61 = sphi 0, %s47
    %s65 = sphi 0, %s65
    %s67 = sphi 0, %s65
    %s68 = sphi 0, %s67
    %s82 = sphi 0, %s68
    %s86 = sphi 0, %s86
    %s88 = sphi 0, %s86
    %s89 = sphi 0, %s88
    %s103 = sphi 0, %s89
    %s109 = sphi 0, %s111
    %s112 = sphi 0, %s109
    %s113 = sphi 0, %s112
    %s129 = sphi 0, %s113
  $region4: #{_lambda_.4} parent=0 // loop_header_branch
    %13 = sbr.rel (%p11) target = $region8
  $region5: #{_lambda_.4} parent=0 // loop_body
    %s15 = ssub.s32 %s10, 1
    %s16 = ssub.s32 %s10, 2
    %s17 = sadd.s32 %s10, 1
    %s18 = ssub.s32 %s10, %s17
    %p19 = scmp.eq.s32.totalorder %s18, 0
    %s21 = sadd.s32 %s20, 1
    %s22 = scalar_select %p19, %s20, %s21
    %p25 = pneg %p19
    %p26 = scmp.eq.s32.totalorder %s10, 1
    %p27 = por %p25, %p26
    %p28 = scmp.ne.s32.totalorder %s20, %s23
    %p29 = scmp.eq.s32.totalorder %s10, 0
    %p30 = por %p28, %p29
    %p31 = scmp.ne.s32.totalorder %s20, %s23
    %p32 = scmp.eq.s32.totalorder %s15, 1
    %p33 = por %p31, %p32
    %p34 = scmp.ne.s32.totalorder %s23, %s24
    %p35 = scmp.eq.s32.totalorder %s15, 0
    %p36 = por %p34, %p35
    %p37 = scmp.ne.s32.totalorder %s23, %s24
    %p38 = scmp.eq.s32.totalorder %s16, 1
    %p39 = por %p37, %p38
    %p41 = scmp.ne.s32.totalorder %s24, %s40
    %p42 = scmp.eq.s32.totalorder %s16, 0
    %p43 = por %p41, %p42
    %s45 = sadd.s32 %s44, 1
    %p48 = scmp.eq.s32.totalorder %s10, 1
    %p49 = scmp.ne.s32.totalorder %s44, %s46
    %p50 = scmp.eq.s32.totalorder %s10, 0
    %p51 = por %p49, %p50
    %p52 = scmp.ne.s32.totalorder %s44, %s46
    %p53 = scmp.eq.s32.totalorder %s15, 1
    %p54 = por %p52, %p53
    %p55 = scmp.ne.s32.totalorder %s46, %s47
    %p56 = scmp.eq.s32.totalorder %s15, 0
    %p57 = por %p55, %p56
    %p58 = scmp.ne.s32.totalorder %s46, %s47
    %p59 = scmp.eq.s32.totalorder %s16, 1
    %p60 = por %p58, %p59
    %p62 = scmp.ne.s32.totalorder %s47, %s61
    %p63 = scmp.eq.s32.totalorder %s16, 0
    %p64 = por %p62, %p63
    %s66 = sadd.s32 %s65, 1
    %p69 = scmp.eq.s32.totalorder %s10, 1
    %p70 = scmp.ne.s32.totalorder %s65, %s67
    %p71 = scmp.eq.s32.totalorder %s10, 0
    %p72 = por %p70, %p71
    %p73 = scmp.ne.s32.totalorder %s65, %s67
    %p74 = scmp.eq.s32.totalorder %s15, 1
    %p75 = por %p73, %p74
    %p76 = scmp.ne.s32.totalorder %s67, %s68
    %p77 = scmp.eq.s32.totalorder %s15, 0
    %p78 = por %p76, %p77
    %p79 = scmp.ne.s32.totalorder %s67, %s68
    %p80 = scmp.eq.s32.totalorder %s16, 1
    %p81 = por %p79, %p80
    %p83 = scmp.ne.s32.totalorder %s68, %s82
    %p84 = scmp.eq.s32.totalorder %s16, 0
    %p85 = por %p83, %p84
    %s87 = sadd.s32 %s86, 1
    %p90 = scmp.eq.s32.totalorder %s10, 1
    %p91 = scmp.ne.s32.totalorder %s86, %s88
    %p92 = scmp.eq.s32.totalorder %s10, 0
    %p93 = por %p91, %p92
    %p94 = scmp.ne.s32.totalorder %s86, %s88
    %p95 = scmp.eq.s32.totalorder %s15, 1
    %p96 = por %p94, %p95
    %p97 = scmp.ne.s32.totalorder %s88, %s89
    %p98 = scmp.eq.s32.totalorder %s15, 0
    %p99 = por %p97, %p98
    %p100 = scmp.ne.s32.totalorder %s88, %s89
    %p101 = scmp.eq.s32.totalorder %s16, 1
    %p102 = por %p100, %p101
    %p104 = scmp.ne.s32.totalorder %s89, %s103
    %p105 = scmp.eq.s32.totalorder %s16, 0
    %p106 = por %p104, %p105
    %s107 = ssub.s32 %s10, %s17
    %p108 = scmp.eq.s32.totalorder %s107, 0
    %s110 = sadd.s32 %s109, 1
    %s111 = scalar_select %p108, %s109, %s110
    %p114 = pneg %p108
    %p115 = scmp.eq.s32.totalorder %s10, 1
    %p116 = por %p114, %p115
    %p117 = scmp.ne.s32.totalorder %s109, %s112
    %p118 = scmp.eq.s32.totalorder %s10, 0
    %p119 = por %p117, %p118
    %p120 = scmp.ne.s32.totalorder %s109, %s112
    %p121 = scmp.eq.s32.totalorder %s15, 1
    %p122 = por %p120, %p121
    %p123 = scmp.ne.s32.totalorder %s112, %s113
    %p124 = scmp.eq.s32.totalorder %s15, 0
    %p125 = por %p123, %p124
    %p126 = scmp.ne.s32.totalorder %s112, %s113
    %p127 = scmp.eq.s32.totalorder %s16, 1
    %p128 = por %p126, %p127
    %p130 = scmp.ne.s32.totalorder %s113, %s129
    %p131 = scmp.eq.s32.totalorder %s16, 0
    %p132 = por %p130, %p131
    %p133 = scmp.le.s32.totalorder 1, %s10
    %p134 = scmp.lt.s32.totalorder %s10, 3
    %p135 = pnand %p133, %p134
    %p136 = pneg %p135
    // Predicated region
    $region9: #{_lambda_.4} parent=5 // pred_check
      _
    $region10: #{_lambda_.4} parent=5 // pred_check_branch
      %138 = sbr.rel (%p135) target = $region12
    $region11: #{_lambda_.4} parent=5 // pred_region
      %s139 = ssub.s32 %s10, 1
      // Predicated region
      $region13: #{_lambda_.4} parent=11 // pred_check
        %p140 = pneg %p57
      $region14: #{_lambda_.4} parent=11 // pred_check_branch
        %142 = sbr.rel (%p140) target = $region16
      $region15: #{_lambda_.4} parent=11 // pred_region
        _
      $region16: #{_lambda_.4} parent=11 // pred_fallthru
        _
      // Predicated region
      $region17: #{_lambda_.4} parent=11 // pred_check
        %p143 = pneg %p78
      $region18: #{_lambda_.4} parent=11 // pred_check_branch
        %145 = sbr.rel (%p143) target = $region20
      $region19: #{_lambda_.4} parent=11 // pred_region
        _
      $region20: #{_lambda_.4} parent=11 // pred_fallthru
        _
      // Predicated region
      $region21: #{_lambda_.4} parent=11 // pred_check
        %p146 = pneg %p99
      $region22: #{_lambda_.4} parent=11 // pred_check_branch
        %148 = sbr.rel (%p146) target = $region24
      $region23: #{_lambda_.4} parent=11 // pred_region
        _
      $region24: #{_lambda_.4} parent=11 // pred_fallthru
        _
    $region12: #{_lambda_.4} parent=5 // pred_fallthru
      _
    %p149 = scmp.lt.s32.totalorder %s10, 2
    // Predicated region
    $region25: #{_lambda_.4} parent=5 // pred_check
      %p150 = pneg %p149
    $region26: #{_lambda_.4} parent=5 // pred_check_branch
      %152 = sbr.rel (%p150) target = $region28
    $region27: #{_lambda_.4} parent=5 // pred_region
      // Predicated region
      $region29: #{_lambda_.4} parent=27 // pred_check
        %p153 = pneg %p30
      $region30: #{_lambda_.4} parent=27 // pred_check_branch
        %155 = sbr.rel (%p153) target = $region32
      $region31: #{_lambda_.4} parent=27 // pred_region
        %p156 = scmp.lt.s32.totalorder %s10, 1
        %s157 = scalar_select %p156, %s10, 1
        %s158 = smul.addr %s157, 3
        %s159 = smul.addr %s158, 4
        %s160 = scalar_lea.vmem %s0, %s159
      $region32: #{_lambda_.4} parent=27 // pred_fallthru
        _
    $region28: #{_lambda_.4} parent=5 // pred_fallthru
      _
    %p161 = scmp.le.s32.totalorder 1, %s10
    %p162 = scmp.lt.s32.totalorder %s10, 3
    %p163 = pnand %p161, %p162
    %p164 = pneg %p163
    // Predicated region
    $region33: #{_lambda_.4} parent=5 // pred_check
      _
    $region34: #{_lambda_.4} parent=5 // pred_check_branch
      %166 = sbr.rel (%p163) target = $region36
    $region35: #{_lambda_.4} parent=5 // pred_region
      %s167 = ssub.s32 %s10, 1
      %p168 = scmp.lt.s32.totalorder %s15, 1
      %s169 = scalar_select %p168, %s15, 1
      %s170 = smul.addr %s169, 3
      %s171 = smul.addr %s170, 4
      %s172 = scalar_lea.vmem %s0, %s171
      %p173 = pneg %p36
      %p174 = pneg %p33
      %p175 = pneg %p57
      %p176 = pneg %p54
      %p177 = pneg %p78
      %p178 = pneg %p75
      %p179 = pneg %p99
      %p180 = pneg %p96
      %p181 = pneg %p125
      %p182 = pneg %p122
      %p183 = scmp.lt.s32.totalorder %s15, 1
      %s184 = scalar_select %p183, %s15, 1
      %s185 = smul.addr %s184, 2
      %s186 = smul.addr %s185, 4
      %s187 = scalar_lea.vmem %s4, %s186
      %p188 = scmp.lt.s32.totalorder %s15, 1
      %s189 = scalar_select %p188, %s15, 1
      %s190 = smul.addr %s189, 3
      %s191 = smul.addr %s190, 4
      %s192 = scalar_lea.vmem %s0, %s191
      %p193 = scmp.lt.s32.totalorder %s15, 1
      %s194 = scalar_select %p193, %s15, 1
      %s195 = smul.addr %s194, 2
      %s196 = smul.addr %s195, 4
      %s197 = scalar_lea.vmem %s4, %s196
      %v199 = vld [vmem:[%s192] sm:$0xf]
      %v200 = vld [vmem:[%s192 + $0x4] sm:$0xf]
      %v201 = vld [vmem:[%s192 + $0x8] sm:$0x1]
      %v202 = vld [vmem:[%s1] sm:$0xff]
      %v203 = vld [vmem:[%s1 + $0x8] sm:$0xff]
      %v204 = vld [vmem:[%s1 + $0x10] sm:$0xff]
      %v205 = vld [vmem:[%s1 + $0x18] sm:$0xff]
      %v206 = vld [vmem:[%s1 + $0x20] sm:$0xff]
      %v207 = vld [vmem:[%s1 + $0x28] sm:$0xff]
      %v208 = vld [vmem:[%s1 + $0x30] sm:$0xff]
      %v209 = vld [vmem:[%s1 + $0x38] sm:$0xff]
      %v210 = vld [vmem:[%s1 + $0x40] sm:$0xff]
      %v211 = vld [vmem:[%s1 + $0x48] sm:$0xff]
      %v212 = vld [vmem:[%s1 + $0x50] sm:$0xff]
      %v213 = vld [vmem:[%s1 + $0x58] sm:$0xff]
      %v214 = vld [vmem:[%s1 + $0x60] sm:$0xff]
      %v215 = vld [vmem:[%s1 + $0x68] sm:$0xff]
      %v216 = vld [vmem:[%s1 + $0x70] sm:$0xff]
      %v217 = vld [vmem:[%s1 + $0x78] sm:$0xff]
      %v218 = vld [vmem:[%s1 + $0x80] sm:$0xff]
      %v219 = vld [vmem:[%s1 + $0x88] sm:$0xff]
      %v220 = vld [vmem:[%s1 + $0x90] sm:$0xff]
      %v221 = vld [vmem:[%s1 + $0x98] sm:$0xff]
      %v222 = vld [vmem:[%s1 + $0xa0] sm:$0xff]
      %v223 = vld [vmem:[%s1 + $0xa8] sm:$0xff]
      %v224 = vld [vmem:[%s1 + $0xb0] sm:$0xff]
      %v225 = vld [vmem:[%s1 + $0xb8] sm:$0xff]
      %v226 = vld [vmem:[%s1 + $0xc0] sm:$0xff]
      %v227 = vld [vmem:[%s1 + $0xc8] sm:$0xff]
      %v228 = vld [vmem:[%s1 + $0xd0] sm:$0xff]
      %v229 = vld [vmem:[%s1 + $0xd8] sm:$0xff]
      %v230 = vld [vmem:[%s1 + $0xe0] sm:$0xff]
      %v231 = vld [vmem:[%s1 + $0xe8] sm:$0xff]
      %v232 = vld [vmem:[%s1 + $0xf0] sm:$0xff]
      %v233 = vld [vmem:[%s1 + $0xf8] sm:$0xff]
      %v234 = vld [vmem:[%s1 + $0x100] sm:$0xff]
      %v235 = vld [vmem:[%s1 + $0x108] sm:$0xff]
      %v236 = vld [vmem:[%s1 + $0x110] sm:$0xff]
      %v237 = vld [vmem:[%s1 + $0x118] sm:$0xff]
      %v238 = vld [vmem:[%s1 + $0x120] sm:$0x77]
      %v239 = vld [vmem:[%s1 + $0x128] sm:$0x77]
      %v240 = vld [vmem:[%s1 + $0x130] sm:$0x77]
      %v241 = vld [vmem:[%s1 + $0x138] sm:$0x77]
      %v242 = vld [vmem:[%s1 + $0x140] sm:$0x77]
      %v243 = vld [vmem:[%s1 + $0x148] sm:$0x77]
      %v247 = vunpack.c.l.b16 %v199
      %v248 = vunpack.c.l.b16 %v200
      %v249 = vunpack.c.l.b16 %v201
      %v250 = vpack.c.b16 %v248, %v247
      %v251 = vpack.c.b16 %v249, %v249
      %v294 = vunpack.c.l.b16 %v202
      %v295 = vunpack.c.h.b16 %v202
      %v296 = vunpack.c.l.b16 %v203
      %v297 = vunpack.c.h.b16 %v203
      %v298 = vunpack.c.l.b16 %v204
      %v299 = vunpack.c.h.b16 %v204
      %v300 = vunpack.c.l.b16 %v205
      %v301 = vunpack.c.h.b16 %v205
      %v302 = vunpack.c.l.b16 %v206
      %v303 = vunpack.c.h.b16 %v206
      %v304 = vunpack.c.l.b16 %v207
      %v305 = vunpack.c.h.b16 %v207
      %v306 = vunpack.c.l.b16 %v208
      %v307 = vunpack.c.h.b16 %v208
      %v308 = vunpack.c.l.b16 %v209
      %v309 = vunpack.c.h.b16 %v209
      %v310 = vunpack.c.l.b16 %v210
      %v311 = vunpack.c.h.b16 %v210
      %v312 = vunpack.c.l.b16 %v211
      %v313 = vunpack.c.h.b16 %v211
      %v314 = vunpack.c.l.b16 %v212
      %v315 = vunpack.c.h.b16 %v212
      %v316 = vunpack.c.l.b16 %v213
      %v317 = vunpack.c.h.b16 %v213
      %v318 = vunpack.c.l.b16 %v214
      %v319 = vunpack.c.h.b16 %v214
      %v320 = vunpack.c.l.b16 %v215
      %v321 = vunpack.c.h.b16 %v215
      %v322 = vunpack.c.l.b16 %v216
      %v323 = vunpack.c.h.b16 %v216
      %v324 = vunpack.c.l.b16 %v217
      %v325 = vunpack.c.h.b16 %v217
      %v326 = vunpack.c.l.b16 %v218
      %v327 = vunpack.c.h.b16 %v218
      %v328 = vunpack.c.l.b16 %v219
      %v329 = vunpack.c.h.b16 %v219
      %v330 = vunpack.c.l.b16 %v220
      %v331 = vunpack.c.h.b16 %v220
      %v332 = vunpack.c.l.b16 %v221
      %v333 = vunpack.c.h.b16 %v221
      %v334 = vunpack.c.l.b16 %v222
      %v335 = vunpack.c.h.b16 %v222
      %v336 = vunpack.c.l.b16 %v223
      %v337 = vunpack.c.h.b16 %v223
      %v338 = vunpack.c.l.b16 %v224
      %v339 = vunpack.c.h.b16 %v224
      %v340 = vunpack.c.l.b16 %v225
      %v341 = vunpack.c.h.b16 %v225
      %v342 = vunpack.c.l.b16 %v226
      %v343 = vunpack.c.h.b16 %v226
      %v344 = vunpack.c.l.b16 %v227
      %v345 = vunpack.c.h.b16 %v227
      %v346 = vunpack.c.l.b16 %v228
      %v347 = vunpack.c.h.b16 %v228
      %v348 = vunpack.c.l.b16 %v229
      %v349 = vunpack.c.h.b16 %v229
      %v350 = vunpack.c.l.b16 %v230
      %v351 = vunpack.c.h.b16 %v230
      %v352 = vunpack.c.l.b16 %v231
      %v353 = vunpack.c.h.b16 %v231
      %v354 = vunpack.c.l.b16 %v232
      %v355 = vunpack.c.h.b16 %v232
      %v356 = vunpack.c.l.b16 %v233
      %v357 = vunpack.c.h.b16 %v233
      %v358 = vunpack.c.l.b16 %v234
      %v359 = vunpack.c.h.b16 %v234
      %v360 = vunpack.c.l.b16 %v235
      %v361 = vunpack.c.h.b16 %v235
      %v362 = vunpack.c.l.b16 %v236
      %v363 = vunpack.c.h.b16 %v236
      %v364 = vunpack.c.l.b16 %v237
      %v365 = vunpack.c.h.b16 %v237
      %v366 = vunpack.c.l.b16 %v238
      %v367 = vunpack.c.h.b16 %v238
      %v368 = vunpack.c.l.b16 %v239
      %v369 = vunpack.c.h.b16 %v239
      %v370 = vunpack.c.l.b16 %v240
      %v371 = vunpack.c.h.b16 %v240
      %v372 = vunpack.c.l.b16 %v241
      %v373 = vunpack.c.h.b16 %v241
      %v374 = vunpack.c.l.b16 %v242
      %v375 = vunpack.c.h.b16 %v242
      %v376 = vunpack.c.l.b16 %v243
      %v377 = vunpack.c.h.b16 %v243
      %v378 = vpack.c.b16 %v306, %v294
      %v379 = vpack.c.b16 %v307, %v295
      %v380 = vpack.c.b16 %v308, %v296
      %v381 = vpack.c.b16 %v309, %v297
      %v382 = vpack.c.b16 %v310, %v298
      %v383 = vpack.c.b16 %v311, %v299
      %v384 = vpack.c.b16 %v312, %v300
      %v385 = vpack.c.b16 %v313, %v301
      %v386 = vpack.c.b16 %v314, %v302
      %v387 = vpack.c.b16 %v315, %v303
      %v388 = vpack.c.b16 %v316, %v304
      %v389 = vpack.c.b16 %v317, %v305
      %v390 = vpack.c.b16 %v330, %v318
      %v391 = vpack.c.b16 %v331, %v319
      %v392 = vpack.c.b16 %v332, %v320
      %v393 = vpack.c.b16 %v333, %v321
      %v394 = vpack.c.b16 %v334, %v322
      %v395 = vpack.c.b16 %v335, %v323
      %v396 = vpack.c.b16 %v336, %v324
      %v397 = vpack.c.b16 %v337, %v325
      %v398 = vpack.c.b16 %v338, %v326
      %v399 = vpack.c.b16 %v339, %v327
      %v400 = vpack.c.b16 %v340, %v328
      %v401 = vpack.c.b16 %v341, %v329
      %v402 = vpack.c.b16 %v354, %v342
      %v403 = vpack.c.b16 %v355, %v343
      %v404 = vpack.c.b16 %v356, %v344
      %v405 = vpack.c.b16 %v357, %v345
      %v406 = vpack.c.b16 %v358, %v346
      %v407 = vpack.c.b16 %v359, %v347
      %v408 = vpack.c.b16 %v360, %v348
      %v409 = vpack.c.b16 %v361, %v349
      %v410 = vpack.c.b16 %v362, %v350
      %v411 = vpack.c.b16 %v363, %v351
      %v412 = vpack.c.b16 %v364, %v352
      %v413 = vpack.c.b16 %v365, %v353
      %v414 = vpack.c.b16 %v366, %v366
      %v415 = vpack.c.b16 %v367, %v367
      %v416 = vpack.c.b16 %v368, %v368
      %v417 = vpack.c.b16 %v369, %v369
      %v418 = vpack.c.b16 %v370, %v370
      %v419 = vpack.c.b16 %v371, %v371
      %v420 = vpack.c.b16 %v372, %v372
      %v421 = vpack.c.b16 %v373, %v373
      %v422 = vpack.c.b16 %v374, %v374
      %v423 = vpack.c.b16 %v375, %v375
      %v424 = vpack.c.b16 %v376, %v376
      %v425 = vpack.c.b16 %v377, %v377
      %vm462 = vcmask 441344
      %v464 = vsel %vm462, %v250, 0
      %v467 = vsel %vm462, %v251, 0
      %vm469 = vcmask 1042432
      %v471 = vsel %vm469, %v414, 0
      %v474 = vsel %vm469, %v415, 0
      %v477 = vsel %vm469, %v416, 0
      %v480 = vsel %vm469, %v417, 0
      %v483 = vsel %vm469, %v418, 0
      %v486 = vsel %vm469, %v419, 0
      %v489 = vsel %vm469, %v420, 0
      %v492 = vsel %vm469, %v421, 0
      %v495 = vsel %vm469, %v422, 0
      %v498 = vsel %vm469, %v423, 0
      %v501 = vsel %vm469, %v424, 0
      %v504 = vsel %vm469, %v425, 0
      %506 = vmatprep.subr.bf16.mxu0 %v379
      %507 = vmatpush1.bf16.msra.mxu0 %v378
      %508 = vmatprep.subr.bf16.mxu0 %v391
      %509 = vmatpush1.bf16.msra.mxu0 %v390
      %510 = vmatprep.subr.bf16.mxu0 %v403
      %511 = vmatpush1.bf16.msra.mxu0 %v402
      %512 = vmatprep.subr.bf16.mxu0 %v474
      %513 = vmatpush1.bf16.msra.mxu0 %v471
      %514 = vmatprep.subr.bf16.mxu0 0
      %515 = vmatpush1.bf16.msra.mxu0 0
      %516 = vmatprep.subr.bf16.mxu0 0
      %517 = vmatpush1.bf16.msra.mxu0 0
      %518 = vmatprep.subr.bf16.mxu0 0
      %519 = vmatpush1.bf16.msra.mxu0 0
      %520 = vmatprep.subr.bf16.mxu0 0
      %521 = vmatpush1.bf16.msra.mxu0 0
      %522 = vmatprep.subr.bf16.mxu0 0
      %523 = vmatpush1.bf16.msra.mxu0 0
      %524 = vmatprep.subr.bf16.mxu0 0
      %525 = vmatpush1.bf16.msra.mxu0 0
      %526 = vmatprep.subr.bf16.mxu0 0
      %527 = vmatpush1.bf16.msra.mxu0 0
      %528 = vmatprep.subr.bf16.mxu0 0
      %529 = vmatpush1.bf16.msra.mxu0 0
      %530 = vmatprep.subr.bf16.mxu0 0
      %531 = vmatpush1.bf16.msra.mxu0 0
      %532 = vmatprep.subr.bf16.mxu0 0
      %533 = vmatpush1.bf16.msra.mxu0 0
      %534 = vmatprep.subr.bf16.mxu0 0
      %535 = vmatpush1.bf16.msra.mxu0 0
      %536 = vmatprep.subr.bf16.mxu0 0
      %537 = vmatpush1.bf16.msra.mxu0 0
      %538 = vmatprep.mubr.bf16.mxu0 0
      %539 = vmatmul.mubr.bf16.gmra.mrb[0].mxu0 %v464
      %v540 = vpop.f32.mrb[0].mxu0
      %v541 = vadd.f32 0.0, %v540
      %v542 = vpop.f32.mrb[0].mxu0
      %v543 = vadd.f32 0.0, %v542
      %v544 = vpop.f32.mrb[0].mxu0
      %v545 = vadd.f32 0.0, %v544
      %v546 = vpop.f32.mrb[0].mxu0
      %v547 = vadd.f32 0.0, %v546
      %548 = vmatprep.mubr.bf16.mxu0 0
      %549 = vmatmul.mubr.bf16.gmra.mrb[0].mxu0 %v467
      %v550 = vpop.f32.mrb[0].mxu0
      %v551 = vadd.f32 0.0, %v550
      %v552 = vpop.f32.mrb[0].mxu0
      %v553 = vadd.f32 0.0, %v552
      %v554 = vpop.f32.mrb[0].mxu0
      %v555 = vpop.f32.mrb[0].mxu0
      %556 = vdwg.mxu0
      %557 = vmatprep.subr.bf16.mxu0 %v381
      %558 = vmatpush1.bf16.msra.mxu0 %v380
      %559 = vmatprep.subr.bf16.mxu0 %v393
      %560 = vmatpush1.bf16.msra.mxu0 %v392
      %561 = vmatprep.subr.bf16.mxu0 %v405
      %562 = vmatpush1.bf16.msra.mxu0 %v404
      %563 = vmatprep.subr.bf16.mxu0 %v480
      %564 = vmatpush1.bf16.msra.mxu0 %v477
      %565 = vmatprep.subr.bf16.mxu0 0
      %566 = vmatpush1.bf16.msra.mxu0 0
      %567 = vmatprep.subr.bf16.mxu0 0
      %568 = vmatpush1.bf16.msra.mxu0 0
      %569 = vmatprep.subr.bf16.mxu0 0
      %570 = vmatpush1.bf16.msra.mxu0 0
      %571 = vmatprep.subr.bf16.mxu0 0
      %572 = vmatpush1.bf16.msra.mxu0 0
      %573 = vmatprep.subr.bf16.mxu0 0
      %574 = vmatpush1.bf16.msra.mxu0 0
      %575 = vmatprep.subr.bf16.mxu0 0
      %576 = vmatpush1.bf16.msra.mxu0 0
      %577 = vmatprep.subr.bf16.mxu0 0
      %578 = vmatpush1.bf16.msra.mxu0 0
      %579 = vmatprep.subr.bf16.mxu0 0
      %580 = vmatpush1.bf16.msra.mxu0 0
      %581 = vmatprep.subr.bf16.mxu0 0
      %582 = vmatpush1.bf16.msra.mxu0 0
      %583 = vmatprep.subr.bf16.mxu0 0
      %584 = vmatpush1.bf16.msra.mxu0 0
      %585 = vmatprep.subr.bf16.mxu0 0
      %586 = vmatpush1.bf16.msra.mxu0 0
      %587 = vmatprep.subr.bf16.mxu0 0
      %588 = vmatpush1.bf16.msra.mxu0 0
      %589 = vmatprep.mubr.bf16.mxu0 0
      %590 = vmatmul.mubr.bf16.gmra.mrb[0].mxu0 %v464
      %v591 = vpop.f32.mrb[0].mxu0
      %v592 = vadd.f32 0.0, %v591
      %v593 = vpop.f32.mrb[0].mxu0
      %v594 = vadd.f32 0.0, %v593
      %v595 = vpop.f32.mrb[0].mxu0
      %v596 = vadd.f32 0.0, %v595
      %v597 = vpop.f32.mrb[0].mxu0
      %v598 = vadd.f32 0.0, %v597
      %599 = vmatprep.mubr.bf16.mxu0 0
      %600 = vmatmul.mubr.bf16.gmra.mrb[0].mxu0 %v467
      %v601 = vpop.f32.mrb[0].mxu0
      %v602 = vadd.f32 0.0, %v601
      %v603 = vpop.f32.mrb[0].mxu0
      %v604 = vadd.f32 0.0, %v603
      %v605 = vpop.f32.mrb[0].mxu0
      %v606 = vpop.f32.mrb[0].mxu0
      %607 = vdwg.mxu0
      %608 = vmatprep.subr.bf16.mxu0 %v383
      %609 = vmatpush1.bf16.msra.mxu0 %v382
      %610 = vmatprep.subr.bf16.mxu0 %v395
      %611 = vmatpush1.bf16.msra.mxu0 %v394
      %612 = vmatprep.subr.bf16.mxu0 %v407
      %613 = vmatpush1.bf16.msra.mxu0 %v406
      %614 = vmatprep.subr.bf16.mxu0 %v486
      %615 = vmatpush1.bf16.msra.mxu0 %v483
      %616 = vmatprep.subr.bf16.mxu0 0
      %617 = vmatpush1.bf16.msra.mxu0 0
      %618 = vmatprep.subr.bf16.mxu0 0
      %619 = vmatpush1.bf16.msra.mxu0 0
      %620 = vmatprep.subr.bf16.mxu0 0
      %621 = vmatpush1.bf16.msra.mxu0 0
      %622 = vmatprep.subr.bf16.mxu0 0
      %623 = vmatpush1.bf16.msra.mxu0 0
      %624 = vmatprep.subr.bf16.mxu0 0
      %625 = vmatpush1.bf16.msra.mxu0 0
      %626 = vmatprep.subr.bf16.mxu0 0
      %627 = vmatpush1.bf16.msra.mxu0 0
      %628 = vmatprep.subr.bf16.mxu0 0
      %629 = vmatpush1.bf16.msra.mxu0 0
      %630 = vmatprep.subr.bf16.mxu0 0
      %631 = vmatpush1.bf16.msra.mxu0 0
      %632 = vmatprep.subr.bf16.mxu0 0
      %633 = vmatpush1.bf16.msra.mxu0 0
      %634 = vmatprep.subr.bf16.mxu0 0
      %635 = vmatpush1.bf16.msra.mxu0 0
      %636 = vmatprep.subr.bf16.mxu0 0
      %637 = vmatpush1.bf16.msra.mxu0 0
      %638 = vmatprep.subr.bf16.mxu0 0
      %639 = vmatpush1.bf16.msra.mxu0 0
      %640 = vmatprep.mubr.bf16.mxu0 0
      %641 = vmatmul.mubr.bf16.gmra.mrb[0].mxu0 %v464
      %v642 = vpop.f32.mrb[0].mxu0
      %v643 = vadd.f32 0.0, %v642
      %v644 = vpop.f32.mrb[0].mxu0
      %v645 = vadd.f32 0.0, %v644
      %v646 = vpop.f32.mrb[0].mxu0
      %v647 = vadd.f32 0.0, %v646
      %v648 = vpop.f32.mrb[0].mxu0
      %v649 = vadd.f32 0.0, %v648
      %650 = vmatprep.mubr.bf16.mxu0 0
      %651 = vmatmul.mubr.bf16.gmra.mrb[0].mxu0 %v467
      %v652 = vpop.f32.mrb[0].mxu0
      %v653 = vadd.f32 0.0, %v652
      %v654 = vpop.f32.mrb[0].mxu0
      %v655 = vadd.f32 0.0, %v654
      %v656 = vpop.f32.mrb[0].mxu0
      %v657 = vpop.f32.mrb[0].mxu0
      %658 = vdwg.mxu0
      %659 = vmatprep.subr.bf16.mxu0 %v385
      %660 = vmatpush1.bf16.msra.mxu0 %v384
      %661 = vmatprep.subr.bf16.mxu0 %v397
      %662 = vmatpush1.bf16.msra.mxu0 %v396
      %663 = vmatprep.subr.bf16.mxu0 %v409
      %664 = vmatpush1.bf16.msra.mxu0 %v408
      %665 = vmatprep.subr.bf16.mxu0 %v492
      %666 = vmatpush1.bf16.msra.mxu0 %v489
      %667 = vmatprep.subr.bf16.mxu0 0
      %668 = vmatpush1.bf16.msra.mxu0 0
      %669 = vmatprep.subr.bf16.mxu0 0
      %670 = vmatpush1.bf16.msra.mxu0 0
      %671 = vmatprep.subr.bf16.mxu0 0
      %672 = vmatpush1.bf16.msra.mxu0 0
      %673 = vmatprep.subr.bf16.mxu0 0
      %674 = vmatpush1.bf16.msra.mxu0 0
      %675 = vmatprep.subr.bf16.mxu0 0
      %676 = vmatpush1.bf16.msra.mxu0 0
      %677 = vmatprep.subr.bf16.mxu0 0
      %678 = vmatpush1.bf16.msra.mxu0 0
      %679 = vmatprep.subr.bf16.mxu0 0
      %680 = vmatpush1.bf16.msra.mxu0 0
      %681 = vmatprep.subr.bf16.mxu0 0
      %682 = vmatpush1.bf16.msra.mxu0 0
      %683 = vmatprep.subr.bf16.mxu0 0
      %684 = vmatpush1.bf16.msra.mxu0 0
      %685 = vmatprep.subr.bf16.mxu0 0
      %686 = vmatpush1.bf16.msra.mxu0 0
      %687 = vmatprep.subr.bf16.mxu0 0
      %688 = vmatpush1.bf16.msra.mxu0 0
      %689 = vmatprep.subr.bf16.mxu0 0
      %690 = vmatpush1.bf16.msra.mxu0 0
      %691 = vmatprep.mubr.bf16.mxu0 0
      %692 = vmatmul.mubr.bf16.gmra.mrb[0].mxu0 %v464
      %v693 = vpop.f32.mrb[0].mxu0
      %v694 = vadd.f32 0.0, %v693
      %v695 = vpop.f32.mrb[0].mxu0
      %v696 = vadd.f32 0.0, %v695
      %v697 = vpop.f32.mrb[0].mxu0
      %v698 = vadd.f32 0.0, %v697
      %v699 = vpop.f32.mrb[0].mxu0
      %v700 = vadd.f32 0.0, %v699
      %701 = vmatprep.mubr.bf16.mxu0 0
      %702 = vmatmul.mubr.bf16.gmra.mrb[0].mxu0 %v467
      %v703 = vpop.f32.mrb[0].mxu0
      %v704 = vadd.f32 0.0, %v703
      %v705 = vpop.f32.mrb[0].mxu0
      %v706 = vadd.f32 0.0, %v705
      %v707 = vpop.f32.mrb[0].mxu0
      %v708 = vpop.f32.mrb[0].mxu0
      %709 = vdwg.mxu0
      %710 = vmatprep.subr.bf16.mxu0 %v387
      %711 = vmatpush1.bf16.msra.mxu0 %v386
      %712 = vmatprep.subr.bf16.mxu0 %v399
      %713 = vmatpush1.bf16.msra.mxu0 %v398
      %714 = vmatprep.subr.bf16.mxu0 %v411
      %715 = vmatpush1.bf16.msra.mxu0 %v410
      %716 = vmatprep.subr.bf16.mxu0 %v498
      %717 = vmatpush1.bf16.msra.mxu0 %v495
      %718 = vmatprep.subr.bf16.mxu0 0
      %719 = vmatpush1.bf16.msra.mxu0 0
      %720 = vmatprep.subr.bf16.mxu0 0
      %721 = vmatpush1.bf16.msra.mxu0 0
      %722 = vmatprep.subr.bf16.mxu0 0
      %723 = vmatpush1.bf16.msra.mxu0 0
      %724 = vmatprep.subr.bf16.mxu0 0
      %725 = vmatpush1.bf16.msra.mxu0 0
      %726 = vmatprep.subr.bf16.mxu0 0
      %727 = vmatpush1.bf16.msra.mxu0 0
      %728 = vmatprep.subr.bf16.mxu0 0
      %729 = vmatpush1.bf16.msra.mxu0 0
      %730 = vmatprep.subr.bf16.mxu0 0
      %731 = vmatpush1.bf16.msra.mxu0 0
      %732 = vmatprep.subr.bf16.mxu0 0
      %733 = vmatpush1.bf16.msra.mxu0 0
      %734 = vmatprep.subr.bf16.mxu0 0
      %735 = vmatpush1.bf16.msra.mxu0 0
      %736 = vmatprep.subr.bf16.mxu0 0
      %737 = vmatpush1.bf16.msra.mxu0 0
      %738 = vmatprep.subr.bf16.mxu0 0
      %739 = vmatpush1.bf16.msra.mxu0 0
      %740 = vmatprep.subr.bf16.mxu0 0
      %741 = vmatpush1.bf16.msra.mxu0 0
      %742 = vmatprep.mubr.bf16.mxu0 0
      %743 = vmatmul.mubr.bf16.gmra.mrb[0].mxu0 %v464
      %v744 = vpop.f32.mrb[0].mxu0
      %v745 = vadd.f32 0.0, %v744
      %v746 = vpop.f32.mrb[0].mxu0
      %v747 = vadd.f32 0.0, %v746
      %v748 = vpop.f32.mrb[0].mxu0
      %v749 = vadd.f32 0.0, %v748
      %v750 = vpop.f32.mrb[0].mxu0
      %v751 = vadd.f32 0.0, %v750
      %752 = vmatprep.mubr.bf16.mxu0 0
      %753 = vmatmul.mubr.bf16.gmra.mrb[0].mxu0 %v467
      %v754 = vpop.f32.mrb[0].mxu0
      %v755 = vadd.f32 0.0, %v754
      %v756 = vpop.f32.mrb[0].mxu0
      %v757 = vadd.f32 0.0, %v756
      %v758 = vpop.f32.mrb[0].mxu0
      %v759 = vpop.f32.mrb[0].mxu0
      %760 = vdwg.mxu0
      %761 = vmatprep.subr.bf16.mxu0 %v389
      %762 = vmatpush1.bf16.msra.mxu0 %v388
      %763 = vmatprep.subr.bf16.mxu0 %v401
      %764 = vmatpush1.bf16.msra.mxu0 %v400
      %765 = vmatprep.subr.bf16.mxu0 %v413
      %766 = vmatpush1.bf16.msra.mxu0 %v412
      %767 = vmatprep.subr.bf16.mxu0 %v504
      %768 = vmatpush1.bf16.msra.mxu0 %v501
      %769 = vmatprep.subr.bf16.mxu0 0
      %770 = vmatpush1.bf16.msra.mxu0 0
      %771 = vmatprep.subr.bf16.mxu0 0
      %772 = vmatpush1.bf16.msra.mxu0 0
      %773 = vmatprep.subr.bf16.mxu0 0
      %774 = vmatpush1.bf16.msra.mxu0 0
      %775 = vmatprep.subr.bf16.mxu0 0
      %776 = vmatpush1.bf16.msra.mxu0 0
      %777 = vmatprep.subr.bf16.mxu0 0
      %778 = vmatpush1.bf16.msra.mxu0 0
      %779 = vmatprep.subr.bf16.mxu0 0
      %780 = vmatpush1.bf16.msra.mxu0 0
      %781 = vmatprep.subr.bf16.mxu0 0
      %782 = vmatpush1.bf16.msra.mxu0 0
      %783 = vmatprep.subr.bf16.mxu0 0
      %784 = vmatpush1.bf16.msra.mxu0 0
      %785 = vmatprep.subr.bf16.mxu0 0
      %786 = vmatpush1.bf16.msra.mxu0 0
      %787 = vmatprep.subr.bf16.mxu0 0
      %788 = vmatpush1.bf16.msra.mxu0 0
      %789 = vmatprep.subr.bf16.mxu0 0
      %790 = vmatpush1.bf16.msra.mxu0 0
      %791 = vmatprep.subr.bf16.mxu0 0
      %792 = vmatpush1.bf16.msra.mxu0 0
      %793 = vmatprep.mubr.bf16.mxu0 0
      %794 = vmatmul.mubr.bf16.gmra.mrb[0].mxu0 %v464
      %v795 = vpop.f32.mrb[0].mxu0
      %v796 = vadd.f32 0.0, %v795
      %v797 = vpop.f32.mrb[0].mxu0
      %v798 = vadd.f32 0.0, %v797
      %v799 = vpop.f32.mrb[0].mxu0
      %v800 = vadd.f32 0.0, %v799
      %v801 = vpop.f32.mrb[0].mxu0
      %v802 = vadd.f32 0.0, %v801
      %803 = vmatprep.mubr.bf16.mxu0 0
      %804 = vmatmul.mubr.bf16.gmra.mrb[0].mxu0 %v467
      %v805 = vpop.f32.mrb[0].mxu0
      %v806 = vadd.f32 0.0, %v805
      %v807 = vpop.f32.mrb[0].mxu0
      %v808 = vadd.f32 0.0, %v807
      %v809 = vpop.f32.mrb[0].mxu0
      %v810 = vpop.f32.mrb[0].mxu0
      %811 = vdwg.mxu0
      %vm820 = vcmask 1046528
      %v821 = vrot.slane %v647, 1
      %v822 = vrot.slane %v653, 1
      %v823 = vsel %vm820, %v821, %v822
      %v824 = vrot.slane %v649, 1
      %v825 = vrot.slane %v655, 1
      %v826 = vsel %vm820, %v824, %v825
      %v827 = vrot.slane %v698, 1
      %v828 = vrot.slane %v704, 1
      %v829 = vsel %vm820, %v827, %v828
      %v830 = vrot.slane %v700, 1
      %v831 = vrot.slane %v706, 1
      %v832 = vsel %vm820, %v830, %v831
      %v837 = vadd.f32 %v541, %v823
      %v838 = vadd.f32 %v543, %v826
      %v839 = vadd.f32 %v592, %v829
      %v840 = vadd.f32 %v594, %v832
      %v849 = vrot.slane %v745, 1
      %v850 = vrot.slane %v749, 1
      %v851 = vsel %vm820, %v849, %v850
      %v852 = vrot.slane %v747, 1
      %v853 = vrot.slane %v751, 1
      %v854 = vsel %vm820, %v852, %v853
      %v855 = vrot.slane %v796, 1
      %v856 = vrot.slane %v800, 1
      %v857 = vsel %vm820, %v855, %v856
      %v858 = vrot.slane %v798, 1
      %v859 = vrot.slane %v802, 1
      %v860 = vsel %vm820, %v858, %v859
      %v865 = vadd.f32 %v837, %v851
      %v866 = vadd.f32 %v838, %v854
      %v867 = vadd.f32 %v839, %v857
      %v868 = vadd.f32 %v840, %v860
      %v869 = vadd.f32 %v545, %v643
      %v870 = vadd.f32 %v547, %v645
      %v871 = vadd.f32 %v596, %v694
      %v872 = vadd.f32 %v598, %v696
      %v873 = vadd.f32 %v551, %v647
      %v874 = vadd.f32 %v553, %v649
      %v875 = vadd.f32 %v602, %v698
      %v876 = vadd.f32 %v604, %v700
      %v881 = vrot.slane %v755, 1
      %v882 = vsel %vm820, %v850, %v881
      %v883 = vrot.slane %v757, 1
      %v884 = vsel %vm820, %v853, %v883
      %v885 = vrot.slane %v806, 1
      %v886 = vsel %vm820, %v856, %v885
      %v887 = vrot.slane %v808, 1
      %v888 = vsel %vm820, %v859, %v887
      %v897 = vadd.f32 %v869, %v882
      %v898 = vadd.f32 %v870, %v884
      %v899 = vadd.f32 %v871, %v886
      %v900 = vadd.f32 %v872, %v888
      %v901 = vadd.f32 %v873, %v881
      %v902 = vadd.f32 %v874, %v883
      %v903 = vadd.f32 %v875, %v885
      %v904 = vadd.f32 %v876, %v887
      %v905 = vld [vmem:[%s2] sm:$0xf]
      %v906 = vld [vmem:[%s3] sm:$0xf]
      %v908 = vlaneseq
      %v909 = vshrl.u32 %v908, 7
      %v910 = vsub.s32 0, %v909
      %v911 = vrot.slane %v905, %v910
      %v912 = vlaneseq
      %v913 = vshrl.u32 %v912, 7
      %v914 = vsub.s32 1, %v913
      %v915 = vrot.slane %v905, %v914
      %v916 = vlaneseq
      %v917 = vshrl.u32 %v916, 7
      %v918 = vsub.s32 2, %v917
      %v919 = vrot.slane %v905, %v918
      %v920 = vlaneseq
      %v921 = vshrl.u32 %v920, 7
      %v922 = vsub.s32 3, %v921
      %v923 = vrot.slane %v905, %v922
      %v928 = vmul.f32 %v865, %v911
      %v929 = vmul.f32 %v866, %v915
      %v930 = vmul.f32 %v867, %v919
      %v931 = vmul.f32 %v868, %v923
      %v933 = vlaneseq
      %v934 = vshrl.u32 %v933, 7
      %v935 = vsub.s32 0, %v934
      %v936 = vrot.slane %v906, %v935
      %v937 = vlaneseq
      %v938 = vshrl.u32 %v937, 7
      %v939 = vsub.s32 1, %v938
      %v940 = vrot.slane %v906, %v939
      %v941 = vlaneseq
      %v942 = vshrl.u32 %v941, 7
      %v943 = vsub.s32 2, %v942
      %v944 = vrot.slane %v906, %v943
      %v945 = vlaneseq
      %v946 = vshrl.u32 %v945, 7
      %v947 = vsub.s32 3, %v946
      %v948 = vrot.slane %v906, %v947
      %v953 = vadd.f32 %v928, %v936
      %v954 = vadd.f32 %v929, %v940
      %v955 = vadd.f32 %v930, %v944
      %v956 = vadd.f32 %v931, %v948
      %v957 = vmax.f32 %v953, 0.0
      %v958 = vmax.f32 %v954, 0.0
      %v959 = vmax.f32 %v955, 0.0
      %v960 = vmax.f32 %v956, 0.0
      %v961 = vmul.f32 %v897, %v911
      %v962 = vmul.f32 %v898, %v915
      %v963 = vmul.f32 %v899, %v919
      %v964 = vmul.f32 %v900, %v923
      %v965 = vmul.f32 %v901, %v911
      %v966 = vmul.f32 %v902, %v915
      %v967 = vmul.f32 %v903, %v919
      %v968 = vmul.f32 %v904, %v923
      %v969 = vadd.f32 %v961, %v936
      %v970 = vadd.f32 %v962, %v940
      %v971 = vadd.f32 %v963, %v944
      %v972 = vadd.f32 %v964, %v948
      %v973 = vadd.f32 %v965, %v936
      %v974 = vadd.f32 %v966, %v940
      %v975 = vadd.f32 %v967, %v944
      %v976 = vadd.f32 %v968, %v948
      %v977 = vmax.f32 %v969, 0.0
      %v978 = vmax.f32 %v970, 0.0
      %v979 = vmax.f32 %v971, 0.0
      %v980 = vmax.f32 %v972, 0.0
      %v981 = vmax.f32 %v973, 0.0
      %v982 = vmax.f32 %v974, 0.0
      %v983 = vmax.f32 %v975, 0.0
      %v984 = vmax.f32 %v976, 0.0
      %v993 = vrot.slane %v977, 1
      %v994 = vrot.slane %v981, 1
      %v995 = vsel %vm820, %v993, %v994
      %v996 = vrot.slane %v978, 1
      %v997 = vrot.slane %v982, 1
      %v998 = vsel %vm820, %v996, %v997
      %v999 = vrot.slane %v979, 1
      %v1000 = vrot.slane %v983, 1
      %v1001 = vsel %vm820, %v999, %v1000
      %v1002 = vrot.slane %v980, 1
      %v1003 = vrot.slane %v984, 1
      %v1004 = vsel %vm820, %v1002, %v1003
      %v1009 = vmax.f32 %v957, %v995
      %v1010 = vmax.f32 %v958, %v998
      %v1011 = vmax.f32 %v959, %v1001
      %v1012 = vmax.f32 %v960, %v1004
      %v1013 = vmax.f32 %v1009, %v1011
      %v1014 = vmax.f32 %v1010, %v1012
      %v1015 = vpack.c.bf16 %v1013, %v1013
      %v1016 = vpack.c.bf16 %v1014, %v1014
      %v1019 = vunpack.c.l.b16 %v1015
      %v1020 = vunpack.c.l.b16 %v1016
      %v1021 = vpack.c.b16 %v1020, %v1019
      %1023 = vst [vmem:[%s197] sm:$0xff] %v1021
      %p1024 = scmp.lt.s32.totalorder %s15, 1
      %s1025 = scalar_select %p1024, %s15, 1
      %s1026 = smul.addr %s1025, 2
      %s1027 = smul.addr %s1026, 4
      %s1028 = scalar_lea.vmem %s4, %s1027
      // Predicated region
      $region37: #{_lambda_.4} parent=35 // pred_check
        %p1029 = pneg %p122
      $region38: #{_lambda_.4} parent=35 // pred_check_branch
        %1031 = sbr.rel (%p1029) target = $region40
      $region39: #{_lambda_.4} parent=35 // pred_region
        _
      $region40: #{_lambda_.4} parent=35 // pred_fallthru
        _
    $region36: #{_lambda_.4} parent=5 // pred_fallthru
      _
    %p1032 = scmp.le.s32.totalorder 2, %s10
    // Predicated region
    $region41: #{_lambda_.4} parent=5 // pred_check
      %p1033 = pneg %p1032
    $region42: #{_lambda_.4} parent=5 // pred_check_branch
      %1035 = sbr.rel (%p1033) target = $region44
    $region43: #{_lambda_.4} parent=5 // pred_region
      %s1036 = ssub.s32 %s10, 2
      // Predicated region
      $region45: #{_lambda_.4} parent=43 // pred_check
        %p1037 = pneg %p128
      $region46: #{_lambda_.4} parent=43 // pred_check_branch
        %1039 = sbr.rel (%p1037) target = $region48
      $region47: #{_lambda_.4} parent=43 // pred_region
        %p1040 = scmp.lt.s32.totalorder %s16, 1
        %s1041 = scalar_select %p1040, %s16, 1
        %s1042 = smul.addr %s1041, 2
        %s1043 = smul.addr %s1042, 4
        %s1044 = scalar_lea.vmem %s4, %s1043
      $region48: #{_lambda_.4} parent=43 // pred_fallthru
        _
    $region44: #{_lambda_.4} parent=5 // pred_fallthru
      _
  $region6: #{_lambda_.4} parent=0 // loop_footer
    %s14 = sadd.s32 1, %s10
  $region7: #{_lambda_.4} parent=0 // loop_footer_branch
    %9 = sbr.rel target = $region3
  $region8: #{_lambda_.4} parent=0 // loop_exit
    _

// kernel: _lambda_.5
$region0: #{_lambda_.5}
  #allocation0 [shape = 'u32[]', space=smem, size = 0x4, offset = 0x4, fixed_abs, tag = 'smem constant byte address 0x4 - core index']
  #allocation1 [shape = 'u32[144,128]{1,0:T(1,128)}', space=vmem, size = 0x12000, scoped, tag = 'internal scratch']
  %s0 = inlined_call_operand.vmem [shape: bf16[2,10,320], index: 0, kind: input, shape index: {}]
  %s1 = inlined_call_operand.vmem [shape: bf16[320,768], index: 1, kind: input, shape index: {}]
  %s2 = inlined_call_operand.vmem [shape: f32[1,256], index: 2, kind: input, shape index: {}]
  %s3 = inlined_call_operand.vmem [shape: f32[1,256], index: 3, kind: input, shape index: {}]
  %s4 = inlined_call_operand.vmem [shape: bf16[2,4,128], index: 4, kind: output, shape index: {}]
  %s5 = sld [smem:[#allocation0]]
  $region49: #{_lambda_.5} parent=0
    _
  %s7 = ssub.s32 1, %s5
  %s8 = scalar_select 0, %s7, %s5
  loop: start=0, step=1, limit=4
  $region2: #{_lambda_.5} parent=0 // loop_pre_header
    _
  $region3: #{_lambda_.5} parent=0 // loop_header
    %s10 = sphi 0, %s14
    %p11 = scmp.ge.s32.totalorder %s10, 4
    %s20 = sphi 0, %s22
    %s23 = sphi 0, %s20
    %s24 = sphi 0, %s23
    %s40 = sphi 0, %s24
    %s44 = sphi 0, %s44
    %s46 = sphi 0, %s44
    %s47 = sphi 0, %s46
    %s61 = sphi 0, %s47
    %s65 = sphi 0, %s65
    %s67 = sphi 0, %s65
    %s68 = sphi 0, %s67
    %s82 = sphi 0, %s68
    %s86 = sphi 0, %s86
    %s88 = sphi 0, %s86
    %s89 = sphi 0, %s88
    %s103 = sphi 0, %s89
    %s109 = sphi 0, %s111
    %s112 = sphi 0, %s109
    %s113 = sphi 0, %s112
    %s129 = sphi 0, %s113
  $region4: #{_lambda_.5} parent=0 // loop_header_branch
    %13 = sbr.rel (%p11) target = $region8
  $region5: #{_lambda_.5} parent=0 // loop_body
    %s15 = ssub.s32 %s10, 1
    %s16 = ssub.s32 %s10, 2
    %s17 = sadd.s32 %s10, 1
    %s18 = ssub.s32 %s10, %s17
    %p19 = scmp.eq.s32.totalorder %s18, 0
    %s21 = sadd.s32 %s20, 1
    %s22 = scalar_select %p19, %s20, %s21
    %p25 = pneg %p19
    %p26 = scmp.eq.s32.totalorder %s10, 1
    %p27 = por %p25, %p26
    %p28 = scmp.ne.s32.totalorder %s20, %s23
    %p29 = scmp.eq.s32.totalorder %s10, 0
    %p30 = por %p28, %p29
    %p31 = scmp.ne.s32.totalorder %s20, %s23
    %p32 = scmp.eq.s32.totalorder %s15, 1
    %p33 = por %p31, %p32
    %p34 = scmp.ne.s32.totalorder %s23, %s24
    %p35 = scmp.eq.s32.totalorder %s15, 0
    %p36 = por %p34, %p35
    %p37 = scmp.ne.s32.totalorder %s23, %s24
    %p38 = scmp.eq.s32.totalorder %s16, 1
    %p39 = por %p37, %p38
    %p41 = scmp.ne.s32.totalorder %s24, %s40
    %p42 = scmp.eq.s32.totalorder %s16, 0
    %p43 = por %p41, %p42
    %s45 = sadd.s32 %s44, 1
    %p48 = scmp.eq.s32.totalorder %s10, 1
    %p49 = scmp.ne.s32.totalorder %s44, %s46
    %p50 = scmp.eq.s32.totalorder %s10, 0
    %p51 = por %p49, %p50
    %p52 = scmp.ne.s32.totalorder %s44, %s46
    %p53 = scmp.eq.s32.totalorder %s15, 1
    %p54 = por %p52, %p53
    %p55 = scmp.ne.s32.totalorder %s46, %s47
    %p56 = scmp.eq.s32.totalorder %s15, 0
    %p57 = por %p55, %p56
    %p58 = scmp.ne.s32.totalorder %s46, %s47
    %p59 = scmp.eq.s32.totalorder %s16, 1
    %p60 = por %p58, %p59
    %p62 = scmp.ne.s32.totalorder %s47, %s61
    %p63 = scmp.eq.s32.totalorder %s16, 0
    %p64 = por %p62, %p63
    %s66 = sadd.s32 %s65, 1
    %p69 = scmp.eq.s32.totalorder %s10, 1
    %p70 = scmp.ne.s32.totalorder %s65, %s67
    %p71 = scmp.eq.s32.totalorder %s10, 0
    %p72 = por %p70, %p71
    %p73 = scmp.ne.s32.totalorder %s65, %s67
    %p74 = scmp.eq.s32.totalorder %s15, 1
    %p75 = por %p73, %p74
    %p76 = scmp.ne.s32.totalorder %s67, %s68
    %p77 = scmp.eq.s32.totalorder %s15, 0
    %p78 = por %p76, %p77
    %p79 = scmp.ne.s32.totalorder %s67, %s68
    %p80 = scmp.eq.s32.totalorder %s16, 1
    %p81 = por %p79, %p80
    %p83 = scmp.ne.s32.totalorder %s68, %s82
    %p84 = scmp.eq.s32.totalorder %s16, 0
    %p85 = por %p83, %p84
    %s87 = sadd.s32 %s86, 1
    %p90 = scmp.eq.s32.totalorder %s10, 1
    %p91 = scmp.ne.s32.totalorder %s86, %s88
    %p92 = scmp.eq.s32.totalorder %s10, 0
    %p93 = por %p91, %p92
    %p94 = scmp.ne.s32.totalorder %s86, %s88
    %p95 = scmp.eq.s32.totalorder %s15, 1
    %p96 = por %p94, %p95
    %p97 = scmp.ne.s32.totalorder %s88, %s89
    %p98 = scmp.eq.s32.totalorder %s15, 0
    %p99 = por %p97, %p98
    %p100 = scmp.ne.s32.totalorder %s88, %s89
    %p101 = scmp.eq.s32.totalorder %s16, 1
    %p102 = por %p100, %p101
    %p104 = scmp.ne.s32.totalorder %s89, %s103
    %p105 = scmp.eq.s32.totalorder %s16, 0
    %p106 = por %p104, %p105
    %s107 = ssub.s32 %s10, %s17
    %p108 = scmp.eq.s32.totalorder %s107, 0
    %s110 = sadd.s32 %s109, 1
    %s111 = scalar_select %p108, %s109, %s110
    %p114 = pneg %p108
    %p115 = scmp.eq.s32.totalorder %s10, 1
    %p116 = por %p114, %p115
    %p117 = scmp.ne.s32.totalorder %s109, %s112
    %p118 = scmp.eq.s32.totalorder %s10, 0
    %p119 = por %p117, %p118
    %p120 = scmp.ne.s32.totalorder %s109, %s112
    %p121 = scmp.eq.s32.totalorder %s15, 1
    %p122 = por %p120, %p121
    %p123 = scmp.ne.s32.totalorder %s112, %s113
    %p124 = scmp.eq.s32.totalorder %s15, 0
    %p125 = por %p123, %p124
    %p126 = scmp.ne.s32.totalorder %s112, %s113
    %p127 = scmp.eq.s32.totalorder %s16, 1
    %p128 = por %p126, %p127
    %p130 = scmp.ne.s32.totalorder %s113, %s129
    %p131 = scmp.eq.s32.totalorder %s16, 0
    %p132 = por %p130, %p131
    %p133 = scmp.le.s32.totalorder 1, %s10
    %p134 = scmp.lt.s32.totalorder %s10, 3
    %p135 = pnand %p133, %p134
    %p136 = pneg %p135
    // Predicated region
    $region9: #{_lambda_.5} parent=5 // pred_check
      _
    $region10: #{_lambda_.5} parent=5 // pred_check_branch
      %138 = sbr.rel (%p135) target = $region12
    $region11: #{_lambda_.5} parent=5 // pred_region
      %s139 = ssub.s32 %s10, 1
      // Predicated region
      $region13: #{_lambda_.5} parent=11 // pred_check
        %p140 = pneg %p57
      $region14: #{_lambda_.5} parent=11 // pred_check_branch
        %142 = sbr.rel (%p140) target = $region16
      $region15: #{_lambda_.5} parent=11 // pred_region
        _
      $region16: #{_lambda_.5} parent=11 // pred_fallthru
        _
      // Predicated region
      $region17: #{_lambda_.5} parent=11 // pred_check
        %p143 = pneg %p78
      $region18: #{_lambda_.5} parent=11 // pred_check_branch
        %145 = sbr.rel (%p143) target = $region20
      $region19: #{_lambda_.5} parent=11 // pred_region
        _
      $region20: #{_lambda_.5} parent=11 // pred_fallthru
        _
      // Predicated region
      $region21: #{_lambda_.5} parent=11 // pred_check
        %p146 = pneg %p99
      $region22: #{_lambda_.5} parent=11 // pred_check_branch
        %148 = sbr.rel (%p146) target = $region24
      $region23: #{_lambda_.5} parent=11 // pred_region
        _
      $region24: #{_lambda_.5} parent=11 // pred_fallthru
        _
    $region12: #{_lambda_.5} parent=5 // pred_fallthru
      _
    %p149 = scmp.lt.s32.totalorder %s10, 2
    // Predicated region
    $region25: #{_lambda_.5} parent=5 // pred_check
      %p150 = pneg %p149
    $region26: #{_lambda_.5} parent=5 // pred_check_branch
      %152 = sbr.rel (%p150) target = $region28
    $region27: #{_lambda_.5} parent=5 // pred_region
      // Predicated region
      $region29: #{_lambda_.5} parent=27 // pred_check
        %p153 = pneg %p30
      $region30: #{_lambda_.5} parent=27 // pred_check_branch
        %155 = sbr.rel (%p153) target = $region32
      $region31: #{_lambda_.5} parent=27 // pred_region
        %p156 = scmp.lt.s32.totalorder %s10, 1
        %s157 = scalar_select %p156, %s10, 1
        %s158 = smul.addr %s157, 6
        %s159 = smul.addr %s158, 4
        %s160 = scalar_lea.vmem %s0, %s159
      $region32: #{_lambda_.5} parent=27 // pred_fallthru
        _
    $region28: #{_lambda_.5} parent=5 // pred_fallthru
      _
    %p161 = scmp.le.s32.totalorder 1, %s10
    %p162 = scmp.lt.s32.totalorder %s10, 3
    %p163 = pnand %p161, %p162
    %p164 = pneg %p163
    // Predicated region
    $region33: #{_lambda_.5} parent=5 // pred_check
      _
    $region34: #{_lambda_.5} parent=5 // pred_check_branch
      %166 = sbr.rel (%p163) target = $region36
    $region35: #{_lambda_.5} parent=5 // pred_region
      %s167 = ssub.s32 %s10, 1
      %p168 = scmp.lt.s32.totalorder %s15, 1
      %s169 = scalar_select %p168, %s15, 1
      %s170 = smul.addr %s169, 6
      %s171 = smul.addr %s170, 4
      %s172 = scalar_lea.vmem %s0, %s171
      %p173 = pneg %p36
      %p174 = pneg %p33
      %p175 = pneg %p57
      %p176 = pneg %p54
      %p177 = pneg %p78
      %p178 = pneg %p75
      %p179 = pneg %p99
      %p180 = pneg %p96
      %p181 = pneg %p125
      %p182 = pneg %p122
      %p183 = scmp.lt.s32.totalorder %s15, 1
      %s184 = scalar_select %p183, %s15, 1
      %s185 = smul.addr %s184, 2
      %s186 = scalar_lea.vmem %s4, %s185
      %p187 = scmp.lt.s32.totalorder %s15, 1
      %s188 = scalar_select %p187, %s15, 1
      %s189 = smul.addr %s188, 6
      %s190 = smul.addr %s189, 4
      %s191 = scalar_lea.vmem %s0, %s190
      %p192 = scmp.lt.s32.totalorder %s15, 1
      %s193 = scalar_select %p192, %s15, 1
      %s194 = smul.addr %s193, 2
      %s195 = scalar_lea.vmem %s4, %s194
      %v197 = vld [vmem:[%s191] sm:$0xff]
      %v198 = vld [vmem:[%s191 + $0x8] sm:$0xf]
      %v199 = vld [vmem:[%s191 + $0xc] sm:$0x11]
      %v200 = vld [vmem:[%s191 + $0x14] sm:$0x1]
      %v201 = vld [vmem:[%s1] sm:$0xff]
      %v202 = vld [vmem:[%s1 + $0x8] sm:$0xff]
      %v203 = vld [vmem:[%s1 + $0x10] sm:$0xff]
      %v204 = vld [vmem:[%s1 + $0x18] sm:$0xff]
      %v205 = vld [vmem:[%s1 + $0x20] sm:$0xff]
      %v206 = vld [vmem:[%s1 + $0x28] sm:$0xff]
      %v207 = vld [vmem:[%s1 + $0x30] sm:$0xff]
      %v208 = vld [vmem:[%s1 + $0x38] sm:$0xff]
      %v209 = vld [vmem:[%s1 + $0x40] sm:$0xff]
      %v210 = vld [vmem:[%s1 + $0x48] sm:$0xff]
      %v211 = vld [vmem:[%s1 + $0x50] sm:$0xff]
      %v212 = vld [vmem:[%s1 + $0x58] sm:$0xff]
      %v213 = vld [vmem:[%s1 + $0x60] sm:$0xff]
      %v214 = vld [vmem:[%s1 + $0x68] sm:$0xff]
      %v215 = vld [vmem:[%s1 + $0x70] sm:$0xff]
      %v216 = vld [vmem:[%s1 + $0x78] sm:$0xff]
      %v217 = vld [vmem:[%s1 + $0x80] sm:$0xff]
      %v218 = vld [vmem:[%s1 + $0x88] sm:$0xff]
      %v219 = vld [vmem:[%s1 + $0x90] sm:$0xff]
      %v220 = vld [vmem:[%s1 + $0x98] sm:$0xff]
      %v221 = vld [vmem:[%s1 + $0xa0] sm:$0xff]
      %v222 = vld [vmem:[%s1 + $0xa8] sm:$0xff]
      %v223 = vld [vmem:[%s1 + $0xb0] sm:$0xff]
      %v224 = vld [vmem:[%s1 + $0xb8] sm:$0xff]
      %v225 = vld [vmem:[%s1 + $0xc0] sm:$0xff]
      %v226 = vld [vmem:[%s1 + $0xc8] sm:$0xff]
      %v227 = vld [vmem:[%s1 + $0xd0] sm:$0xff]
      %v228 = vld [vmem:[%s1 + $0xd8] sm:$0xff]
      %v229 = vld [vmem:[%s1 + $0xe0] sm:$0xff]
      %v230 = vld [vmem:[%s1 + $0xe8] sm:$0xff]
      %v231 = vld [vmem:[%s1 + $0xf0] sm:$0xff]
      %v232 = vld [vmem:[%s1 + $0xf8] sm:$0xff]
      %v233 = vld [vmem:[%s1 + $0x100] sm:$0xff]
      %v234 = vld [vmem:[%s1 + $0x108] sm:$0xff]
      %v235 = vld [vmem:[%s1 + $0x110] sm:$0xff]
      %v236 = vld [vmem:[%s1 + $0x118] sm:$0xff]
      %v237 = vld [vmem:[%s1 + $0x120] sm:$0xff]
      %v238 = vld [vmem:[%s1 + $0x128] sm:$0xff]
      %v239 = vld [vmem:[%s1 + $0x130] sm:$0xff]
      %v240 = vld [vmem:[%s1 + $0x138] sm:$0xff]
      %v241 = vld [vmem:[%s1 + $0x140] sm:$0xff]
      %v242 = vld [vmem:[%s1 + $0x148] sm:$0xff]
      %v243 = vld [vmem:[%s1 + $0x150] sm:$0xff]
      %v244 = vld [vmem:[%s1 + $0x158] sm:$0xff]
      %v245 = vld [vmem:[%s1 + $0x160] sm:$0xff]
      %v246 = vld [vmem:[%s1 + $0x168] sm:$0xff]
      %v247 = vld [vmem:[%s1 + $0x170] sm:$0xff]
      %v248 = vld [vmem:[%s1 + $0x178] sm:$0xff]
      %v249 = vld [vmem:[%s1 + $0x180] sm:$0xff]
      %v250 = vld [vmem:[%s1 + $0x188] sm:$0xff]
      %v251 = vld [vmem:[%s1 + $0x190] sm:$0xff]
      %v252 = vld [vmem:[%s1 + $0x198] sm:$0xff]
      %v253 = vld [vmem:[%s1 + $0x1a0] sm:$0xff]
      %v254 = vld [vmem:[%s1 + $0x1a8] sm:$0xff]
      %v255 = vld [vmem:[%s1 + $0x1b0] sm:$0xff]
      %v256 = vld [vmem:[%s1 + $0x1b8] sm:$0xff]
      %v257 = vld [vmem:[%s1 + $0x1c0] sm:$0xff]
      %v258 = vld [vmem:[%s1 + $0x1c8] sm:$0xff]
      %v259 = vld [vmem:[%s1 + $0x1d0] sm:$0xff]
      %v260 = vld [vmem:[%s1 + $0x1d8] sm:$0xff]
      %v261 = vld [vmem:[%s1 + $0x1e0] sm:$0xff]
      %v262 = vld [vmem:[%s1 + $0x1e8] sm:$0xff]
      %v263 = vld [vmem:[%s1 + $0x1f0] sm:$0xff]
      %v264 = vld [vmem:[%s1 + $0x1f8] sm:$0xff]
      %v265 = vld [vmem:[%s1 + $0x200] sm:$0xff]
      %v266 = vld [vmem:[%s1 + $0x208] sm:$0xff]
      %v267 = vld [vmem:[%s1 + $0x210] sm:$0xff]
      %v268 = vld [vmem:[%s1 + $0x218] sm:$0xff]
      %v269 = vld [vmem:[%s1 + $0x220] sm:$0xff]
      %v270 = vld [vmem:[%s1 + $0x228] sm:$0xff]
      %v271 = vld [vmem:[%s1 + $0x230] sm:$0xff]
      %v272 = vld [vmem:[%s1 + $0x238] sm:$0xff]
      %v273 = vld [vmem:[%s1 + $0x240] sm:$0xff]
      %v274 = vld [vmem:[%s1 + $0x248] sm:$0xff]
      %v275 = vld [vmem:[%s1 + $0x250] sm:$0xff]
      %v276 = vld [vmem:[%s1 + $0x258] sm:$0xff]
      %v277 = vld [vmem:[%s1 + $0x260] sm:$0xff]
      %v278 = vld [vmem:[%s1 + $0x268] sm:$0xff]
      %v279 = vld [vmem:[%s1 + $0x270] sm:$0xff]
      %v280 = vld [vmem:[%s1 + $0x278] sm:$0xff]
      %v281 = vld [vmem:[%s1 + $0x280] sm:$0xff]
      %v282 = vld [vmem:[%s1 + $0x288] sm:$0xff]
      %v283 = vld [vmem:[%s1 + $0x290] sm:$0xff]
      %v284 = vld [vmem:[%s1 + $0x298] sm:$0xff]
      %v285 = vld [vmem:[%s1 + $0x2a0] sm:$0xff]
      %v286 = vld [vmem:[%s1 + $0x2a8] sm:$0xff]
      %v287 = vld [vmem:[%s1 + $0x2b0] sm:$0xff]
      %v288 = vld [vmem:[%s1 + $0x2b8] sm:$0xff]
      %v289 = vld [vmem:[%s1 + $0x2c0] sm:$0xff]
      %v290 = vld [vmem:[%s1 + $0x2c8] sm:$0xff]
      %v291 = vld [vmem:[%s1 + $0x2d0] sm:$0xff]
      %v292 = vld [vmem:[%s1 + $0x2d8] sm:$0xff]
      %v293 = vld [vmem:[%s1 + $0x2e0] sm:$0xff]
      %v294 = vld [vmem:[%s1 + $0x2e8] sm:$0xff]
      %v295 = vld [vmem:[%s1 + $0x2f0] sm:$0xff]
      %v296 = vld [vmem:[%s1 + $0x2f8] sm:$0xff]
      %v297 = vld [vmem:[%s1 + $0x300] sm:$0xff]
      %v298 = vld [vmem:[%s1 + $0x308] sm:$0xff]
      %v299 = vld [vmem:[%s1 + $0x310] sm:$0xff]
      %v300 = vld [vmem:[%s1 + $0x318] sm:$0xff]
      %v301 = vld [vmem:[%s1 + $0x320] sm:$0xff]
      %v302 = vld [vmem:[%s1 + $0x328] sm:$0xff]
      %v303 = vld [vmem:[%s1 + $0x330] sm:$0xff]
      %v304 = vld [vmem:[%s1 + $0x338] sm:$0xff]
      %v305 = vld [vmem:[%s1 + $0x340] sm:$0xff]
      %v306 = vld [vmem:[%s1 + $0x348] sm:$0xff]
      %v307 = vld [vmem:[%s1 + $0x350] sm:$0xff]
      %v308 = vld [vmem:[%s1 + $0x358] sm:$0xff]
      %v309 = vld [vmem:[%s1 + $0x360] sm:$0xff]
      %v310 = vld [vmem:[%s1 + $0x368] sm:$0xff]
      %v311 = vld [vmem:[%s1 + $0x370] sm:$0xff]
      %v312 = vld [vmem:[%s1 + $0x378] sm:$0xff]
      %v313 = vld [vmem:[%s1 + $0x380] sm:$0xff]
      %v314 = vld [vmem:[%s1 + $0x388] sm:$0xff]
      %v315 = vld [vmem:[%s1 + $0x390] sm:$0xff]
      %v316 = vld [vmem:[%s1 + $0x398] sm:$0xff]
      %v317 = vld [vmem:[%s1 + $0x3a0] sm:$0xff]
      %v318 = vld [vmem:[%s1 + $0x3a8] sm:$0xff]
      %v319 = vld [vmem:[%s1 + $0x3b0] sm:$0xff]
      %v320 = vld [vmem:[%s1 + $0x3b8] sm:$0xff]
      %v325 = vunpack.c.l.b16 %v197
      %v326 = vunpack.c.h.b16 %v197
      %v327 = vunpack.c.l.b16 %v198
      %v328 = vunpack.c.l.b16 %v199
      %v329 = vunpack.c.h.b16 %v199
      %v330 = vunpack.c.l.b16 %v200
      %v331 = vpack.c.b16 %v328, %v325
      %v332 = vpack.c.b16 %v329, %v326
      %v333 = vpack.c.b16 %v330, %v327
      %v456 = vunpack.c.l.b16 %v201
      %v457 = vunpack.c.h.b16 %v201
      %v458 = vunpack.c.l.b16 %v202
      %v459 = vunpack.c.h.b16 %v202
      %v460 = vunpack.c.l.b16 %v203
      %v461 = vunpack.c.h.b16 %v203
      %v462 = vunpack.c.l.b16 %v204
      %v463 = vunpack.c.h.b16 %v204
      %v464 = vunpack.c.l.b16 %v205
      %v465 = vunpack.c.h.b16 %v205
      %v466 = vunpack.c.l.b16 %v206
      %v467 = vunpack.c.h.b16 %v206
      %v468 = vunpack.c.l.b16 %v207
      %v469 = vunpack.c.h.b16 %v207
      %v470 = vunpack.c.l.b16 %v208
      %v471 = vunpack.c.h.b16 %v208
      %v472 = vunpack.c.l.b16 %v209
      %v473 = vunpack.c.h.b16 %v209
      %v474 = vunpack.c.l.b16 %v210
      %v475 = vunpack.c.h.b16 %v210
      %v476 = vunpack.c.l.b16 %v211
      %v477 = vunpack.c.h.b16 %v211
      %v478 = vunpack.c.l.b16 %v212
      %v479 = vunpack.c.h.b16 %v212
      %v480 = vunpack.c.l.b16 %v213
      %v481 = vunpack.c.h.b16 %v213
      %v482 = vunpack.c.l.b16 %v214
      %v483 = vunpack.c.h.b16 %v214
      %v484 = vunpack.c.l.b16 %v215
      %v485 = vunpack.c.h.b16 %v215
      %v486 = vunpack.c.l.b16 %v216
      %v487 = vunpack.c.h.b16 %v216
      %v488 = vunpack.c.l.b16 %v217
      %v489 = vunpack.c.h.b16 %v217
      %v490 = vunpack.c.l.b16 %v218
      %v491 = vunpack.c.h.b16 %v218
      %v492 = vunpack.c.l.b16 %v219
      %v493 = vunpack.c.h.b16 %v219
      %v494 = vunpack.c.l.b16 %v220
      %v495 = vunpack.c.h.b16 %v220
      %v496 = vunpack.c.l.b16 %v221
      %v497 = vunpack.c.h.b16 %v221
      %v498 = vunpack.c.l.b16 %v222
      %v499 = vunpack.c.h.b16 %v222
      %v500 = vunpack.c.l.b16 %v223
      %v501 = vunpack.c.h.b16 %v223
      %v502 = vunpack.c.l.b16 %v224
      %v503 = vunpack.c.h.b16 %v224
      %v504 = vunpack.c.l.b16 %v225
      %v505 = vunpack.c.h.b16 %v225
      %v506 = vunpack.c.l.b16 %v226
      %v507 = vunpack.c.h.b16 %v226
      %v508 = vunpack.c.l.b16 %v227
      %v509 = vunpack.c.h.b16 %v227
      %v510 = vunpack.c.l.b16 %v228
      %v511 = vunpack.c.h.b16 %v228
      %v512 = vunpack.c.l.b16 %v229
      %v513 = vunpack.c.h.b16 %v229
      %v514 = vunpack.c.l.b16 %v230
      %v515 = vunpack.c.h.b16 %v230
      %v516 = vunpack.c.l.b16 %v231
      %v517 = vunpack.c.h.b16 %v231
      %v518 = vunpack.c.l.b16 %v232
      %v519 = vunpack.c.h.b16 %v232
      %v520 = vunpack.c.l.b16 %v233
      %v521 = vunpack.c.h.b16 %v233
      %v522 = vunpack.c.l.b16 %v234
      %v523 = vunpack.c.h.b16 %v234
      %v524 = vunpack.c.l.b16 %v235
      %v525 = vunpack.c.h.b16 %v235
      %v526 = vunpack.c.l.b16 %v236
      %v527 = vunpack.c.h.b16 %v236
      %v528 = vunpack.c.l.b16 %v237
      %v529 = vunpack.c.h.b16 %v237
      %v530 = vunpack.c.l.b16 %v238
      %v531 = vunpack.c.h.b16 %v238
      %v532 = vunpack.c.l.b16 %v239
      %v533 = vunpack.c.h.b16 %v239
      %v534 = vunpack.c.l.b16 %v240
      %v535 = vunpack.c.h.b16 %v240
      %v536 = vunpack.c.l.b16 %v241
      %v537 = vunpack.c.h.b16 %v241
      %v538 = vunpack.c.l.b16 %v242
      %v539 = vunpack.c.h.b16 %v242
      %v540 = vunpack.c.l.b16 %v243
      %v541 = vunpack.c.h.b16 %v243
      %v542 = vunpack.c.l.b16 %v244
      %v543 = vunpack.c.h.b16 %v244
      %v544 = vunpack.c.l.b16 %v245
      %v545 = vunpack.c.h.b16 %v245
      %v546 = vunpack.c.l.b16 %v246
      %v547 = vunpack.c.h.b16 %v246
      %v548 = vunpack.c.l.b16 %v247
      %v549 = vunpack.c.h.b16 %v247
      %v550 = vunpack.c.l.b16 %v248
      %v551 = vunpack.c.h.b16 %v248
      %v552 = vunpack.c.l.b16 %v249
      %v553 = vunpack.c.h.b16 %v249
      %v554 = vunpack.c.l.b16 %v250
      %v555 = vunpack.c.h.b16 %v250
      %v556 = vunpack.c.l.b16 %v251
      %v557 = vunpack.c.h.b16 %v251
      %v558 = vunpack.c.l.b16 %v252
      %v559 = vunpack.c.h.b16 %v252
      %v560 = vunpack.c.l.b16 %v253
      %v561 = vunpack.c.h.b16 %v253
      %v562 = vunpack.c.l.b16 %v254
      %v563 = vunpack.c.h.b16 %v254
      %v564 = vunpack.c.l.b16 %v255
      %v565 = vunpack.c.h.b16 %v255
      %v566 = vunpack.c.l.b16 %v256
      %v567 = vunpack.c.h.b16 %v256
      %v568 = vunpack.c.l.b16 %v257
      %v569 = vunpack.c.h.b16 %v257
      %v570 = vunpack.c.l.b16 %v258
      %v571 = vunpack.c.h.b16 %v258
      %v572 = vunpack.c.l.b16 %v259
      %v573 = vunpack.c.h.b16 %v259
      %v574 = vunpack.c.l.b16 %v260
      %v575 = vunpack.c.h.b16 %v260
      %v576 = vunpack.c.l.b16 %v261
      %v577 = vunpack.c.h.b16 %v261
      %v578 = vunpack.c.l.b16 %v262
      %v579 = vunpack.c.h.b16 %v262
      %v580 = vunpack.c.l.b16 %v263
      %v581 = vunpack.c.h.b16 %v263
      %v582 = vunpack.c.l.b16 %v264
      %v583 = vunpack.c.h.b16 %v264
      %v584 = vunpack.c.l.b16 %v265
      %v585 = vunpack.c.h.b16 %v265
      %v586 = vunpack.c.l.b16 %v266
      %v587 = vunpack.c.h.b16 %v266
      %v588 = vunpack.c.l.b16 %v267
      %v589 = vunpack.c.h.b16 %v267
      %v590 = vunpack.c.l.b16 %v268
      %v591 = vunpack.c.h.b16 %v268
      %v592 = vunpack.c.l.b16 %v269
      %v593 = vunpack.c.h.b16 %v269
      %v594 = vunpack.c.l.b16 %v270
      %v595 = vunpack.c.h.b16 %v270
      %v596 = vunpack.c.l.b16 %v271
      %v597 = vunpack.c.h.b16 %v271
      %v598 = vunpack.c.l.b16 %v272
      %v599 = vunpack.c.h.b16 %v272
      %v600 = vunpack.c.l.b16 %v273
      %v601 = vunpack.c.h.b16 %v273
      %v602 = vunpack.c.l.b16 %v274
      %v603 = vunpack.c.h.b16 %v274
      %v604 = vunpack.c.l.b16 %v275
      %v605 = vunpack.c.h.b16 %v275
      %v606 = vunpack.c.l.b16 %v276
      %v607 = vunpack.c.h.b16 %v276
      %v608 = vunpack.c.l.b16 %v277
      %v609 = vunpack.c.h.b16 %v277
      %v610 = vunpack.c.l.b16 %v278
      %v611 = vunpack.c.h.b16 %v278
      %v612 = vunpack.c.l.b16 %v279
      %v613 = vunpack.c.h.b16 %v279
      %v614 = vunpack.c.l.b16 %v280
      %v615 = vunpack.c.h.b16 %v280
      %v616 = vunpack.c.l.b16 %v281
      %v617 = vunpack.c.h.b16 %v281
      %v618 = vunpack.c.l.b16 %v282
      %v619 = vunpack.c.h.b16 %v282
      %v620 = vunpack.c.l.b16 %v283
      %v621 = vunpack.c.h.b16 %v283
      %v622 = vunpack.c.l.b16 %v284
      %v623 = vunpack.c.h.b16 %v284
      %v624 = vunpack.c.l.b16 %v285
      %v625 = vunpack.c.h.b16 %v285
      %v626 = vunpack.c.l.b16 %v286
      %v627 = vunpack.c.h.b16 %v286
      %v628 = vunpack.c.l.b16 %v287
      %v629 = vunpack.c.h.b16 %v287
      %v630 = vunpack.c.l.b16 %v288
      %v631 = vunpack.c.h.b16 %v288
      %v632 = vunpack.c.l.b16 %v289
      %v633 = vunpack.c.h.b16 %v289
      %v634 = vunpack.c.l.b16 %v290
      %v635 = vunpack.c.h.b16 %v290
      %v636 = vunpack.c.l.b16 %v291
      %v637 = vunpack.c.h.b16 %v291
      %v638 = vunpack.c.l.b16 %v292
      %v639 = vunpack.c.h.b16 %v292
      %v640 = vunpack.c.l.b16 %v293
      %v641 = vunpack.c.h.b16 %v293
      %v642 = vunpack.c.l.b16 %v294
      %v643 = vunpack.c.h.b16 %v294
      %v644 = vunpack.c.l.b16 %v295
      %v645 = vunpack.c.h.b16 %v295
      %v646 = vunpack.c.l.b16 %v296
      %v647 = vunpack.c.h.b16 %v296
      %v648 = vunpack.c.l.b16 %v297
      %v649 = vunpack.c.h.b16 %v297
      %v650 = vunpack.c.l.b16 %v298
      %v651 = vunpack.c.h.b16 %v298
      %v652 = vunpack.c.l.b16 %v299
      %v653 = vunpack.c.h.b16 %v299
      %v654 = vunpack.c.l.b16 %v300
      %v655 = vunpack.c.h.b16 %v300
      %v656 = vunpack.c.l.b16 %v301
      %v657 = vunpack.c.h.b16 %v301
      %v658 = vunpack.c.l.b16 %v302
      %v659 = vunpack.c.h.b16 %v302
      %v660 = vunpack.c.l.b16 %v303
      %v661 = vunpack.c.h.b16 %v303
      %v662 = vunpack.c.l.b16 %v304
      %v663 = vunpack.c.h.b16 %v304
      %v664 = vunpack.c.l.b16 %v305
      %v665 = vunpack.c.h.b16 %v305
      %v666 = vunpack.c.l.b16 %v306
      %v667 = vunpack.c.h.b16 %v306
      %v668 = vunpack.c.l.b16 %v307
      %v669 = vunpack.c.h.b16 %v307
      %v670 = vunpack.c.l.b16 %v308
      %v671 = vunpack.c.h.b16 %v308
      %v672 = vunpack.c.l.b16 %v309
      %v673 = vunpack.c.h.b16 %v309
      %v674 = vunpack.c.l.b16 %v310
      %v675 = vunpack.c.h.b16 %v310
      %v676 = vunpack.c.l.b16 %v311
      %v677 = vunpack.c.h.b16 %v311
      %v678 = vunpack.c.l.b16 %v312
      %v679 = vunpack.c.h.b16 %v312
      %v680 = vunpack.c.l.b16 %v313
      %v681 = vunpack.c.h.b16 %v313
      %v682 = vunpack.c.l.b16 %v314
      %v683 = vunpack.c.h.b16 %v314
      %v684 = vunpack.c.l.b16 %v315
      %v685 = vunpack.c.h.b16 %v315
      %v686 = vunpack.c.l.b16 %v316
      %v687 = vunpack.c.h.b16 %v316
      %v688 = vunpack.c.l.b16 %v317
      %v689 = vunpack.c.h.b16 %v317
      %v690 = vunpack.c.l.b16 %v318
      %v691 = vunpack.c.h.b16 %v318
      %v692 = vunpack.c.l.b16 %v319
      %v693 = vunpack.c.h.b16 %v319
      %v694 = vunpack.c.l.b16 %v320
      %v695 = vunpack.c.h.b16 %v320
      %v696 = vpack.c.b16 %v462, %v456
      %v697 = vpack.c.b16 %v463, %v457
      %v698 = vpack.c.b16 %v464, %v458
      %v699 = vpack.c.b16 %v465, %v459
      %v700 = vpack.c.b16 %v466, %v460
      %v701 = vpack.c.b16 %v467, %v461
      %v702 = vpack.c.b16 %v474, %v468
      %v703 = vpack.c.b16 %v475, %v469
      %v704 = vpack.c.b16 %v476, %v470
      %v705 = vpack.c.b16 %v477, %v471
      %v706 = vpack.c.b16 %v478, %v472
      %v707 = vpack.c.b16 %v479, %v473
      %v708 = vpack.c.b16 %v486, %v480
      %v709 = vpack.c.b16 %v487, %v481
      %v710 = vpack.c.b16 %v488, %v482
      %v711 = vpack.c.b16 %v489, %v483
      %v712 = vpack.c.b16 %v490, %v484
      %v713 = vpack.c.b16 %v491, %v485
      %v714 = vpack.c.b16 %v498, %v492
      %v715 = vpack.c.b16 %v499, %v493
      %v716 = vpack.c.b16 %v500, %v494
      %v717 = vpack.c.b16 %v501, %v495
      %v718 = vpack.c.b16 %v502, %v496
      %v719 = vpack.c.b16 %v503, %v497
      %v720 = vpack.c.b16 %v510, %v504
      %v721 = vpack.c.b16 %v511, %v505
      %v722 = vpack.c.b16 %v512, %v506
      %v723 = vpack.c.b16 %v513, %v507
      %v724 = vpack.c.b16 %v514, %v508
      %v725 = vpack.c.b16 %v515, %v509
      %v726 = vpack.c.b16 %v522, %v516
      %v727 = vpack.c.b16 %v523, %v517
      %v728 = vpack.c.b16 %v524, %v518
      %v729 = vpack.c.b16 %v525, %v519
      %v730 = vpack.c.b16 %v526, %v520
      %v731 = vpack.c.b16 %v527, %v521
      %v732 = vpack.c.b16 %v534, %v528
      %v733 = vpack.c.b16 %v535, %v529
      %v734 = vpack.c.b16 %v536, %v530
      %v735 = vpack.c.b16 %v537, %v531
      %v736 = vpack.c.b16 %v538, %v532
      %v737 = vpack.c.b16 %v539, %v533
      %v738 = vpack.c.b16 %v546, %v540
      %v739 = vpack.c.b16 %v547, %v541
      %v740 = vpack.c.b16 %v548, %v542
      %v741 = vpack.c.b16 %v549, %v543
      %v742 = vpack.c.b16 %v550, %v544
      %v743 = vpack.c.b16 %v551, %v545
      %v744 = vpack.c.b16 %v558, %v552
      %v745 = vpack.c.b16 %v559, %v553
      %v746 = vpack.c.b16 %v560, %v554
      %v747 = vpack.c.b16 %v561, %v555
      %v748 = vpack.c.b16 %v562, %v556
      %v749 = vpack.c.b16 %v563, %v557
      %v750 = vpack.c.b16 %v570, %v564
      %v751 = vpack.c.b16 %v571, %v565
      %v752 = vpack.c.b16 %v572, %v566
      %v753 = vpack.c.b16 %v573, %v567
      %v754 = vpack.c.b16 %v574, %v568
      %v755 = vpack.c.b16 %v575, %v569
      %v756 = vpack.c.b16 %v582, %v576
      %v757 = vpack.c.b16 %v583, %v577
      %v758 = vpack.c.b16 %v584, %v578
      %v759 = vpack.c.b16 %v585, %v579
      %v760 = vpack.c.b16 %v586, %v580
      %v761 = vpack.c.b16 %v587, %v581
      %v762 = vpack.c.b16 %v594, %v588
      %v763 = vpack.c.b16 %v595, %v589
      %v764 = vpack.c.b16 %v596, %v590
      %v765 = vpack.c.b16 %v597, %v591
      %v766 = vpack.c.b16 %v598, %v592
      %v767 = vpack.c.b16 %v599, %v593
      %v768 = vpack.c.b16 %v606, %v600
      %v769 = vpack.c.b16 %v607, %v601
      %v770 = vpack.c.b16 %v608, %v602
      %v771 = vpack.c.b16 %v609, %v603
      %v772 = vpack.c.b16 %v610, %v604
      %v773 = vpack.c.b16 %v611, %v605
      %v774 = vpack.c.b16 %v618, %v612
      %v775 = vpack.c.b16 %v619, %v613
      %v776 = vpack.c.b16 %v620, %v614
      %v777 = vpack.c.b16 %v621, %v615
      %v778 = vpack.c.b16 %v622, %v616
      %v779 = vpack.c.b16 %v623, %v617
      %v780 = vpack.c.b16 %v630, %v624
      %v781 = vpack.c.b16 %v631, %v625
      %v782 = vpack.c.b16 %v632, %v626
      %v783 = vpack.c.b16 %v633, %v627
      %v784 = vpack.c.b16 %v634, %v628
      %v785 = vpack.c.b16 %v635, %v629
      %v786 = vpack.c.b16 %v642, %v636
      %v787 = vpack.c.b16 %v643, %v637
      %v788 = vpack.c.b16 %v644, %v638
      %v789 = vpack.c.b16 %v645, %v639
      %v790 = vpack.c.b16 %v646, %v640
      %v791 = vpack.c.b16 %v647, %v641
      %v792 = vpack.c.b16 %v654, %v648
      %v793 = vpack.c.b16 %v655, %v649
      %v794 = vpack.c.b16 %v656, %v650
      %v795 = vpack.c.b16 %v657, %v651
      %v796 = vpack.c.b16 %v658, %v652
      %v797 = vpack.c.b16 %v659, %v653
      %v798 = vpack.c.b16 %v666, %v660
      %v799 = vpack.c.b16 %v667, %v661
      %v800 = vpack.c.b16 %v668, %v662
      %v801 = vpack.c.b16 %v669, %v663
      %v802 = vpack.c.b16 %v670, %v664
      %v803 = vpack.c.b16 %v671, %v665
      %v804 = vpack.c.b16 %v678, %v672
      %v805 = vpack.c.b16 %v679, %v673
      %v806 = vpack.c.b16 %v680, %v674
      %v807 = vpack.c.b16 %v681, %v675
      %v808 = vpack.c.b16 %v682, %v676
      %v809 = vpack.c.b16 %v683, %v677
      %v810 = vpack.c.b16 %v690, %v684
      %v811 = vpack.c.b16 %v691, %v685
      %v812 = vpack.c.b16 %v692, %v686
      %v813 = vpack.c.b16 %v693, %v687
      %v814 = vpack.c.b16 %v694, %v688
      %v815 = vpack.c.b16 %v695, %v689
      %vm936 = vcmask 523264
      %v938 = vsel %vm936, %v333, 0
      %940 = vmatprep.subr.bf16.mxu0 %v697
      %941 = vmatpush1.bf16.msra.mxu0 %v696
      %942 = vmatprep.subr.bf16.mxu0 %v703
      %943 = vmatpush1.bf16.msra.mxu0 %v702
      %944 = vmatprep.subr.bf16.mxu0 %v709
      %945 = vmatpush1.bf16.msra.mxu0 %v708
      %946 = vmatprep.subr.bf16.mxu0 %v715
      %947 = vmatpush1.bf16.msra.mxu0 %v714
      %948 = vmatprep.subr.bf16.mxu0 %v721
      %949 = vmatpush1.bf16.msra.mxu0 %v720
      %950 = vmatprep.subr.bf16.mxu0 %v727
      %951 = vmatpush1.bf16.msra.mxu0 %v726
      %952 = vmatprep.subr.bf16.mxu0 %v733
      %953 = vmatpush1.bf16.msra.mxu0 %v732
      %954 = vmatprep.subr.bf16.mxu0 %v739
      %955 = vmatpush1.bf16.msra.mxu0 %v738
      %956 = vmatprep.subr.bf16.mxu0 %v745
      %957 = vmatpush1.bf16.msra.mxu0 %v744
      %958 = vmatprep.subr.bf16.mxu0 %v751
      %959 = vmatpush1.bf16.msra.mxu0 %v750
      %960 = vmatprep.subr.bf16.mxu0 %v757
      %961 = vmatpush1.bf16.msra.mxu0 %v756
      %962 = vmatprep.subr.bf16.mxu0 %v763
      %963 = vmatpush1.bf16.msra.mxu0 %v762
      %964 = vmatprep.subr.bf16.mxu0 %v769
      %965 = vmatpush1.bf16.msra.mxu0 %v768
      %966 = vmatprep.subr.bf16.mxu0 %v775
      %967 = vmatpush1.bf16.msra.mxu0 %v774
      %968 = vmatprep.subr.bf16.mxu0 %v781
      %969 = vmatpush1.bf16.msra.mxu0 %v780
      %970 = vmatprep.subr.bf16.mxu0 %v787
      %971 = vmatpush1.bf16.msra.mxu0 %v786
      %972 = vmatprep.mubr.bf16.mxu0 %v332
      %973 = vmatmul.mubr.bf16.gmra.mrb[0].mxu0 %v331
      %v974 = vpop.f32.mrb[0].mxu0
      %v975 = vadd.f32 0.0, %v974
      %v976 = vpop.f32.mrb[0].mxu0
      %v977 = vadd.f32 0.0, %v976
      %v978 = vpop.f32.mrb[0].mxu0
      %v979 = vadd.f32 0.0, %v978
      %v980 = vpop.f32.mrb[0].mxu0
      %v981 = vadd.f32 0.0, %v980
      %982 = vdwg.mxu0
      %983 = vmatprep.subr.bf16.mxu0 %v793
      %984 = vmatpush1.bf16.msra.mxu0 %v792
      %985 = vmatprep.subr.bf16.mxu0 %v799
      %986 = vmatpush1.bf16.msra.mxu0 %v798
      %987 = vmatprep.subr.bf16.mxu0 %v805
      %988 = vmatpush1.bf16.msra.mxu0 %v804
      %989 = vmatprep.subr.bf16.mxu0 %v811
      %990 = vmatpush1.bf16.msra.mxu0 %v810
      %991 = vmatprep.subr.bf16.mxu0 0
      %992 = vmatpush1.bf16.msra.mxu0 0
      %993 = vmatprep.subr.bf16.mxu0 0
      %994 = vmatpush1.bf16.msra.mxu0 0
      %995 = vmatprep.subr.bf16.mxu0 0
      %996 = vmatpush1.bf16.msra.mxu0 0
      %997 = vmatprep.subr.bf16.mxu0 0
      %998 = vmatpush1.bf16.msra.mxu0 0
      %999 = vmatprep.subr.bf16.mxu0 0
      %1000 = vmatpush1.bf16.msra.mxu0 0
      %1001 = vmatprep.subr.bf16.mxu0 0
      %1002 = vmatpush1.bf16.msra.mxu0 0
      %1003 = vmatprep.subr.bf16.mxu0 0
      %1004 = vmatpush1.bf16.msra.mxu0 0
      %1005 = vmatprep.subr.bf16.mxu0 0
      %1006 = vmatpush1.bf16.msra.mxu0 0
      %1007 = vmatprep.subr.bf16.mxu0 0
      %1008 = vmatpush1.bf16.msra.mxu0 0
      %1009 = vmatprep.subr.bf16.mxu0 0
      %1010 = vmatpush1.bf16.msra.mxu0 0
      %1011 = vmatprep.subr.bf16.mxu0 0
      %1012 = vmatpush1.bf16.msra.mxu0 0
      %1013 = vmatprep.subr.bf16.mxu0 0
      %1014 = vmatpush1.bf16.msra.mxu0 0
      %1015 = vmatprep.mubr.bf16.mxu0 0
      %1016 = vmatmul.mubr.bf16.gmra.mrb[0].mxu0 %v938
      %v1017 = vpop.f32.mrb[0].mxu0
      %v1018 = vadd.f32 %v975, %v1017
      %v1019 = vpop.f32.mrb[0].mxu0
      %v1020 = vadd.f32 %v977, %v1019
      %v1021 = vpop.f32.mrb[0].mxu0
      %v1022 = vadd.f32 %v979, %v1021
      %v1023 = vpop.f32.mrb[0].mxu0
      %v1024 = vadd.f32 %v981, %v1023
      %1025 = vdwg.mxu0
      %1026 = vmatprep.subr.bf16.mxu0 %v699
      %1027 = vmatpush1.bf16.msra.mxu0 %v698
      %1028 = vmatprep.subr.bf16.mxu0 %v705
      %1029 = vmatpush1.bf16.msra.mxu0 %v704
      %1030 = vmatprep.subr.bf16.mxu0 %v711
      %1031 = vmatpush1.bf16.msra.mxu0 %v710
      %1032 = vmatprep.subr.bf16.mxu0 %v717
      %1033 = vmatpush1.bf16.msra.mxu0 %v716
      %1034 = vmatprep.subr.bf16.mxu0 %v723
      %1035 = vmatpush1.bf16.msra.mxu0 %v722
      %1036 = vmatprep.subr.bf16.mxu0 %v729
      %1037 = vmatpush1.bf16.msra.mxu0 %v728
      %1038 = vmatprep.subr.bf16.mxu0 %v735
      %1039 = vmatpush1.bf16.msra.mxu0 %v734
      %1040 = vmatprep.subr.bf16.mxu0 %v741
      %1041 = vmatpush1.bf16.msra.mxu0 %v740
      %1042 = vmatprep.subr.bf16.mxu0 %v747
      %1043 = vmatpush1.bf16.msra.mxu0 %v746
      %1044 = vmatprep.subr.bf16.mxu0 %v753
      %1045 = vmatpush1.bf16.msra.mxu0 %v752
      %1046 = vmatprep.subr.bf16.mxu0 %v759
      %1047 = vmatpush1.bf16.msra.mxu0 %v758
      %1048 = vmatprep.subr.bf16.mxu0 %v765
      %1049 = vmatpush1.bf16.msra.mxu0 %v764
      %1050 = vmatprep.subr.bf16.mxu0 %v771
      %1051 = vmatpush1.bf16.msra.mxu0 %v770
      %1052 = vmatprep.subr.bf16.mxu0 %v777
      %1053 = vmatpush1.bf16.msra.mxu0 %v776
      %1054 = vmatprep.subr.bf16.mxu0 %v783
      %1055 = vmatpush1.bf16.msra.mxu0 %v782
      %1056 = vmatprep.subr.bf16.mxu0 %v789
      %1057 = vmatpush1.bf16.msra.mxu0 %v788
      %1058 = vmatprep.mubr.bf16.mxu0 %v332
      %1059 = vmatmul.mubr.bf16.gmra.mrb[0].mxu0 %v331
      %v1060 = vpop.f32.mrb[0].mxu0
      %v1061 = vadd.f32 0.0, %v1060
      %v1062 = vpop.f32.mrb[0].mxu0
      %v1063 = vadd.f32 0.0, %v1062
      %v1064 = vpop.f32.mrb[0].mxu0
      %v1065 = vadd.f32 0.0, %v1064
      %v1066 = vpop.f32.mrb[0].mxu0
      %v1067 = vadd.f32 0.0, %v1066
      %1068 = vdwg.mxu0
      %1069 = vmatprep.subr.bf16.mxu0 %v795
      %1070 = vmatpush1.bf16.msra.mxu0 %v794
      %1071 = vmatprep.subr.bf16.mxu0 %v801
      %1072 = vmatpush1.bf16.msra.mxu0 %v800
      %1073 = vmatprep.subr.bf16.mxu0 %v807
      %1074 = vmatpush1.bf16.msra.mxu0 %v806
      %1075 = vmatprep.subr.bf16.mxu0 %v813
      %1076 = vmatpush1.bf16.msra.mxu0 %v812
      %1077 = vmatprep.subr.bf16.mxu0 0
      %1078 = vmatpush1.bf16.msra.mxu0 0
      %1079 = vmatprep.subr.bf16.mxu0 0
      %1080 = vmatpush1.bf16.msra.mxu0 0
      %1081 = vmatprep.subr.bf16.mxu0 0
      %1082 = vmatpush1.bf16.msra.mxu0 0
      %1083 = vmatprep.subr.bf16.mxu0 0
      %1084 = vmatpush1.bf16.msra.mxu0 0
      %1085 = vmatprep.subr.bf16.mxu0 0
      %1086 = vmatpush1.bf16.msra.mxu0 0
      %1087 = vmatprep.subr.bf16.mxu0 0
      %1088 = vmatpush1.bf16.msra.mxu0 0
      %1089 = vmatprep.subr.bf16.mxu0 0
      %1090 = vmatpush1.bf16.msra.mxu0 0
      %1091 = vmatprep.subr.bf16.mxu0 0
      %1092 = vmatpush1.bf16.msra.mxu0 0
      %1093 = vmatprep.subr.bf16.mxu0 0
      %1094 = vmatpush1.bf16.msra.mxu0 0
      %1095 = vmatprep.subr.bf16.mxu0 0
      %1096 = vmatpush1.bf16.msra.mxu0 0
      %1097 = vmatprep.subr.bf16.mxu0 0
      %1098 = vmatpush1.bf16.msra.mxu0 0
      %1099 = vmatprep.subr.bf16.mxu0 0
      %1100 = vmatpush1.bf16.msra.mxu0 0
      %1101 = vmatprep.mubr.bf16.mxu0 0
      %1102 = vmatmul.mubr.bf16.gmra.mrb[0].mxu0 %v938
      %v1103 = vpop.f32.mrb[0].mxu0
      %v1104 = vadd.f32 %v1061, %v1103
      %v1105 = vpop.f32.mrb[0].mxu0
      %v1106 = vadd.f32 %v1063, %v1105
      %v1107 = vpop.f32.mrb[0].mxu0
      %v1108 = vadd.f32 %v1065, %v1107
      %v1109 = vpop.f32.mrb[0].mxu0
      %v1110 = vadd.f32 %v1067, %v1109
      %1111 = vdwg.mxu0
      %1112 = vmatprep.subr.bf16.mxu0 %v701
      %1113 = vmatpush1.bf16.msra.mxu0 %v700
      %1114 = vmatprep.subr.bf16.mxu0 %v707
      %1115 = vmatpush1.bf16.msra.mxu0 %v706
      %1116 = vmatprep.subr.bf16.mxu0 %v713
      %1117 = vmatpush1.bf16.msra.mxu0 %v712
      %1118 = vmatprep.subr.bf16.mxu0 %v719
      %1119 = vmatpush1.bf16.msra.mxu0 %v718
      %1120 = vmatprep.subr.bf16.mxu0 %v725
      %1121 = vmatpush1.bf16.msra.mxu0 %v724
      %1122 = vmatprep.subr.bf16.mxu0 %v731
      %1123 = vmatpush1.bf16.msra.mxu0 %v730
      %1124 = vmatprep.subr.bf16.mxu0 %v737
      %1125 = vmatpush1.bf16.msra.mxu0 %v736
      %1126 = vmatprep.subr.bf16.mxu0 %v743
      %1127 = vmatpush1.bf16.msra.mxu0 %v742
      %1128 = vmatprep.subr.bf16.mxu0 %v749
      %1129 = vmatpush1.bf16.msra.mxu0 %v748
      %1130 = vmatprep.subr.bf16.mxu0 %v755
      %1131 = vmatpush1.bf16.msra.mxu0 %v754
      %1132 = vmatprep.subr.bf16.mxu0 %v761
      %1133 = vmatpush1.bf16.msra.mxu0 %v760
      %1134 = vmatprep.subr.bf16.mxu0 %v767
      %1135 = vmatpush1.bf16.msra.mxu0 %v766
      %1136 = vmatprep.subr.bf16.mxu0 %v773
      %1137 = vmatpush1.bf16.msra.mxu0 %v772
      %1138 = vmatprep.subr.bf16.mxu0 %v779
      %1139 = vmatpush1.bf16.msra.mxu0 %v778
      %1140 = vmatprep.subr.bf16.mxu0 %v785
      %1141 = vmatpush1.bf16.msra.mxu0 %v784
      %1142 = vmatprep.subr.bf16.mxu0 %v791
      %1143 = vmatpush1.bf16.msra.mxu0 %v790
      %1144 = vmatprep.mubr.bf16.mxu0 %v332
      %1145 = vmatmul.mubr.bf16.gmra.mrb[0].mxu0 %v331
      %v1146 = vpop.f32.mrb[0].mxu0
      %v1147 = vadd.f32 0.0, %v1146
      %v1148 = vpop.f32.mrb[0].mxu0
      %v1149 = vadd.f32 0.0, %v1148
      %v1150 = vpop.f32.mrb[0].mxu0
      %v1151 = vadd.f32 0.0, %v1150
      %v1152 = vpop.f32.mrb[0].mxu0
      %v1153 = vadd.f32 0.0, %v1152
      %1154 = vdwg.mxu0
      %1155 = vmatprep.subr.bf16.mxu0 %v797
      %1156 = vmatpush1.bf16.msra.mxu0 %v796
      %1157 = vmatprep.subr.bf16.mxu0 %v803
      %1158 = vmatpush1.bf16.msra.mxu0 %v802
      %1159 = vmatprep.subr.bf16.mxu0 %v809
      %1160 = vmatpush1.bf16.msra.mxu0 %v808
      %1161 = vmatprep.subr.bf16.mxu0 %v815
      %1162 = vmatpush1.bf16.msra.mxu0 %v814
      %1163 = vmatprep.subr.bf16.mxu0 0
      %1164 = vmatpush1.bf16.msra.mxu0 0
      %1165 = vmatprep.subr.bf16.mxu0 0
      %1166 = vmatpush1.bf16.msra.mxu0 0
      %1167 = vmatprep.subr.bf16.mxu0 0
      %1168 = vmatpush1.bf16.msra.mxu0 0
      %1169 = vmatprep.subr.bf16.mxu0 0
      %1170 = vmatpush1.bf16.msra.mxu0 0
      %1171 = vmatprep.subr.bf16.mxu0 0
      %1172 = vmatpush1.bf16.msra.mxu0 0
      %1173 = vmatprep.subr.bf16.mxu0 0
      %1174 = vmatpush1.bf16.msra.mxu0 0
      %1175 = vmatprep.subr.bf16.mxu0 0
      %1176 = vmatpush1.bf16.msra.mxu0 0
      %1177 = vmatprep.subr.bf16.mxu0 0
      %1178 = vmatpush1.bf16.msra.mxu0 0
      %1179 = vmatprep.subr.bf16.mxu0 0
      %1180 = vmatpush1.bf16.msra.mxu0 0
      %1181 = vmatprep.subr.bf16.mxu0 0
      %1182 = vmatpush1.bf16.msra.mxu0 0
      %1183 = vmatprep.subr.bf16.mxu0 0
      %1184 = vmatpush1.bf16.msra.mxu0 0
      %1185 = vmatprep.subr.bf16.mxu0 0
      %1186 = vmatpush1.bf16.msra.mxu0 0
      %1187 = vmatprep.mubr.bf16.mxu0 0
      %1188 = vmatmul.mubr.bf16.gmra.mrb[0].mxu0 %v938
      %v1189 = vpop.f32.mrb[0].mxu0
      %v1190 = vadd.f32 %v1147, %v1189
      %v1191 = vpop.f32.mrb[0].mxu0
      %v1192 = vadd.f32 %v1149, %v1191
      %v1193 = vpop.f32.mrb[0].mxu0
      %v1194 = vadd.f32 %v1151, %v1193
      %v1195 = vpop.f32.mrb[0].mxu0
      %v1196 = vadd.f32 %v1153, %v1195
      %1197 = vdwg.mxu0
      %vm1202 = vcmask 1042432
      %v1203 = vrot.slane %v1104, 5
      %v1204 = vrot.slane %v1108, 5
      %v1205 = vsel %vm1202, %v1203, %v1204
      %v1206 = vrot.slane %v1106, 5
      %v1207 = vrot.slane %v1110, 5
      %v1208 = vsel %vm1202, %v1206, %v1207
      %v1211 = vadd.f32 %v1018, %v1205
      %v1212 = vadd.f32 %v1020, %v1208
      %v1215 = vrot.slane %v1190, 1
      %v1216 = vrot.slane %v1192, 1
      %v1219 = vadd.f32 %v1211, %v1215
      %v1220 = vadd.f32 %v1212, %v1216
      %v1221 = vrot.slane %v1104, 4
      %v1222 = vrot.slane %v1106, 4
      %v1225 = vadd.f32 %v1018, %v1221
      %v1226 = vadd.f32 %v1020, %v1222
      %v1227 = vadd.f32 %v1022, %v1221
      %v1228 = vadd.f32 %v1024, %v1222
      %vm1231 = vcmask 1046528
      %v1232 = vrot.slane %v1194, 1
      %v1233 = vsel %vm1231, %v1215, %v1232
      %v1234 = vrot.slane %v1196, 1
      %v1235 = vsel %vm1231, %v1216, %v1234
      %v1240 = vadd.f32 %v1225, %v1233
      %v1241 = vadd.f32 %v1226, %v1235
      %v1242 = vadd.f32 %v1227, %v1232
      %v1243 = vadd.f32 %v1228, %v1234
      %v1244 = vld [vmem:[%s2] sm:$0x3]
      %v1245 = vld [vmem:[%s3] sm:$0x3]
      %v1247 = vlaneseq
      %v1248 = vshrl.u32 %v1247, 7
      %v1249 = vsub.s32 0, %v1248
      %v1250 = vrot.slane %v1244, %v1249
      %v1251 = vlaneseq
      %v1252 = vshrl.u32 %v1251, 7
      %v1253 = vsub.s32 1, %v1252
      %v1254 = vrot.slane %v1244, %v1253
      %v1257 = vmul.f32 %v1219, %v1250
      %v1258 = vmul.f32 %v1220, %v1254
      %v1260 = vlaneseq
      %v1261 = vshrl.u32 %v1260, 7
      %v1262 = vsub.s32 0, %v1261
      %v1263 = vrot.slane %v1245, %v1262
      %v1264 = vlaneseq
      %v1265 = vshrl.u32 %v1264, 7
      %v1266 = vsub.s32 1, %v1265
      %v1267 = vrot.slane %v1245, %v1266
      %v1270 = vadd.f32 %v1257, %v1263
      %v1271 = vadd.f32 %v1258, %v1267
      %v1272 = vmax.f32 %v1270, 0.0
      %v1273 = vmax.f32 %v1271, 0.0
      %v1274 = vmul.f32 %v1240, %v1250
      %v1275 = vmul.f32 %v1241, %v1254
      %v1276 = vmul.f32 %v1242, %v1250
      %v1277 = vmul.f32 %v1243, %v1254
      %v1278 = vadd.f32 %v1274, %v1263
      %v1279 = vadd.f32 %v1275, %v1267
      %v1280 = vadd.f32 %v1276, %v1263
      %v1281 = vadd.f32 %v1277, %v1267
      %v1282 = vmax.f32 %v1278, 0.0
      %v1283 = vmax.f32 %v1279, 0.0
      %v1284 = vmax.f32 %v1280, 0.0
      %v1285 = vmax.f32 %v1281, 0.0
      %v1290 = vrot.slane %v1282, 5
      %v1291 = vrot.slane %v1284, 5
      %v1292 = vsel %vm1202, %v1290, %v1291
      %v1293 = vrot.slane %v1283, 5
      %v1294 = vrot.slane %v1285, 5
      %v1295 = vsel %vm1202, %v1293, %v1294
      %v1298 = vmax.f32 %v1272, %v1292
      %v1299 = vmax.f32 %v1273, %v1295
      %v1300 = vmax.f32 %v1298, %v1299
      %v1301 = vpack.c.bf16 %v1300, %v1300
      %1302 = vst [vmem:[%s195] sm:$0x3] %v1301
      %p1303 = scmp.lt.s32.totalorder %s15, 1
      %s1304 = scalar_select %p1303, %s15, 1
      %s1305 = smul.addr %s1304, 2
      %s1306 = scalar_lea.vmem %s4, %s1305
      // Predicated region
      $region37: #{_lambda_.5} parent=35 // pred_check
        %p1307 = pneg %p122
      $region38: #{_lambda_.5} parent=35 // pred_check_branch
        %1309 = sbr.rel (%p1307) target = $region40
      $region39: #{_lambda_.5} parent=35 // pred_region
        _
      $region40: #{_lambda_.5} parent=35 // pred_fallthru
        _
    $region36: #{_lambda_.5} parent=5 // pred_fallthru
      _
    %p1310 = scmp.le.s32.totalorder 2, %s10
    // Predicated region
    $region41: #{_lambda_.5} parent=5 // pred_check
      %p1311 = pneg %p1310
    $region42: #{_lambda_.5} parent=5 // pred_check_branch
      %1313 = sbr.rel (%p1311) target = $region44
    $region43: #{_lambda_.5} parent=5 // pred_region
      %s1314 = ssub.s32 %s10, 2
      // Predicated region
      $region45: #{_lambda_.5} parent=43 // pred_check
        %p1315 = pneg %p128
      $region46: #{_lambda_.5} parent=43 // pred_check_branch
        %1317 = sbr.rel (%p1315) target = $region48
      $region47: #{_lambda_.5} parent=43 // pred_region
        %p1318 = scmp.lt.s32.totalorder %s16, 1
        %s1319 = scalar_select %p1318, %s16, 1
        %s1320 = smul.addr %s1319, 2
        %s1321 = scalar_lea.vmem %s4, %s1320
      $region48: #{_lambda_.5} parent=43 // pred_fallthru
        _
    $region44: #{_lambda_.5} parent=5 // pred_fallthru
      _
  $region6: #{_lambda_.5} parent=0 // loop_footer
    %s14 = sadd.s32 1, %s10
  $region7: #{_lambda_.5} parent=0 // loop_footer_branch
    %9 = sbr.rel target = $region3
  $region8: #{_lambda_.5} parent=0 // loop_exit
    _

// kernel: _lambda_.6
$region0: #{_lambda_.6}
  #allocation0 [shape = 'u32[]', space=smem, size = 0x4, offset = 0x4, fixed_abs, tag = 'smem constant byte address 0x4 - core index']
  #allocation1 [shape = 'u32[144,128]{1,0:T(1,128)}', space=vmem, size = 0x12000, scoped, tag = 'internal scratch']
  %s0 = inlined_call_operand.vmem [shape: bf16[2,6,192], index: 0, kind: input, shape index: {}]
  %s1 = inlined_call_operand.vmem [shape: bf16[192,384], index: 1, kind: input, shape index: {}]
  %s2 = inlined_call_operand.vmem [shape: f32[1,128], index: 2, kind: input, shape index: {}]
  %s3 = inlined_call_operand.vmem [shape: f32[1,128], index: 3, kind: input, shape index: {}]
  %s4 = inlined_call_operand.vmem [shape: bf16[2,2,64], index: 4, kind: output, shape index: {}]
  %s5 = sld [smem:[#allocation0]]
  $region49: #{_lambda_.6} parent=0
    _
  %s7 = ssub.s32 1, %s5
  %s8 = scalar_select 0, %s7, %s5
  loop: start=0, step=1, limit=4
  $region2: #{_lambda_.6} parent=0 // loop_pre_header
    _
  $region3: #{_lambda_.6} parent=0 // loop_header
    %s10 = sphi 0, %s14
    %p11 = scmp.ge.s32.totalorder %s10, 4
    %s20 = sphi 0, %s22
    %s23 = sphi 0, %s20
    %s24 = sphi 0, %s23
    %s40 = sphi 0, %s24
    %s44 = sphi 0, %s44
    %s46 = sphi 0, %s44
    %s47 = sphi 0, %s46
    %s61 = sphi 0, %s47
    %s65 = sphi 0, %s65
    %s67 = sphi 0, %s65
    %s68 = sphi 0, %s67
    %s82 = sphi 0, %s68
    %s86 = sphi 0, %s86
    %s88 = sphi 0, %s86
    %s89 = sphi 0, %s88
    %s103 = sphi 0, %s89
    %s109 = sphi 0, %s111
    %s112 = sphi 0, %s109
    %s113 = sphi 0, %s112
    %s129 = sphi 0, %s113
  $region4: #{_lambda_.6} parent=0 // loop_header_branch
    %13 = sbr.rel (%p11) target = $region8
  $region5: #{_lambda_.6} parent=0 // loop_body
    %s15 = ssub.s32 %s10, 1
    %s16 = ssub.s32 %s10, 2
    %s17 = sadd.s32 %s10, 1
    %s18 = ssub.s32 %s10, %s17
    %p19 = scmp.eq.s32.totalorder %s18, 0
    %s21 = sadd.s32 %s20, 1
    %s22 = scalar_select %p19, %s20, %s21
    %p25 = pneg %p19
    %p26 = scmp.eq.s32.totalorder %s10, 1
    %p27 = por %p25, %p26
    %p28 = scmp.ne.s32.totalorder %s20, %s23
    %p29 = scmp.eq.s32.totalorder %s10, 0
    %p30 = por %p28, %p29
    %p31 = scmp.ne.s32.totalorder %s20, %s23
    %p32 = scmp.eq.s32.totalorder %s15, 1
    %p33 = por %p31, %p32
    %p34 = scmp.ne.s32.totalorder %s23, %s24
    %p35 = scmp.eq.s32.totalorder %s15, 0
    %p36 = por %p34, %p35
    %p37 = scmp.ne.s32.totalorder %s23, %s24
    %p38 = scmp.eq.s32.totalorder %s16, 1
    %p39 = por %p37, %p38
    %p41 = scmp.ne.s32.totalorder %s24, %s40
    %p42 = scmp.eq.s32.totalorder %s16, 0
    %p43 = por %p41, %p42
    %s45 = sadd.s32 %s44, 1
    %p48 = scmp.eq.s32.totalorder %s10, 1
    %p49 = scmp.ne.s32.totalorder %s44, %s46
    %p50 = scmp.eq.s32.totalorder %s10, 0
    %p51 = por %p49, %p50
    %p52 = scmp.ne.s32.totalorder %s44, %s46
    %p53 = scmp.eq.s32.totalorder %s15, 1
    %p54 = por %p52, %p53
    %p55 = scmp.ne.s32.totalorder %s46, %s47
    %p56 = scmp.eq.s32.totalorder %s15, 0
    %p57 = por %p55, %p56
    %p58 = scmp.ne.s32.totalorder %s46, %s47
    %p59 = scmp.eq.s32.totalorder %s16, 1
    %p60 = por %p58, %p59
    %p62 = scmp.ne.s32.totalorder %s47, %s61
    %p63 = scmp.eq.s32.totalorder %s16, 0
    %p64 = por %p62, %p63
    %s66 = sadd.s32 %s65, 1
    %p69 = scmp.eq.s32.totalorder %s10, 1
    %p70 = scmp.ne.s32.totalorder %s65, %s67
    %p71 = scmp.eq.s32.totalorder %s10, 0
    %p72 = por %p70, %p71
    %p73 = scmp.ne.s32.totalorder %s65, %s67
    %p74 = scmp.eq.s32.totalorder %s15, 1
    %p75 = por %p73, %p74
    %p76 = scmp.ne.s32.totalorder %s67, %s68
    %p77 = scmp.eq.s32.totalorder %s15, 0
    %p78 = por %p76, %p77
    %p79 = scmp.ne.s32.totalorder %s67, %s68
    %p80 = scmp.eq.s32.totalorder %s16, 1
    %p81 = por %p79, %p80
    %p83 = scmp.ne.s32.totalorder %s68, %s82
    %p84 = scmp.eq.s32.totalorder %s16, 0
    %p85 = por %p83, %p84
    %s87 = sadd.s32 %s86, 1
    %p90 = scmp.eq.s32.totalorder %s10, 1
    %p91 = scmp.ne.s32.totalorder %s86, %s88
    %p92 = scmp.eq.s32.totalorder %s10, 0
    %p93 = por %p91, %p92
    %p94 = scmp.ne.s32.totalorder %s86, %s88
    %p95 = scmp.eq.s32.totalorder %s15, 1
    %p96 = por %p94, %p95
    %p97 = scmp.ne.s32.totalorder %s88, %s89
    %p98 = scmp.eq.s32.totalorder %s15, 0
    %p99 = por %p97, %p98
    %p100 = scmp.ne.s32.totalorder %s88, %s89
    %p101 = scmp.eq.s32.totalorder %s16, 1
    %p102 = por %p100, %p101
    %p104 = scmp.ne.s32.totalorder %s89, %s103
    %p105 = scmp.eq.s32.totalorder %s16, 0
    %p106 = por %p104, %p105
    %s107 = ssub.s32 %s10, %s17
    %p108 = scmp.eq.s32.totalorder %s107, 0
    %s110 = sadd.s32 %s109, 1
    %s111 = scalar_select %p108, %s109, %s110
    %p114 = pneg %p108
    %p115 = scmp.eq.s32.totalorder %s10, 1
    %p116 = por %p114, %p115
    %p117 = scmp.ne.s32.totalorder %s109, %s112
    %p118 = scmp.eq.s32.totalorder %s10, 0
    %p119 = por %p117, %p118
    %p120 = scmp.ne.s32.totalorder %s109, %s112
    %p121 = scmp.eq.s32.totalorder %s15, 1
    %p122 = por %p120, %p121
    %p123 = scmp.ne.s32.totalorder %s112, %s113
    %p124 = scmp.eq.s32.totalorder %s15, 0
    %p125 = por %p123, %p124
    %p126 = scmp.ne.s32.totalorder %s112, %s113
    %p127 = scmp.eq.s32.totalorder %s16, 1
    %p128 = por %p126, %p127
    %p130 = scmp.ne.s32.totalorder %s113, %s129
    %p131 = scmp.eq.s32.totalorder %s16, 0
    %p132 = por %p130, %p131
    %p133 = scmp.le.s32.totalorder 1, %s10
    %p134 = scmp.lt.s32.totalorder %s10, 3
    %p135 = pnand %p133, %p134
    %p136 = pneg %p135
    // Predicated region
    $region9: #{_lambda_.6} parent=5 // pred_check
      _
    $region10: #{_lambda_.6} parent=5 // pred_check_branch
      %138 = sbr.rel (%p135) target = $region12
    $region11: #{_lambda_.6} parent=5 // pred_region
      %s139 = ssub.s32 %s10, 1
      // Predicated region
      $region13: #{_lambda_.6} parent=11 // pred_check
        %p140 = pneg %p57
      $region14: #{_lambda_.6} parent=11 // pred_check_branch
        %142 = sbr.rel (%p140) target = $region16
      $region15: #{_lambda_.6} parent=11 // pred_region
        _
      $region16: #{_lambda_.6} parent=11 // pred_fallthru
        _
      // Predicated region
      $region17: #{_lambda_.6} parent=11 // pred_check
        %p143 = pneg %p78
      $region18: #{_lambda_.6} parent=11 // pred_check_branch
        %145 = sbr.rel (%p143) target = $region20
      $region19: #{_lambda_.6} parent=11 // pred_region
        _
      $region20: #{_lambda_.6} parent=11 // pred_fallthru
        _
      // Predicated region
      $region21: #{_lambda_.6} parent=11 // pred_check
        %p146 = pneg %p99
      $region22: #{_lambda_.6} parent=11 // pred_check_branch
        %148 = sbr.rel (%p146) target = $region24
      $region23: #{_lambda_.6} parent=11 // pred_region
        _
      $region24: #{_lambda_.6} parent=11 // pred_fallthru
        _
    $region12: #{_lambda_.6} parent=5 // pred_fallthru
      _
    %p149 = scmp.lt.s32.totalorder %s10, 2
    // Predicated region
    $region25: #{_lambda_.6} parent=5 // pred_check
      %p150 = pneg %p149
    $region26: #{_lambda_.6} parent=5 // pred_check_branch
      %152 = sbr.rel (%p150) target = $region28
    $region27: #{_lambda_.6} parent=5 // pred_region
      // Predicated region
      $region29: #{_lambda_.6} parent=27 // pred_check
        %p153 = pneg %p30
      $region30: #{_lambda_.6} parent=27 // pred_check_branch
        %155 = sbr.rel (%p153) target = $region32
      $region31: #{_lambda_.6} parent=27 // pred_region
        %p156 = scmp.lt.s32.totalorder %s10, 1
        %s157 = scalar_select %p156, %s10, 1
        %s158 = smul.addr %s157, 2
        %s159 = smul.addr %s158, 4
        %s160 = scalar_lea.vmem %s0, %s159
      $region32: #{_lambda_.6} parent=27 // pred_fallthru
        _
    $region28: #{_lambda_.6} parent=5 // pred_fallthru
      _
    %p161 = scmp.le.s32.totalorder 1, %s10
    %p162 = scmp.lt.s32.totalorder %s10, 3
    %p163 = pnand %p161, %p162
    %p164 = pneg %p163
    // Predicated region
    $region33: #{_lambda_.6} parent=5 // pred_check
      _
    $region34: #{_lambda_.6} parent=5 // pred_check_branch
      %166 = sbr.rel (%p163) target = $region36
    $region35: #{_lambda_.6} parent=5 // pred_region
      %s167 = ssub.s32 %s10, 1
      %p168 = scmp.lt.s32.totalorder %s15, 1
      %s169 = scalar_select %p168, %s15, 1
      %s170 = smul.addr %s169, 2
      %s171 = smul.addr %s170, 4
      %s172 = scalar_lea.vmem %s0, %s171
      %p173 = pneg %p36
      %p174 = pneg %p33
      %p175 = pneg %p57
      %p176 = pneg %p54
      %p177 = pneg %p78
      %p178 = pneg %p75
      %p179 = pneg %p99
      %p180 = pneg %p96
      %p181 = pneg %p125
      %p182 = pneg %p122
      %p183 = scmp.lt.s32.totalorder %s15, 1
      %s184 = scalar_select %p183, %s15, 1
      %s185 = scalar_lea.vmem %s4, %s184
      %p186 = scmp.lt.s32.totalorder %s15, 1
      %s187 = scalar_select %p186, %s15, 1
      %s188 = smul.addr %s187, 2
      %s189 = smul.addr %s188, 4
      %s190 = scalar_lea.vmem %s0, %s189
      %p191 = scmp.lt.s32.totalorder %s15, 1
      %s192 = scalar_select %p191, %s15, 1
      %s193 = scalar_lea.vmem %s4, %s192
      %v195 = vld [vmem:[%s190] sm:$0x77]
      %v196 = vld [vmem:[%s1] sm:$0xff]
      %v197 = vld [vmem:[%s1 + $0x8] sm:$0xf]
      %v198 = vld [vmem:[%s1 + $0xc] sm:$0xff]
      %v199 = vld [vmem:[%s1 + $0x14] sm:$0xf]
      %v200 = vld [vmem:[%s1 + $0x18] sm:$0xff]
      %v201 = vld [vmem:[%s1 + $0x20] sm:$0xf]
      %v202 = vld [vmem:[%s1 + $0x24] sm:$0xff]
      %v203 = vld [vmem:[%s1 + $0x2c] sm:$0xf]
      %v204 = vld [vmem:[%s1 + $0x30] sm:$0xff]
      %v205 = vld [vmem:[%s1 + $0x38] sm:$0xf]
      %v206 = vld [vmem:[%s1 + $0x3c] sm:$0xff]
      %v207 = vld [vmem:[%s1 + $0x44] sm:$0xf]
      %v208 = vld [vmem:[%s1 + $0x48] sm:$0xff]
      %v209 = vld [vmem:[%s1 + $0x50] sm:$0xf]
      %v210 = vld [vmem:[%s1 + $0x54] sm:$0xff]
      %v211 = vld [vmem:[%s1 + $0x5c] sm:$0xf]
      %v212 = vld [vmem:[%s1 + $0x60] sm:$0xff]
      %v213 = vld [vmem:[%s1 + $0x68] sm:$0xf]
      %v214 = vld [vmem:[%s1 + $0x6c] sm:$0xff]
      %v215 = vld [vmem:[%s1 + $0x74] sm:$0xf]
      %v216 = vld [vmem:[%s1 + $0x78] sm:$0xff]
      %v217 = vld [vmem:[%s1 + $0x80] sm:$0xf]
      %v218 = vld [vmem:[%s1 + $0x84] sm:$0xff]
      %v219 = vld [vmem:[%s1 + $0x8c] sm:$0xf]
      %v220 = vld [vmem:[%s1 + $0x90] sm:$0xff]
      %v221 = vld [vmem:[%s1 + $0x98] sm:$0xf]
      %v222 = vld [vmem:[%s1 + $0x9c] sm:$0xff]
      %v223 = vld [vmem:[%s1 + $0xa4] sm:$0xf]
      %v224 = vld [vmem:[%s1 + $0xa8] sm:$0xff]
      %v225 = vld [vmem:[%s1 + $0xb0] sm:$0xf]
      %v226 = vld [vmem:[%s1 + $0xb4] sm:$0xff]
      %v227 = vld [vmem:[%s1 + $0xbc] sm:$0xf]
      %v228 = vld [vmem:[%s1 + $0xc0] sm:$0xff]
      %v229 = vld [vmem:[%s1 + $0xc8] sm:$0xf]
      %v230 = vld [vmem:[%s1 + $0xcc] sm:$0xff]
      %v231 = vld [vmem:[%s1 + $0xd4] sm:$0xf]
      %v232 = vld [vmem:[%s1 + $0xd8] sm:$0xff]
      %v233 = vld [vmem:[%s1 + $0xe0] sm:$0xf]
      %v234 = vld [vmem:[%s1 + $0xe4] sm:$0xff]
      %v235 = vld [vmem:[%s1 + $0xec] sm:$0xf]
      %v236 = vld [vmem:[%s1 + $0xf0] sm:$0xff]
      %v237 = vld [vmem:[%s1 + $0xf8] sm:$0xf]
      %v238 = vld [vmem:[%s1 + $0xfc] sm:$0xff]
      %v239 = vld [vmem:[%s1 + $0x104] sm:$0xf]
      %v240 = vld [vmem:[%s1 + $0x108] sm:$0xff]
      %v241 = vld [vmem:[%s1 + $0x110] sm:$0xf]
      %v242 = vld [vmem:[%s1 + $0x114] sm:$0xff]
      %v243 = vld [vmem:[%s1 + $0x11c] sm:$0xf]
      %v245 = vunpack.c.l.b16 %v195
      %v246 = vunpack.c.h.b16 %v195
      %v247 = vpack.c.b16 %v245, %v245
      %v248 = vpack.c.b16 %v246, %v246
      %v298 = vunpack.c.l.b16 %v196
      %v299 = vunpack.c.h.b16 %v196
      %v300 = vunpack.c.l.b16 %v197
      %v301 = vunpack.c.l.b16 %v198
      %v302 = vunpack.c.h.b16 %v198
      %v303 = vunpack.c.l.b16 %v199
      %v304 = vunpack.c.l.b16 %v200
      %v305 = vunpack.c.h.b16 %v200
      %v306 = vunpack.c.l.b16 %v201
      %v307 = vunpack.c.l.b16 %v202
      %v308 = vunpack.c.h.b16 %v202
      %v309 = vunpack.c.l.b16 %v203
      %v310 = vunpack.c.l.b16 %v204
      %v311 = vunpack.c.h.b16 %v204
      %v312 = vunpack.c.l.b16 %v205
      %v313 = vunpack.c.l.b16 %v206
      %v314 = vunpack.c.h.b16 %v206
      %v315 = vunpack.c.l.b16 %v207
      %v316 = vunpack.c.l.b16 %v208
      %v317 = vunpack.c.h.b16 %v208
      %v318 = vunpack.c.l.b16 %v209
      %v319 = vunpack.c.l.b16 %v210
      %v320 = vunpack.c.h.b16 %v210
      %v321 = vunpack.c.l.b16 %v211
      %v322 = vunpack.c.l.b16 %v212
      %v323 = vunpack.c.h.b16 %v212
      %v324 = vunpack.c.l.b16 %v213
      %v325 = vunpack.c.l.b16 %v214
      %v326 = vunpack.c.h.b16 %v214
      %v327 = vunpack.c.l.b16 %v215
      %v328 = vunpack.c.l.b16 %v216
      %v329 = vunpack.c.h.b16 %v216
      %v330 = vunpack.c.l.b16 %v217
      %v331 = vunpack.c.l.b16 %v218
      %v332 = vunpack.c.h.b16 %v218
      %v333 = vunpack.c.l.b16 %v219
      %v334 = vunpack.c.l.b16 %v220
      %v335 = vunpack.c.h.b16 %v220
      %v336 = vunpack.c.l.b16 %v221
      %v337 = vunpack.c.l.b16 %v222
      %v338 = vunpack.c.h.b16 %v222
      %v339 = vunpack.c.l.b16 %v223
      %v340 = vunpack.c.l.b16 %v224
      %v341 = vunpack.c.h.b16 %v224
      %v342 = vunpack.c.l.b16 %v225
      %v343 = vunpack.c.l.b16 %v226
      %v344 = vunpack.c.h.b16 %v226
      %v345 = vunpack.c.l.b16 %v227
      %v346 = vunpack.c.l.b16 %v228
      %v347 = vunpack.c.h.b16 %v228
      %v348 = vunpack.c.l.b16 %v229
      %v349 = vunpack.c.l.b16 %v230
      %v350 = vunpack.c.h.b16 %v230
      %v351 = vunpack.c.l.b16 %v231
      %v352 = vunpack.c.l.b16 %v232
      %v353 = vunpack.c.h.b16 %v232
      %v354 = vunpack.c.l.b16 %v233
      %v355 = vunpack.c.l.b16 %v234
      %v356 = vunpack.c.h.b16 %v234
      %v357 = vunpack.c.l.b16 %v235
      %v358 = vunpack.c.l.b16 %v236
      %v359 = vunpack.c.h.b16 %v236
      %v360 = vunpack.c.l.b16 %v237
      %v361 = vunpack.c.l.b16 %v238
      %v362 = vunpack.c.h.b16 %v238
      %v363 = vunpack.c.l.b16 %v239
      %v364 = vunpack.c.l.b16 %v240
      %v365 = vunpack.c.h.b16 %v240
      %v366 = vunpack.c.l.b16 %v241
      %v367 = vunpack.c.l.b16 %v242
      %v368 = vunpack.c.h.b16 %v242
      %v369 = vunpack.c.l.b16 %v243
      %v370 = vpack.c.b16 %v301, %v298
      %v371 = vpack.c.b16 %v302, %v299
      %v372 = vpack.c.b16 %v303, %v300
      %v373 = vpack.c.b16 %v307, %v304
      %v374 = vpack.c.b16 %v308, %v305
      %v375 = vpack.c.b16 %v309, %v306
      %v376 = vpack.c.b16 %v313, %v310
      %v377 = vpack.c.b16 %v314, %v311
      %v378 = vpack.c.b16 %v315, %v312
      %v379 = vpack.c.b16 %v319, %v316
      %v380 = vpack.c.b16 %v320, %v317
      %v381 = vpack.c.b16 %v321, %v318
      %v382 = vpack.c.b16 %v325, %v322
      %v383 = vpack.c.b16 %v326, %v323
      %v384 = vpack.c.b16 %v327, %v324
      %v385 = vpack.c.b16 %v331, %v328
      %v386 = vpack.c.b16 %v332, %v329
      %v387 = vpack.c.b16 %v333, %v330
      %v388 = vpack.c.b16 %v337, %v334
      %v389 = vpack.c.b16 %v338, %v335
      %v390 = vpack.c.b16 %v339, %v336
      %v391 = vpack.c.b16 %v343, %v340
      %v392 = vpack.c.b16 %v344, %v341
      %v393 = vpack.c.b16 %v345, %v342
      %v394 = vpack.c.b16 %v349, %v346
      %v395 = vpack.c.b16 %v350, %v347
      %v396 = vpack.c.b16 %v351, %v348
      %v397 = vpack.c.b16 %v355, %v352
      %v398 = vpack.c.b16 %v356, %v353
      %v399 = vpack.c.b16 %v357, %v354
      %v400 = vpack.c.b16 %v361, %v358
      %v401 = vpack.c.b16 %v362, %v359
      %v402 = vpack.c.b16 %v363, %v360
      %v403 = vpack.c.b16 %v367, %v364
      %v404 = vpack.c.b16 %v368, %v365
      %v405 = vpack.c.b16 %v369, %v366
      %vm442 = vcmask 523264
      %v444 = vsel %vm442, %v248, 0
      %446 = vmatprep.subr.bf16.mxu0 %v371
      %447 = vmatpush1.bf16.msra.mxu0 %v370
      %448 = vmatprep.subr.bf16.mxu0 %v374
      %449 = vmatpush1.bf16.msra.mxu0 %v373
      %450 = vmatprep.subr.bf16.mxu0 %v377
      %451 = vmatpush1.bf16.msra.mxu0 %v376
      %452 = vmatprep.subr.bf16.mxu0 %v380
      %453 = vmatpush1.bf16.msra.mxu0 %v379
      %454 = vmatprep.subr.bf16.mxu0 %v383
      %455 = vmatpush1.bf16.msra.mxu0 %v382
      %456 = vmatprep.subr.bf16.mxu0 %v386
      %457 = vmatpush1.bf16.msra.mxu0 %v385
      %458 = vmatprep.subr.bf16.mxu0 %v389
      %459 = vmatpush1.bf16.msra.mxu0 %v388
      %460 = vmatprep.subr.bf16.mxu0 %v392
      %461 = vmatpush1.bf16.msra.mxu0 %v391
      %462 = vmatprep.subr.bf16.mxu0 %v395
      %463 = vmatpush1.bf16.msra.mxu0 %v394
      %464 = vmatprep.subr.bf16.mxu0 %v398
      %465 = vmatpush1.bf16.msra.mxu0 %v397
      %466 = vmatprep.subr.bf16.mxu0 %v401
      %467 = vmatpush1.bf16.msra.mxu0 %v400
      %468 = vmatprep.subr.bf16.mxu0 %v404
      %469 = vmatpush1.bf16.msra.mxu0 %v403
      %470 = vmatprep.subr.bf16.mxu0 0
      %471 = vmatpush1.bf16.msra.mxu0 0
      %472 = vmatprep.subr.bf16.mxu0 0
      %473 = vmatpush1.bf16.msra.mxu0 0
      %474 = vmatprep.subr.bf16.mxu0 0
      %475 = vmatpush1.bf16.msra.mxu0 0
      %476 = vmatprep.subr.bf16.mxu0 0
      %477 = vmatpush1.bf16.msra.mxu0 0
      %478 = vmatprep.mubr.bf16.mxu0 %v444
      %479 = vmatmul.mubr.bf16.gmra.mrb[0].mxu0 %v247
      %v480 = vpop.f32.mrb[0].mxu0
      %v481 = vadd.f32 0.0, %v480
      %v482 = vpop.f32.mrb[0].mxu0
      %v483 = vadd.f32 0.0, %v482
      %v484 = vpop.f32.mrb[0].mxu0
      %v485 = vpop.f32.mrb[0].mxu0
      %486 = vdwg.mxu0
      %487 = vmatprep.subr.bf16.mxu0 0
      %488 = vmatpush1.bf16.msra.mxu0 %v372
      %489 = vmatprep.subr.bf16.mxu0 0
      %490 = vmatpush1.bf16.msra.mxu0 %v375
      %491 = vmatprep.subr.bf16.mxu0 0
      %492 = vmatpush1.bf16.msra.mxu0 %v378
      %493 = vmatprep.subr.bf16.mxu0 0
      %494 = vmatpush1.bf16.msra.mxu0 %v381
      %495 = vmatprep.subr.bf16.mxu0 0
      %496 = vmatpush1.bf16.msra.mxu0 %v384
      %497 = vmatprep.subr.bf16.mxu0 0
      %498 = vmatpush1.bf16.msra.mxu0 %v387
      %499 = vmatprep.subr.bf16.mxu0 0
      %500 = vmatpush1.bf16.msra.mxu0 %v390
      %501 = vmatprep.subr.bf16.mxu0 0
      %502 = vmatpush1.bf16.msra.mxu0 %v393
      %503 = vmatprep.subr.bf16.mxu0 0
      %504 = vmatpush1.bf16.msra.mxu0 %v396
      %505 = vmatprep.subr.bf16.mxu0 0
      %506 = vmatpush1.bf16.msra.mxu0 %v399
      %507 = vmatprep.subr.bf16.mxu0 0
      %508 = vmatpush1.bf16.msra.mxu0 %v402
      %509 = vmatprep.subr.bf16.mxu0 0
      %510 = vmatpush1.bf16.msra.mxu0 %v405
      %511 = vmatprep.subr.bf16.mxu0 0
      %512 = vmatpush1.bf16.msra.mxu0 0
      %513 = vmatprep.subr.bf16.mxu0 0
      %514 = vmatpush1.bf16.msra.mxu0 0
      %515 = vmatprep.subr.bf16.mxu0 0
      %516 = vmatpush1.bf16.msra.mxu0 0
      %517 = vmatprep.subr.bf16.mxu0 0
      %518 = vmatpush1.bf16.msra.mxu0 0
      %519 = vmatprep.mubr.bf16.mxu0 %v444
      %520 = vmatmul.mubr.bf16.gmra.mrb[0].mxu0 %v247
      %v521 = vpop.f32.mrb[0].mxu0
      %v522 = vadd.f32 0.0, %v521
      %v523 = vpop.f32.mrb[0].mxu0
      %v524 = vpop.f32.mrb[0].mxu0
      %v525 = vpop.f32.mrb[0].mxu0
      %526 = vdwg.mxu0
      %v528 = vrot.slane %v483, 3
      %v530 = vadd.f32 %v481, %v528
      %v532 = vrot.slane %v522, 1
      %v534 = vadd.f32 %v530, %v532
      %v535 = vrot.slane %v483, 6
      %v537 = vadd.f32 %v481, %v535
      %v538 = vadd.f32 %v537, %v532
      %v539 = vld [vmem:[%s2] sm:$0x1]
      %v540 = vld [vmem:[%s3] sm:$0x1]
      %v542 = vlaneseq
      %v543 = vshrl.u32 %v542, 7
      %v544 = vsub.s32 0, %v543
      %v545 = vrot.slane %v539, %v544
      %v547 = vmul.f32 %v534, %v545
      %v549 = vlaneseq
      %v550 = vshrl.u32 %v549, 7
      %v551 = vsub.s32 0, %v550
      %v552 = vrot.slane %v540, %v551
      %v554 = vadd.f32 %v547, %v552
      %v555 = vmax.f32 %v554, 0.0
      %v556 = vmul.f32 %v538, %v545
      %v557 = vadd.f32 %v556, %v552
      %v558 = vmax.f32 %v557, 0.0
      %v560 = vrot.slane %v558, 3
      %v562 = vmax.f32 %v555, %v560
      %564 = vrot.lane.b32.xlu0 %v562, 64
      %v565 = vpop.permute.xlu0 %564
      %v567 = vmax.f32 %v562, %v565
      %v568 = vpack.c.bf16 %v567, %v567
      %vm569 = vcmask 516096
      %570 = vst.msk [vmem:[%s193] sm:$0x1] %vm569, %v568
      %p571 = scmp.lt.s32.totalorder %s15, 1
      %s572 = scalar_select %p571, %s15, 1
      %s573 = scalar_lea.vmem %s4, %s572
      // Predicated region
      $region37: #{_lambda_.6} parent=35 // pred_check
        %p574 = pneg %p122
      $region38: #{_lambda_.6} parent=35 // pred_check_branch
        %576 = sbr.rel (%p574) target = $region40
      $region39: #{_lambda_.6} parent=35 // pred_region
        _
      $region40: #{_lambda_.6} parent=35 // pred_fallthru
        _
    $region36: #{_lambda_.6} parent=5 // pred_fallthru
      _
    %p577 = scmp.le.s32.totalorder 2, %s10
    // Predicated region
    $region41: #{_lambda_.6} parent=5 // pred_check
      %p578 = pneg %p577
    $region42: #{_lambda_.6} parent=5 // pred_check_branch
      %580 = sbr.rel (%p578) target = $region44
    $region43: #{_lambda_.6} parent=5 // pred_region
      %s581 = ssub.s32 %s10, 2
      // Predicated region
      $region45: #{_lambda_.6} parent=43 // pred_check
        %p582 = pneg %p128
      $region46: #{_lambda_.6} parent=43 // pred_check_branch
        %584 = sbr.rel (%p582) target = $region48
      $region47: #{_lambda_.6} parent=43 // pred_region
        %p585 = scmp.lt.s32.totalorder %s16, 1
        %s586 = scalar_select %p585, %s16, 1
        %s587 = scalar_lea.vmem %s4, %s586
      $region48: #{_lambda_.6} parent=43 // pred_fallthru
        _
    $region44: #{_lambda_.6} parent=5 // pred_fallthru
      _
  $region6: #{_lambda_.6} parent=0 // loop_footer
    %s14 = sadd.s32 1, %s10
  $region7: #{_lambda_.6} parent=0 // loop_footer_branch
    %9 = sbr.rel target = $region3
  $region8: #{_lambda_.6} parent=0 // loop_exit
    _

// kernel: _lambda_.7
$region0: #{_lambda_.7}
  #allocation0 [shape = 'u32[]', space=smem, size = 0x4, offset = 0x4, fixed_abs, tag = 'smem constant byte address 0x4 - core index']
  #allocation1 [shape = 'u32[144,128]{1,0:T(1,128)}', space=vmem, size = 0x12000, scoped, tag = 'internal scratch']
  %s0 = inlined_call_operand.vmem [shape: bf16[2,4,128], index: 0, kind: input, shape index: {}]
  %s1 = inlined_call_operand.vmem [shape: bf16[128,192], index: 1, kind: input, shape index: {}]
  %s2 = inlined_call_operand.vmem [shape: f32[1,64], index: 2, kind: input, shape index: {}]
  %s3 = inlined_call_operand.vmem [shape: f32[1,64], index: 3, kind: input, shape index: {}]
  %s4 = inlined_call_operand.hbm [shape: f32[2,1,32], index: 4, kind: output, shape index: {}]
  %s5 = sld [smem:[#allocation0]]
  $region49: #{_lambda_.7} parent=0
    _
  %s7 = ssub.s32 1, %s5
  %s8 = scalar_select 0, %s7, %s5
  $region1: #{_lambda_.7} parent=0
    #allocation2 [shape = 'u8[1024]{0}', space=vmem, size = 0x400, scoped, tag = 'output window, operand 0']
    #allocation3 [shape = 's32[2]{0}', space=sflag, size = 0x8, scoped, tag = 'scoped memory for _lambda_.7']
    %9 = vsyncpa [#allocation3], 0
    %s10 = scalar_lea.sflag [#allocation3], 1
    %11 = vsyncpa %s10, 0
    loop: start=0, step=1, limit=4
    $region2: #{_lambda_.7} parent=1 // loop_pre_header
      _
    $region3: #{_lambda_.7} parent=1 // loop_header
      %s13 = sphi 0, %s17
      %p14 = scmp.ge.s32.totalorder %s13, 4
      %s23 = sphi 0, %s25
      %s26 = sphi 0, %s23
      %s27 = sphi 0, %s26
      %s43 = sphi 0, %s27
      %s47 = sphi 0, %s47
      %s49 = sphi 0, %s47
      %s50 = sphi 0, %s49
      %s64 = sphi 0, %s50
      %s68 = sphi 0, %s68
      %s70 = sphi 0, %s68
      %s71 = sphi 0, %s70
      %s85 = sphi 0, %s71
      %s89 = sphi 0, %s89
      %s91 = sphi 0, %s89
      %s92 = sphi 0, %s91
      %s106 = sphi 0, %s92
      %s112 = sphi 0, %s114
      %s115 = sphi 0, %s112
      %s116 = sphi 0, %s115
      %s132 = sphi 0, %s116
    $region4: #{_lambda_.7} parent=1 // loop_header_branch
      %16 = sbr.rel (%p14) target = $region8
    $region5: #{_lambda_.7} parent=1 // loop_body
      %s18 = ssub.s32 %s13, 1
      %s19 = ssub.s32 %s13, 2
      %s20 = sadd.s32 %s13, 1
      %s21 = ssub.s32 %s13, %s20
      %p22 = scmp.eq.s32.totalorder %s21, 0
      %s24 = sadd.s32 %s23, 1
      %s25 = scalar_select %p22, %s23, %s24
      %p28 = pneg %p22
      %p29 = scmp.eq.s32.totalorder %s13, 1
      %p30 = por %p28, %p29
      %p31 = scmp.ne.s32.totalorder %s23, %s26
      %p32 = scmp.eq.s32.totalorder %s13, 0
      %p33 = por %p31, %p32
      %p34 = scmp.ne.s32.totalorder %s23, %s26
      %p35 = scmp.eq.s32.totalorder %s18, 1
      %p36 = por %p34, %p35
      %p37 = scmp.ne.s32.totalorder %s26, %s27
      %p38 = scmp.eq.s32.totalorder %s18, 0
      %p39 = por %p37, %p38
      %p40 = scmp.ne.s32.totalorder %s26, %s27
      %p41 = scmp.eq.s32.totalorder %s19, 1
      %p42 = por %p40, %p41
      %p44 = scmp.ne.s32.totalorder %s27, %s43
      %p45 = scmp.eq.s32.totalorder %s19, 0
      %p46 = por %p44, %p45
      %s48 = sadd.s32 %s47, 1
      %p51 = scmp.eq.s32.totalorder %s13, 1
      %p52 = scmp.ne.s32.totalorder %s47, %s49
      %p53 = scmp.eq.s32.totalorder %s13, 0
      %p54 = por %p52, %p53
      %p55 = scmp.ne.s32.totalorder %s47, %s49
      %p56 = scmp.eq.s32.totalorder %s18, 1
      %p57 = por %p55, %p56
      %p58 = scmp.ne.s32.totalorder %s49, %s50
      %p59 = scmp.eq.s32.totalorder %s18, 0
      %p60 = por %p58, %p59
      %p61 = scmp.ne.s32.totalorder %s49, %s50
      %p62 = scmp.eq.s32.totalorder %s19, 1
      %p63 = por %p61, %p62
      %p65 = scmp.ne.s32.totalorder %s50, %s64
      %p66 = scmp.eq.s32.totalorder %s19, 0
      %p67 = por %p65, %p66
      %s69 = sadd.s32 %s68, 1
      %p72 = scmp.eq.s32.totalorder %s13, 1
      %p73 = scmp.ne.s32.totalorder %s68, %s70
      %p74 = scmp.eq.s32.totalorder %s13, 0
      %p75 = por %p73, %p74
      %p76 = scmp.ne.s32.totalorder %s68, %s70
      %p77 = scmp.eq.s32.totalorder %s18, 1
      %p78 = por %p76, %p77
      %p79 = scmp.ne.s32.totalorder %s70, %s71
      %p80 = scmp.eq.s32.totalorder %s18, 0
      %p81 = por %p79, %p80
      %p82 = scmp.ne.s32.totalorder %s70, %s71
      %p83 = scmp.eq.s32.totalorder %s19, 1
      %p84 = por %p82, %p83
      %p86 = scmp.ne.s32.totalorder %s71, %s85
      %p87 = scmp.eq.s32.totalorder %s19, 0
      %p88 = por %p86, %p87
      %s90 = sadd.s32 %s89, 1
      %p93 = scmp.eq.s32.totalorder %s13, 1
      %p94 = scmp.ne.s32.totalorder %s89, %s91
      %p95 = scmp.eq.s32.totalorder %s13, 0
      %p96 = por %p94, %p95
      %p97 = scmp.ne.s32.totalorder %s89, %s91
      %p98 = scmp.eq.s32.totalorder %s18, 1
      %p99 = por %p97, %p98
      %p100 = scmp.ne.s32.totalorder %s91, %s92
      %p101 = scmp.eq.s32.totalorder %s18, 0
      %p102 = por %p100, %p101
      %p103 = scmp.ne.s32.totalorder %s91, %s92
      %p104 = scmp.eq.s32.totalorder %s19, 1
      %p105 = por %p103, %p104
      %p107 = scmp.ne.s32.totalorder %s92, %s106
      %p108 = scmp.eq.s32.totalorder %s19, 0
      %p109 = por %p107, %p108
      %s110 = ssub.s32 %s13, %s20
      %p111 = scmp.eq.s32.totalorder %s110, 0
      %s113 = sadd.s32 %s112, 1
      %s114 = scalar_select %p111, %s112, %s113
      %p117 = pneg %p111
      %p118 = scmp.eq.s32.totalorder %s13, 1
      %p119 = por %p117, %p118
      %p120 = scmp.ne.s32.totalorder %s112, %s115
      %p121 = scmp.eq.s32.totalorder %s13, 0
      %p122 = por %p120, %p121
      %p123 = scmp.ne.s32.totalorder %s112, %s115
      %p124 = scmp.eq.s32.totalorder %s18, 1
      %p125 = por %p123, %p124
      %p126 = scmp.ne.s32.totalorder %s115, %s116
      %p127 = scmp.eq.s32.totalorder %s18, 0
      %p128 = por %p126, %p127
      %p129 = scmp.ne.s32.totalorder %s115, %s116
      %p130 = scmp.eq.s32.totalorder %s19, 1
      %p131 = por %p129, %p130
      %p133 = scmp.ne.s32.totalorder %s116, %s132
      %p134 = scmp.eq.s32.totalorder %s19, 0
      %p135 = por %p133, %p134
      %p136 = scmp.le.s32.totalorder 1, %s13
      %p137 = scmp.lt.s32.totalorder %s13, 3
      %p138 = pnand %p136, %p137
      %p139 = pneg %p138
      // Predicated region
      $region9: #{_lambda_.7} parent=5 // pred_check
        _
      $region10: #{_lambda_.7} parent=5 // pred_check_branch
        %141 = sbr.rel (%p138) target = $region12
      $region11: #{_lambda_.7} parent=5 // pred_region
        %s142 = ssub.s32 %s13, 1
        // Predicated region
        $region13: #{_lambda_.7} parent=11 // pred_check
          %p143 = pneg %p60
        $region14: #{_lambda_.7} parent=11 // pred_check_branch
          %145 = sbr.rel (%p143) target = $region16
        $region15: #{_lambda_.7} parent=11 // pred_region
          _
        $region16: #{_lambda_.7} parent=11 // pred_fallthru
          _
        // Predicated region
        $region17: #{_lambda_.7} parent=11 // pred_check
          %p146 = pneg %p81
        $region18: #{_lambda_.7} parent=11 // pred_check_branch
          %148 = sbr.rel (%p146) target = $region20
        $region19: #{_lambda_.7} parent=11 // pred_region
          _
        $region20: #{_lambda_.7} parent=11 // pred_fallthru
          _
        // Predicated region
        $region21: #{_lambda_.7} parent=11 // pred_check
          %p149 = pneg %p102
        $region22: #{_lambda_.7} parent=11 // pred_check_branch
          %151 = sbr.rel (%p149) target = $region24
        $region23: #{_lambda_.7} parent=11 // pred_region
          _
        $region24: #{_lambda_.7} parent=11 // pred_fallthru
          _
      $region12: #{_lambda_.7} parent=5 // pred_fallthru
        _
      %p152 = scmp.lt.s32.totalorder %s13, 2
      // Predicated region
      $region25: #{_lambda_.7} parent=5 // pred_check
        %p153 = pneg %p152
      $region26: #{_lambda_.7} parent=5 // pred_check_branch
        %155 = sbr.rel (%p153) target = $region28
      $region27: #{_lambda_.7} parent=5 // pred_region
        // Predicated region
        $region29: #{_lambda_.7} parent=27 // pred_check
          %p156 = pneg %p33
        $region30: #{_lambda_.7} parent=27 // pred_check_branch
          %158 = sbr.rel (%p156) target = $region32
        $region31: #{_lambda_.7} parent=27 // pred_region
          %p159 = scmp.lt.s32.totalorder %s13, 1
          %s160 = scalar_select %p159, %s13, 1
          %s161 = smul.addr %s160, 2
          %s162 = scalar_lea.vmem %s0, %s161
        $region32: #{_lambda_.7} parent=27 // pred_fallthru
          _
      $region28: #{_lambda_.7} parent=5 // pred_fallthru
        _
      %p163 = scmp.le.s32.totalorder 1, %s13
      %p164 = scmp.lt.s32.totalorder %s13, 3
      %p165 = pnand %p163, %p164
      %p166 = pneg %p165
      // Predicated region
      $region33: #{_lambda_.7} parent=5 // pred_check
        _
      $region34: #{_lambda_.7} parent=5 // pred_check_branch
        %168 = sbr.rel (%p165) target = $region36
      $region35: #{_lambda_.7} parent=5 // pred_region
        %s169 = ssub.s32 %s13, 1
        %p170 = scmp.lt.s32.totalorder %s18, 1
        %s171 = scalar_select %p170, %s18, 1
        %s172 = smul.addr %s171, 2
        %s173 = scalar_lea.vmem %s0, %s172
        %p174 = pneg %p39
        %p175 = pneg %p36
        %p176 = pneg %p60
        %p177 = pneg %p57
        %p178 = pneg %p81
        %p179 = pneg %p78
        %p180 = pneg %p102
        %p181 = pneg %p99
        %p182 = pneg %p128
        %p183 = pneg %p125
        %s184 = sand.u32 %s115, 1
        %s185 = scalar_lea.sflag [#allocation3], %s184
        %s186 = sand.u32 %s115, 1
        %s187 = scalar_lea.vmem [#allocation2], %s186
        %p188 = scmp.lt.s32.totalorder %s18, 1
        %s189 = scalar_select %p188, %s18, 1
        %s190 = smul.addr %s189, 2
        %s191 = scalar_lea.vmem %s0, %s190
        %v193 = vld [vmem:[%s191] sm:$0x3]
        %v194 = vld [vmem:[%s1] sm:$0xff]
        %v195 = vld [vmem:[%s1 + $0x8] sm:$0xff]
        %v196 = vld [vmem:[%s1 + $0x10] sm:$0xff]
        %v197 = vld [vmem:[%s1 + $0x18] sm:$0xff]
        %v198 = vld [vmem:[%s1 + $0x20] sm:$0xff]
        %v199 = vld [vmem:[%s1 + $0x28] sm:$0xff]
        %v200 = vld [vmem:[%s1 + $0x30] sm:$0xff]
        %v201 = vld [vmem:[%s1 + $0x38] sm:$0xff]
        %v202 = vld [vmem:[%s1 + $0x40] sm:$0xff]
        %v203 = vld [vmem:[%s1 + $0x48] sm:$0xff]
        %v204 = vld [vmem:[%s1 + $0x50] sm:$0xff]
        %v205 = vld [vmem:[%s1 + $0x58] sm:$0xff]
        %v206 = vld [vmem:[%s1 + $0x60] sm:$0xff]
        %v207 = vld [vmem:[%s1 + $0x68] sm:$0xff]
        %v208 = vld [vmem:[%s1 + $0x70] sm:$0xff]
        %v209 = vld [vmem:[%s1 + $0x78] sm:$0xff]
        %v226 = vunpack.c.l.b16 %v194
        %v227 = vunpack.c.h.b16 %v194
        %v228 = vunpack.c.l.b16 %v195
        %v229 = vunpack.c.h.b16 %v195
        %v230 = vunpack.c.l.b16 %v196
        %v231 = vunpack.c.h.b16 %v196
        %v232 = vunpack.c.l.b16 %v197
        %v233 = vunpack.c.h.b16 %v197
        %v234 = vunpack.c.l.b16 %v198
        %v235 = vunpack.c.h.b16 %v198
        %v236 = vunpack.c.l.b16 %v199
        %v237 = vunpack.c.h.b16 %v199
        %v238 = vunpack.c.l.b16 %v200
        %v239 = vunpack.c.h.b16 %v200
        %v240 = vunpack.c.l.b16 %v201
        %v241 = vunpack.c.h.b16 %v201
        %v242 = vunpack.c.l.b16 %v202
        %v243 = vunpack.c.h.b16 %v202
        %v244 = vunpack.c.l.b16 %v203
        %v245 = vunpack.c.h.b16 %v203
        %v246 = vunpack.c.l.b16 %v204
        %v247 = vunpack.c.h.b16 %v204
        %v248 = vunpack.c.l.b16 %v205
        %v249 = vunpack.c.h.b16 %v205
        %v250 = vunpack.c.l.b16 %v206
        %v251 = vunpack.c.h.b16 %v206
        %v252 = vunpack.c.l.b16 %v207
        %v253 = vunpack.c.h.b16 %v207
        %v254 = vunpack.c.l.b16 %v208
        %v255 = vunpack.c.h.b16 %v208
        %v256 = vunpack.c.l.b16 %v209
        %v257 = vunpack.c.h.b16 %v209
        %v258 = vpack.c.b16 %v228, %v226
        %v259 = vpack.c.b16 %v229, %v227
        %v260 = vpack.c.b16 %v232, %v230
        %v261 = vpack.c.b16 %v233, %v231
        %v262 = vpack.c.b16 %v236, %v234
        %v263 = vpack.c.b16 %v237, %v235
        %v264 = vpack.c.b16 %v240, %v238
        %v265 = vpack.c.b16 %v241, %v239
        %v266 = vpack.c.b16 %v244, %v242
        %v267 = vpack.c.b16 %v245, %v243
        %v268 = vpack.c.b16 %v248, %v246
        %v269 = vpack.c.b16 %v249, %v247
        %v270 = vpack.c.b16 %v252, %v250
        %v271 = vpack.c.b16 %v253, %v251
        %v272 = vpack.c.b16 %v256, %v254
        %v273 = vpack.c.b16 %v257, %v255
        %290 = vmatprep.subr.bf16.mxu0 %v259
        %291 = vmatpush1.bf16.msra.mxu0 %v258
        %292 = vmatprep.subr.bf16.mxu0 %v261
        %293 = vmatpush1.bf16.msra.mxu0 %v260
        %294 = vmatprep.subr.bf16.mxu0 %v263
        %295 = vmatpush1.bf16.msra.mxu0 %v262
        %296 = vmatprep.subr.bf16.mxu0 %v265
        %297 = vmatpush1.bf16.msra.mxu0 %v264
        %298 = vmatprep.subr.bf16.mxu0 %v267
        %299 = vmatpush1.bf16.msra.mxu0 %v266
        %300 = vmatprep.subr.bf16.mxu0 %v269
        %301 = vmatpush1.bf16.msra.mxu0 %v268
        %302 = vmatprep.subr.bf16.mxu0 %v271
        %303 = vmatpush1.bf16.msra.mxu0 %v270
        %304 = vmatprep.subr.bf16.mxu0 %v273
        %305 = vmatpush1.bf16.msra.mxu0 %v272
        %306 = vmatprep.subr.bf16.mxu0 0
        %307 = vmatpush1.bf16.msra.mxu0 0
        %308 = vmatprep.subr.bf16.mxu0 0
        %309 = vmatpush1.bf16.msra.mxu0 0
        %310 = vmatprep.subr.bf16.mxu0 0
        %311 = vmatpush1.bf16.msra.mxu0 0
        %312 = vmatprep.subr.bf16.mxu0 0
        %313 = vmatpush1.bf16.msra.mxu0 0
        %314 = vmatprep.subr.bf16.mxu0 0
        %315 = vmatpush1.bf16.msra.mxu0 0
        %316 = vmatprep.subr.bf16.mxu0 0
        %317 = vmatpush1.bf16.msra.mxu0 0
        %318 = vmatprep.subr.bf16.mxu0 0
        %319 = vmatpush1.bf16.msra.mxu0 0
        %320 = vmatprep.subr.bf16.mxu0 0
        %321 = vmatpush1.bf16.msra.mxu0 0
        %322 = vmatprep.mubr.bf16.mxu0 0
        %323 = vmatmul.mubr.bf16.gmra.mrb[0].mxu0 %v193
        %v324 = vpop.f32.mrb[0].mxu0
        %v325 = vadd.f32 0.0, %v324
        %v326 = vpop.f32.mrb[0].mxu0
        %v327 = vadd.f32 0.0, %v326
        %v328 = vpop.f32.mrb[0].mxu0
        %v329 = vpop.f32.mrb[0].mxu0
        %330 = vdwg.mxu0
        %v332 = vrot.slane %v325, 2
        %333 = vrot.lane.b32.xlu0 %v332, 64
        %v334 = vpop.permute.xlu0 %333
        %v336 = vadd.f32 %v325, %v334
        %v338 = vrot.slane %v327, 1
        %v340 = vadd.f32 %v336, %v338
        %v341 = vrot.slane %v325, 7
        %342 = vrot.lane.b32.xlu0 %v341, 64
        %v343 = vpop.permute.xlu0 %342
        %v345 = vadd.f32 %v325, %v343
        %v346 = vadd.f32 %v345, %v338
        %v347 = vld [vmem:[%s2] sm:$0x1]
        %v348 = vld [vmem:[%s3] sm:$0x1]
        %v349 = vmul.f32 %v340, %v347
        %v350 = vadd.f32 %v349, %v348
        %v351 = vmax.f32 %v350, 0.0
        %v353 = vlaneseq
        %v354 = vshrl.u32 %v353, 7
        %v355 = vsub.s32 0, %v354
        %v356 = vrot.slane %v347, %v355
        %v358 = vmul.f32 %v346, %v356
        %v360 = vlaneseq
        %v361 = vshrl.u32 %v360, 7
        %v362 = vsub.s32 0, %v361
        %v363 = vrot.slane %v348, %v362
        %v365 = vadd.f32 %v358, %v363
        %v366 = vmax.f32 %v365, 0.0
        %v368 = vrot.slane %v366, 2
        %v370 = vmax.f32 %v351, %v368
        %372 = vrot.lane.b32.xlu0 %v370, 96
        %v373 = vpop.permute.xlu0 %372
        %v375 = vmax.f32 %v370, %v373
        %vm376 = vcmask 253952
        %377 = vst.msk [vmem:[%s187] sm:$0x1] %vm376, %v375
        %s378 = sand.u32 %s115, 1
        %s379 = scalar_lea.sflag [#allocation3], %s378
        %s380 = sand.u32 %s115, 1
        %s381 = scalar_lea.vmem [#allocation2], %s380
        // Predicated region
        $region37: #{_lambda_.7} parent=35 // pred_check
          %p382 = pneg %p125
        $region38: #{_lambda_.7} parent=35 // pred_check_branch
          %384 = sbr.rel (%p382) target = $region40
        $region39: #{_lambda_.7} parent=35 // pred_region
          %s386 = ssub.s32 16, 16
          %387 = vsyncadd %s379, %s386
          %s388 = smul.addr %s18, 16
          %s389 = scalar_lea.hbm %s4, %s388
          %s391 = sshll.u32 %s381, 4
          %s392 = int_to_ptr.vmem [resolvable:$true] %s391
          %394 = dma.vmem_to_hbm [thread:$0]  %s392, 16, %s389, %s379
        $region40: #{_lambda_.7} parent=35 // pred_fallthru
          _
      $region36: #{_lambda_.7} parent=5 // pred_fallthru
        _
      %p395 = scmp.le.s32.totalorder 2, %s13
      // Predicated region
      $region41: #{_lambda_.7} parent=5 // pred_check
        %p396 = pneg %p395
      $region42: #{_lambda_.7} parent=5 // pred_check_branch
        %398 = sbr.rel (%p396) target = $region44
      $region43: #{_lambda_.7} parent=5 // pred_region
        %s399 = ssub.s32 %s13, 2
        // Predicated region
        $region45: #{_lambda_.7} parent=43 // pred_check
          %p400 = pneg %p131
        $region46: #{_lambda_.7} parent=43 // pred_check_branch
          %402 = sbr.rel (%p400) target = $region48
        $region47: #{_lambda_.7} parent=43 // pred_region
          %s403 = sand.u32 %s116, 1
          %s404 = scalar_lea.sflag [#allocation3], %s403
          %s405 = sand.u32 %s116, 1
          %s406 = scalar_lea.vmem [#allocation2], %s405
          %407 = dma.done %s404, 16
        $region48: #{_lambda_.7} parent=43 // pred_fallthru
          _
      $region44: #{_lambda_.7} parent=5 // pred_fallthru
        _
    $region6: #{_lambda_.7} parent=1 // loop_footer
      %s17 = sadd.s32 1, %s13
    $region7: #{_lambda_.7} parent=1 // loop_footer_branch
      %12 = sbr.rel target = $region3
    $region8: #{_lambda_.7} parent=1 // loop_exit
      _
    %408 = vsyncpa [#allocation3], 1
    %s409 = scalar_lea.sflag [#allocation3], 1
    %410 = vsyncpa %s409, 1

</llo_original>
